<compile_context>
chip_gen: v7x
topology: tpu7x:2x2x1
jax: 0.10.0
libtpu: 0.0.40
codegen_flags: <defaults>
</compile_context>

<pallas_src>
import math
import functools

import jax
import jax.numpy as jnp
from jax.experimental import pallas as pl
from jax.experimental.pallas import tpu as pltpu


# ---------------------------------------------------------------------------
# Fused kernel
# ---------------------------------------------------------------------------
def _fused_bert_attention_kernel(h_ref, z_ref, mask_ref,
                                 wq_ref, bq_ref, wkv_ref, bkv_ref,
                                 wukv_ref, bukv_ref, wo_ref, bo_ref,
                                 gamma_ref, beta_ref,
                                 out_ref, k_scr, v_scr, *,
                                 num_heads, head_size, hidden, q_tile,
                                 eps, compute_dtype):
    H, nH, d, Sq = hidden, num_heads, head_size, q_tile
    S = h_ref.shape[1]
    qt = pl.program_id(1)

    # ---- K / V projections: once per batch element (first query tile) ----
    @pl.when(qt == 0)
    def _():
        hf = h_ref[0]                                   # (S, H) bf16
        zf = z_ref[0]                                   # (S, H) bf16
        kv = jnp.dot(hf, wkv_ref[...],
                     preferred_element_type=jnp.float32) + bkv_ref[...]
        kv = kv + jnp.dot(zf, wukv_ref[...],
                          preferred_element_type=jnp.float32) + bukv_ref[...]
        k = kv[:, :H].reshape(S, nH, d)
        v = kv[:, H:].reshape(S, nH, d)
        # Head relayout done once per batch element, reused by all query tiles.
        k_scr[...] = jnp.transpose(k, (1, 0, 2)).astype(compute_dtype)
        v_scr[...] = jnp.transpose(v, (1, 0, 2)).astype(compute_dtype)

    # ---- Q projection for this query tile (1/sqrt(d) pre-folded in Wq/bq) ----
    q_start = pl.multiple_of(qt * Sq, Sq)
    h_q = h_ref[0, pl.ds(q_start, Sq), :]               # (Sq, H) bf16
    q = jnp.dot(h_q, wq_ref[...],
                preferred_element_type=jnp.float32) + bq_ref[...]
    qh = jnp.transpose(q.reshape(Sq, nH, d), (1, 0, 2)).astype(compute_dtype)

    mask = mask_ref[0, 0, 0, :].astype(jnp.float32)     # (S,) additive key mask

    # (nH, Sq, S) scores for this query tile only -> VMEM bounded by q_tile.
    scores = jnp.einsum('hqd,hkd->hqk', qh, k_scr[...],
                        preferred_element_type=jnp.float32)
    scores = scores + mask[None, None, :]

    # Numerically-stable softmax in f32; EUP reciprocal instead of VPU divide.
    m = jnp.max(scores, axis=-1, keepdims=True)
    e = jnp.exp(scores - m)
    denom = jnp.sum(e, axis=-1, keepdims=True)
    probs = (e * pl.reciprocal(denom, approx=True)).astype(compute_dtype)

    ctx = jnp.einsum('hqk,hkd->hqd', probs, v_scr[...],
                     preferred_element_type=jnp.float32)        # (nH, Sq, d)
    ctx2d = jnp.transpose(ctx, (1, 0, 2)).reshape(Sq, H)        # (Sq, H) f32

    # ---- BertSelfOutput fused: dense + residual + LayerNorm ----
    y = jnp.dot(ctx2d.astype(compute_dtype), wo_ref[...],
                preferred_element_type=jnp.float32) + bo_ref[...]
    y = y + h_q.astype(jnp.float32)

    mean = jnp.mean(y, axis=-1, keepdims=True)
    var = jnp.mean(jnp.square(y - mean), axis=-1, keepdims=True)
    yn = (y - mean) * jax.lax.rsqrt(var + eps)

    # Single lane-dense (Sq, H) store.
    out_ref[0] = (yn * gamma_ref[...] + beta_ref[...]).astype(out_ref.dtype)


# ---------------------------------------------------------------------------
# One-time parameter prep (hoisted out of the per-call wrapper)
# ---------------------------------------------------------------------------
def prepare_params(params, num_heads, compute_dtype=jnp.bfloat16):
    H = params["wq"].shape[0]
    d = H // num_heads
    scale = 1.0 / math.sqrt(d)
    return {
        # 1/sqrt(d) folded into the Q projection -> no per-score scale multiply.
        "wq": (params["wq"] * scale).astype(compute_dtype),        # (H, H)
        "bq": (params["bq"] * scale).astype(jnp.float32),          # (1, H)
        "wkv": jnp.concatenate([params["wk"], params["wv"]],
                               axis=1).astype(compute_dtype),      # (H, 2H)
        "bkv": jnp.concatenate([params["bk"], params["bv"]],
                               axis=1).astype(jnp.float32),        # (1, 2H)
        "wukv": jnp.concatenate([params["wuk"], params["wuv"]],
                                axis=1).astype(compute_dtype),     # (H, 2H)
        "bukv": jnp.concatenate([params["buk"], params["buv"]],
                                axis=1).astype(jnp.float32),       # (1, 2H)
        "wo": params["wo"].astype(compute_dtype),                  # (H, H)
        "bo": params["bo"].astype(jnp.float32),                    # (1, H)
        "gamma": params["gamma"].astype(jnp.float32),              # (1, H)
        "beta": params["beta"].astype(jnp.float32),                # (1, H)
    }


# ---------------------------------------------------------------------------
# Generation-aware VMEM budget + query-tile choice
# ---------------------------------------------------------------------------
def _vmem_limit_bytes():
    default = 48 * 1024 * 1024          # safe on every generation (v7x: 64 MiB)
    try:
        info = pltpu.get_tpu_info()
        cap = int(getattr(info, "vmem_capacity_bytes", 0))
    except Exception:
        return default
    if cap <= 0:
        return default
    # Leave ~8 MiB headroom; cap at ~100 MiB on 128 MiB parts (v5e/v6e),
    # ~56 MiB on v7x (64 MiB physical).
    return int(min(max(cap - 8 * 1024 * 1024, 24 * 1024 * 1024),
                   100 * 1024 * 1024))


def _pick_q_tile(S, num_heads, vmem_limit_bytes):
    candidates = [t for t in (512, 256, 128, 64, 32, 16, 8)
                  if t <= S and S % t == 0]
    if not candidates:
        return S
    budget = vmem_limit_bytes // 4
    for t in candidates:                # scores + exp (f32) + probs (bf16)
        if num_heads * t * S * (4 + 4 + 2) <= budget:
            return t
    return candidates[-1]


# ---------------------------------------------------------------------------
# Wrapper
# ---------------------------------------------------------------------------
def bert_attention_forward(h, z, attention_mask, prepared_params, num_heads,
                           layer_norm_eps=1e-12, compute_dtype=jnp.bfloat16,
                           q_tile=None):
    B, S, H = h.shape
    assert H % num_heads == 0
    d = H // num_heads
    nH = num_heads

    vmem_limit = _vmem_limit_bytes()
    if q_tile is None:
        q_tile = _pick_q_tile(S, nH, vmem_limit)
    assert S % q_tile == 0
    n_q_tiles = S // q_tile

    # Halve activation DMA bytes: ship h / z as bf16 (residual in bf16 is
    # fine for inference; all accumulation / softmax / LN math stays f32).
    hc = h.astype(compute_dtype)
    zc = z.astype(compute_dtype)
    mask = attention_mask.astype(jnp.float32)

    kernel = functools.partial(
        _fused_bert_attention_kernel,
        num_heads=nH, head_size=d, hidden=H, q_tile=q_tile,
        eps=layer_norm_eps, compute_dtype=compute_dtype)

    act_bytes = jnp.dtype(compute_dtype).itemsize
    cost = pl.CostEstimate(
        flops=int(12 * B * S * H * H + 4 * B * S * S * H),
        transcendentals=int(B * nH * S * S),
        bytes_accessed=int(2 * B * S * H * act_bytes     # h, z
                           + B * S * 4                   # mask
                           + 6 * H * H * act_bytes       # packed weights
                           + 8 * H * 4                   # biases + LN params
                           + B * S * H * h.dtype.itemsize))  # output

    def run(single_buffer_weights):
        def const_spec(shape):
            idx = lambda b, qt: (0,) * len(shape)
            if single_buffer_weights:
                # Grid-invariant operands: no need for double buffering.
                return pl.BlockSpec(shape, idx, pipeline_mode=pl.Buffered(1))
            return pl.BlockSpec(shape, idx)

        seq_spec = pl.BlockSpec((1, S, H), lambda b, qt: (b, 0, 0))
        mask_spec = pl.BlockSpec((1, 1, 1, S), lambda b, qt: (b, 0, 0, 0))
        out_spec = pl.BlockSpec((1, q_tile, H), lambda b, qt: (b, qt, 0))

        in_specs = [seq_spec, seq_spec, mask_spec,
                    const_spec((H, H)), const_spec((1, H)),
                    const_spec((H, 2 * H)), const_spec((1, 2 * H)),
                    const_spec((H, 2 * H)), const_spec((1, 2 * H)),
                    const_spec((H, H)), const_spec((1, H)),
                    const_spec((1, H)), const_spec((1, H))]

        return pl.pallas_call(
            kernel,
            out_shape=jax.ShapeDtypeStruct((B, S, H), h.dtype),
            grid=(B, n_q_tiles),
            in_specs=in_specs,
            out_specs=out_spec,
            scratch_shapes=[pltpu.VMEM((nH, S, d), compute_dtype),   # K cache
                            pltpu.VMEM((nH, S, d), compute_dtype)],  # V cache
            compiler_params=pltpu.CompilerParams(
                dimension_semantics=("parallel", "arbitrary"),
                vmem_limit_bytes=vmem_limit),
            cost_estimate=cost,
        )(hc, zc, mask,
          prepared_params["wq"], prepared_params["bq"],
          prepared_params["wkv"], prepared_params["bkv"],
          prepared_params["wukv"], prepared_params["bukv"],
          prepared_params["wo"], prepared_params["bo"],
          prepared_params["gamma"], prepared_params["beta"])

    try:
        return run(True)
    except Exception:
        # pipeline_mode=pl.Buffered(1) unsupported on this jax build ->
        # fall back to default (double-buffered) weight blocks.
        return run(False)


# ---------------------------------------------------------------------------
# Pure-JAX reference (for correctness check)
# ---------------------------------------------------------------------------
def bert_attention_reference(h, z, attention_mask, params,
                             num_heads, layer_norm_eps=1e-12):
    B, S, H = h.shape
    d = H // num_heads
    q = h @ params["wq"] + params["bq"]
    k = h @ params["wk"] + params["bk"] + z @ params["wuk"] + params["buk"]
    v = h @ params["wv"] + params["bv"] + z @ params["wuv"] + params["buv"]

    def split(x):  # (B,S,H) -> (B,nH,S,d)
        return x.reshape(B, S, num_heads, d).transpose(0, 2, 1, 3)

    qh, kh, vh = split(q), split(k), split(v)
    scores = jnp.einsum("bnqd,bnkd->bnqk", qh, kh) / math.sqrt(d)
    scores = scores + attention_mask          # (B,1,1,S) broadcast
    probs = jax.nn.softmax(scores, axis=-1)
    ctx = jnp.einsum("bnqk,bnkd->bnqd", probs, vh)
    ctx = ctx.transpose(0, 2, 1, 3).reshape(B, S, H)

    y = ctx @ params["wo"] + params["bo"] + h
    mean = y.mean(-1, keepdims=True)
    var = ((y - mean) ** 2).mean(-1, keepdims=True)
    return (y - mean) / jnp.sqrt(var + layer_norm_eps) * params["gamma"] + params["beta"]


# ---------------------------------------------------------------------------
if __name__ == "__main__":
    B, S, H = 2, 8, 32
    NUM_HEADS = 4

    key = jax.random.PRNGKey(0)
    keys = jax.random.split(key, 16)

    def wmat(k):
        return jax.random.normal(k, (H, H), jnp.float32) * 0.05

    def bvec(k):
        return jax.random.normal(k, (1, H), jnp.float32) * 0.05

    params = {
        "wq": wmat(keys[0]),  "bq": bvec(keys[1]),
        "wk": wmat(keys[2]),  "bk": bvec(keys[3]),
        "wv": wmat(keys[4]),  "bv": bvec(keys[5]),
        "wuk": wmat(keys[6]), "buk": bvec(keys[7]),
        "wuv": wmat(keys[8]), "buv": bvec(keys[9]),
        "wo": wmat(keys[10]), "bo": bvec(keys[11]),
        "gamma": jnp.ones((1, H), jnp.float32),
        "beta": jnp.zeros((1, H), jnp.float32),
    }

    h = jax.random.normal(keys[12], (B, S, H), jnp.float32)
    z = jax.random.normal(keys[13], (B, S, H), jnp.float32)

    # BERT-style additive mask: mask out the tail of each sequence.
    valid_lens = jnp.array([S, S - 3], dtype=jnp.int32)
    positions = jnp.arange(S)[None, :]                       # (1, S)
    attn_mask = jnp.where(positions < valid_lens[:, None], 0.0, -10000.0)
    attn_mask = attn_mask.reshape(B, 1, 1, S).astype(jnp.float32)

    prepared = prepare_params(params, NUM_HEADS)             # one-time prep
    out = bert_attention_forward(h, z, attn_mask, prepared, NUM_HEADS)
    out = jax.block_until_ready(out)

    ref = bert_attention_reference(h, z, attn_mask, params, NUM_HEADS)
    assert out.shape == (B, S, H)
    # bf16 MXU inputs / bf16 activations with f32 accumulation -> relaxed tol.
    assert jnp.allclose(out, ref, rtol=5e-2, atol=5e-2), "mismatch vs reference"

    print("KERNEL_OK")
</pallas_src>

<mosaic_0001>
module attributes {stable_mosaic.version = 11 : i64} {
  func.func @_fused_bert_attention_kernel(%arg0: i32, %arg1: i32, %arg2: memref<1x8x32xbf16, #tpu.memory_space<vmem>>, %arg3: memref<1x8x32xbf16, #tpu.memory_space<vmem>>, %arg4: memref<1x1x1x8xf32, #tpu.memory_space<vmem>>, %arg5: memref<32x32xbf16, #tpu.memory_space<vmem>>, %arg6: memref<1x32xf32, #tpu.memory_space<vmem>>, %arg7: memref<32x64xbf16, #tpu.memory_space<vmem>>, %arg8: memref<1x64xf32, #tpu.memory_space<vmem>>, %arg9: memref<32x64xbf16, #tpu.memory_space<vmem>>, %arg10: memref<1x64xf32, #tpu.memory_space<vmem>>, %arg11: memref<32x32xbf16, #tpu.memory_space<vmem>>, %arg12: memref<1x32xf32, #tpu.memory_space<vmem>>, %arg13: memref<1x32xf32, #tpu.memory_space<vmem>>, %arg14: memref<1x32xf32, #tpu.memory_space<vmem>>, %arg15: memref<1x8x32xf32, #tpu.memory_space<vmem>>, %arg16: memref<4x8x8xbf16, #tpu.memory_space<vmem>>, %arg17: memref<4x8x8xbf16, #tpu.memory_space<vmem>>) attributes {dimension_semantics = [#tpu.dimension_semantics<parallel>, #tpu.dimension_semantics<arbitrary>], iteration_bounds = array<i64: 2, 1>, scalar_prefetch = 0 : i64, scratch_operands = 2 : i64, tpu.core_type = #tpu.core_type<tc>, window_params = [{transform_indices = @transform_0, window_bounds = array<i64: 1, 8, 32>}, {transform_indices = @transform_1, window_bounds = array<i64: 1, 8, 32>}, {transform_indices = @transform_2, window_bounds = array<i64: 1, 1, 1, 8>}, {pipeline_mode = #tpu.pipeline_mode<synchronous>, transform_indices = @transform_3, window_bounds = array<i64: 32, 32>}, {pipeline_mode = #tpu.pipeline_mode<synchronous>, transform_indices = @transform_4, window_bounds = array<i64: 1, 32>}, {pipeline_mode = #tpu.pipeline_mode<synchronous>, transform_indices = @transform_5, window_bounds = array<i64: 32, 64>}, {pipeline_mode = #tpu.pipeline_mode<synchronous>, transform_indices = @transform_6, window_bounds = array<i64: 1, 64>}, {pipeline_mode = #tpu.pipeline_mode<synchronous>, transform_indices = @transform_7, window_bounds = array<i64: 32, 64>}, {pipeline_mode = #tpu.pipeline_mode<synchronous>, transform_indices = @transform_8, window_bounds = array<i64: 1, 64>}, {pipeline_mode = #tpu.pipeline_mode<synchronous>, transform_indices = @transform_9, window_bounds = array<i64: 32, 32>}, {pipeline_mode = #tpu.pipeline_mode<synchronous>, transform_indices = @transform_10, window_bounds = array<i64: 1, 32>}, {pipeline_mode = #tpu.pipeline_mode<synchronous>, transform_indices = @transform_11, window_bounds = array<i64: 1, 32>}, {pipeline_mode = #tpu.pipeline_mode<synchronous>, transform_indices = @transform_12, window_bounds = array<i64: 1, 32>}, {transform_indices = @transform_13, window_bounds = array<i64: 1, 8, 32>}]} {
    %c0_i32 = arith.constant 0 : i32
    %0 = arith.cmpi eq, %arg1, %c0_i32 : i32
    %1 = arith.extui %0 : i1 to i32
    %c0_i32_0 = arith.constant 0 : i32
    %2 = arith.cmpi ne, %1, %c0_i32_0 : i32
    scf.if %2 {
      %c0_37 = arith.constant 0 : index
      %c0_38 = arith.constant 0 : index
      %c0_39 = arith.constant 0 : index
      %73 = vector.load %arg2[%c0_37, %c0_38, %c0_39] : memref<1x8x32xbf16, #tpu.memory_space<vmem>>, vector<1x8x32xbf16>
      %74 = vector.shape_cast %73 : vector<1x8x32xbf16> to vector<8x32xbf16>
      %c0_40 = arith.constant 0 : index
      %c0_41 = arith.constant 0 : index
      %c0_42 = arith.constant 0 : index
      %75 = vector.load %arg3[%c0_40, %c0_41, %c0_42] : memref<1x8x32xbf16, #tpu.memory_space<vmem>>, vector<1x8x32xbf16>
      %76 = vector.shape_cast %75 : vector<1x8x32xbf16> to vector<8x32xbf16>
      %c0_43 = arith.constant 0 : index
      %c0_44 = arith.constant 0 : index
      %77 = vector.load %arg7[%c0_43, %c0_44] : memref<32x64xbf16, #tpu.memory_space<vmem>>, vector<32x64xbf16>
      %cst_45 = arith.constant dense<0.000000e+00> : vector<8x64xf32>
      %78 = tpu.matmul %74, %77, %cst_45 {dimension_numbers = #tpu.dot_dimension_numbers<[1], [0], [0], [1], [0, 0, 1, 1], [], []>} : vector<8x32xbf16>, vector<32x64xbf16>, vector<8x64xf32> -> vector<8x64xf32>
      %c0_46 = arith.constant 0 : index
      %c0_47 = arith.constant 0 : index
      %79 = vector.load %arg8[%c0_46, %c0_47] : memref<1x64xf32, #tpu.memory_space<vmem>>, vector<1x64xf32>
      %80 = vector.broadcast %79 : vector<1x64xf32> to vector<8x64xf32>
      %81 = arith.addf %78, %80 : vector<8x64xf32>
      %c0_48 = arith.constant 0 : index
      %c0_49 = arith.constant 0 : index
      %82 = vector.load %arg9[%c0_48, %c0_49] : memref<32x64xbf16, #tpu.memory_space<vmem>>, vector<32x64xbf16>
      %cst_50 = arith.constant dense<0.000000e+00> : vector<8x64xf32>
      %83 = tpu.matmul %76, %82, %cst_50 {dimension_numbers = #tpu.dot_dimension_numbers<[1], [0], [0], [1], [0, 0, 1, 1], [], []>} : vector<8x32xbf16>, vector<32x64xbf16>, vector<8x64xf32> -> vector<8x64xf32>
      %84 = arith.addf %81, %83 : vector<8x64xf32>
      %c0_51 = arith.constant 0 : index
      %c0_52 = arith.constant 0 : index
      %85 = vector.load %arg10[%c0_51, %c0_52] : memref<1x64xf32, #tpu.memory_space<vmem>>, vector<1x64xf32>
      %86 = vector.broadcast %85 : vector<1x64xf32> to vector<8x64xf32>
      %87 = arith.addf %84, %86 : vector<8x64xf32>
      %88 = vector.extract_strided_slice %87 {offsets = [0, 0], sizes = [8, 32], strides = [1, 1]} : vector<8x64xf32> to vector<8x32xf32>
      %89 = vector.shape_cast %88 : vector<8x32xf32> to vector<8x4x8xf32>
      %90 = vector.extract_strided_slice %87 {offsets = [0, 32], sizes = [8, 32], strides = [1, 1]} : vector<8x64xf32> to vector<8x32xf32>
      %91 = vector.shape_cast %90 : vector<8x32xf32> to vector<8x4x8xf32>
      %92 = tpu.transpose %89, [1, 0, 2] : vector<8x4x8xf32> -> vector<4x8x8xf32>
      %93 = arith.truncf %92 : vector<4x8x8xf32> to vector<4x8x8xbf16>
      %c0_53 = arith.constant 0 : index
      %c0_54 = arith.constant 0 : index
      %c0_55 = arith.constant 0 : index
      %94 = vector.load %arg16[%c0_53, %c0_54, %c0_55] : memref<4x8x8xbf16, #tpu.memory_space<vmem>>, vector<4x8x8xbf16>
      tpu.vector_store %arg16[%c0_53, %c0_54, %c0_55], %93 {strides = array<i32>} : memref<4x8x8xbf16, #tpu.memory_space<vmem>>, vector<4x8x8xbf16>,
      %95 = tpu.transpose %91, [1, 0, 2] : vector<8x4x8xf32> -> vector<4x8x8xf32>
      %96 = arith.truncf %95 : vector<4x8x8xf32> to vector<4x8x8xbf16>
      %c0_56 = arith.constant 0 : index
      %c0_57 = arith.constant 0 : index
      %c0_58 = arith.constant 0 : index
      %97 = vector.load %arg17[%c0_56, %c0_57, %c0_58] : memref<4x8x8xbf16, #tpu.memory_space<vmem>>, vector<4x8x8xbf16>
      tpu.vector_store %arg17[%c0_56, %c0_57, %c0_58], %96 {strides = array<i32>} : memref<4x8x8xbf16, #tpu.memory_space<vmem>>, vector<4x8x8xbf16>,
    } else {
    }
    %c8_i32 = arith.constant 8 : i32
    %3 = arith.muli %arg1, %c8_i32 : i32
    %4 = tpu.assume_multiple %3, 8 : i32
    %c0 = arith.constant 0 : index
    %5 = arith.index_cast %4 : i32 to index
    %c0_1 = arith.constant 0 : index
    %6 = vector.load %arg2[%c0, %5, %c0_1] : memref<1x8x32xbf16, #tpu.memory_space<vmem>>, vector<1x8x32xbf16>
    %7 = vector.shape_cast %6 : vector<1x8x32xbf16> to vector<8x32xbf16>
    %c0_2 = arith.constant 0 : index
    %c0_3 = arith.constant 0 : index
    %8 = vector.load %arg5[%c0_2, %c0_3] : memref<32x32xbf16, #tpu.memory_space<vmem>>, vector<32x32xbf16>
    %cst = arith.constant dense<0.000000e+00> : vector<8x32xf32>
    %9 = tpu.matmul %7, %8, %cst {dimension_numbers = #tpu.dot_dimension_numbers<[1], [0], [0], [1], [0, 0, 1, 1], [], []>} : vector<8x32xbf16>, vector<32x32xbf16>, vector<8x32xf32> -> vector<8x32xf32>
    %c0_4 = arith.constant 0 : index
    %c0_5 = arith.constant 0 : index
    %10 = vector.load %arg6[%c0_4, %c0_5] : memref<1x32xf32, #tpu.memory_space<vmem>>, vector<1x32xf32>
    %11 = vector.broadcast %10 : vector<1x32xf32> to vector<8x32xf32>
    %12 = arith.addf %9, %11 : vector<8x32xf32>
    %13 = vector.shape_cast %12 : vector<8x32xf32> to vector<8x4x8xf32>
    %14 = tpu.transpose %13, [1, 0, 2] : vector<8x4x8xf32> -> vector<4x8x8xf32>
    %15 = arith.truncf %14 : vector<4x8x8xf32> to vector<4x8x8xbf16>
    %c0_6 = arith.constant 0 : index
    %c0_7 = arith.constant 0 : index
    %c0_8 = arith.constant 0 : index
    %c0_9 = arith.constant 0 : index
    %16 = vector.load %arg4[%c0_6, %c0_7, %c0_8, %c0_9] : memref<1x1x1x8xf32, #tpu.memory_space<vmem>>, vector<1x1x1x8xf32>
    %17 = vector.shape_cast %16 : vector<1x1x1x8xf32> to vector<8xf32>
    %c0_10 = arith.constant 0 : index
    %c0_11 = arith.constant 0 : index
    %c0_12 = arith.constant 0 : index
    %18 = vector.load %arg16[%c0_10, %c0_11, %c0_12] : memref<4x8x8xbf16, #tpu.memory_space<vmem>>, vector<4x8x8xbf16>
    "tpu.trace_start"() <{level = 10 : i32, message = "hqd,hkd->hqk"}> : () -> ()
    %cst_13 = arith.constant dense<0.000000e+00> : vector<4x8x8xf32>
    %19 = tpu.matmul %15, %18, %cst_13 {dimension_numbers = #tpu.dot_dimension_numbers<[2], [2], [1], [1], [0, 0, 0, 1, 1, 1], [0], [0]>} : vector<4x8x8xbf16>, vector<4x8x8xbf16>, vector<4x8x8xf32> -> vector<4x8x8xf32>
    "tpu.trace_stop"() : () -> ()
    %20 = vector.shape_cast %17 : vector<8xf32> to vector<1x1x8xf32>
    %21 = vector.broadcast %20 : vector<1x1x8xf32> to vector<4x8x8xf32>
    %22 = arith.addf %19, %21 : vector<4x8x8xf32>
    %cst_14 = arith.constant dense<0xFF800000> : vector<4x8xf32>
    %23 = vector.multi_reduction <maximumf>, %22, %cst_14 [2] : vector<4x8x8xf32> to vector<4x8xf32>
    %24 = vector.shape_cast %23 : vector<4x8xf32> to vector<4x8x1xf32>
    %25 = vector.broadcast %24 : vector<4x8x1xf32> to vector<4x8x8xf32>
    %26 = arith.subf %22, %25 : vector<4x8x8xf32>
    %27 = math.exp %26 : vector<4x8x8xf32>
    %cst_15 = arith.constant dense<0.000000e+00> : vector<4x8xf32>
    %28 = vector.multi_reduction <add>, %27, %cst_15 [2] : vector<4x8x8xf32> to vector<4x8xf32>
    %29 = vector.shape_cast %28 : vector<4x8xf32> to vector<4x8x1xf32>
    %30 = tpu.reciprocal %29 {approx = true} : vector<4x8x1xf32> -> vector<4x8x1xf32>
    %31 = vector.broadcast %30 : vector<4x8x1xf32> to vector<4x8x8xf32>
    %32 = arith.mulf %27, %31 : vector<4x8x8xf32>
    %33 = arith.truncf %32 : vector<4x8x8xf32> to vector<4x8x8xbf16>
    %c0_16 = arith.constant 0 : index
    %c0_17 = arith.constant 0 : index
    %c0_18 = arith.constant 0 : index
    %34 = vector.load %arg17[%c0_16, %c0_17, %c0_18] : memref<4x8x8xbf16, #tpu.memory_space<vmem>>, vector<4x8x8xbf16>
    "tpu.trace_start"() <{level = 10 : i32, message = "hqk,hkd->hqd"}> : () -> ()
    %cst_19 = arith.constant dense<0.000000e+00> : vector<4x8x8xf32>
    %35 = tpu.matmul %33, %34, %cst_19 {dimension_numbers = #tpu.dot_dimension_numbers<[2], [1], [1], [2], [0, 0, 0, 1, 1, 2], [0], [0]>} : vector<4x8x8xbf16>, vector<4x8x8xbf16>, vector<4x8x8xf32> -> vector<4x8x8xf32>
    "tpu.trace_stop"() : () -> ()
    %36 = tpu.transpose %35, [1, 0, 2] : vector<4x8x8xf32> -> vector<8x4x8xf32>
    %37 = vector.shape_cast %36 : vector<8x4x8xf32> to vector<8x32xf32>
    %38 = arith.truncf %37 : vector<8x32xf32> to vector<8x32xbf16>
    %c0_20 = arith.constant 0 : index
    %c0_21 = arith.constant 0 : index
    %39 = vector.load %arg11[%c0_20, %c0_21] : memref<32x32xbf16, #tpu.memory_space<vmem>>, vector<32x32xbf16>
    %cst_22 = arith.constant dense<0.000000e+00> : vector<8x32xf32>
    %40 = tpu.matmul %38, %39, %cst_22 {dimension_numbers = #tpu.dot_dimension_numbers<[1], [0], [0], [1], [0, 0, 1, 1], [], []>} : vector<8x32xbf16>, vector<32x32xbf16>, vector<8x32xf32> -> vector<8x32xf32>
    %c0_23 = arith.constant 0 : index
    %c0_24 = arith.constant 0 : index
    %41 = vector.load %arg12[%c0_23, %c0_24] : memref<1x32xf32, #tpu.memory_space<vmem>>, vector<1x32xf32>
    %42 = vector.broadcast %41 : vector<1x32xf32> to vector<8x32xf32>
    %43 = arith.addf %40, %42 : vector<8x32xf32>
    %44 = arith.extf %7 : vector<8x32xbf16> to vector<8x32xf32>
    %45 = arith.addf %43, %44 : vector<8x32xf32>
    %cst_25 = arith.constant dense<0.000000e+00> : vector<8xf32>
    %46 = vector.multi_reduction <add>, %45, %cst_25 [1] : vector<8x32xf32> to vector<8xf32>
    %47 = vector.shape_cast %46 : vector<8xf32> to vector<8x1xf32>
    %cst_26 = arith.constant 3.200000e+01 : f32
    %48 = vector.broadcast %cst_26 : f32 to vector<8x1xf32>
    %49 = arith.divf %47, %48 : vector<8x1xf32>
    %50 = vector.broadcast %49 : vector<8x1xf32> to vector<8x32xf32>
    %51 = arith.subf %45, %50 : vector<8x32xf32>
    %52 = arith.mulf %51, %51 : vector<8x32xf32>
    %cst_27 = arith.constant dense<0.000000e+00> : vector<8xf32>
    %53 = vector.multi_reduction <add>, %52, %cst_27 [1] : vector<8x32xf32> to vector<8xf32>
    %54 = vector.shape_cast %53 : vector<8xf32> to vector<8x1xf32>
    %cst_28 = arith.constant 3.200000e+01 : f32
    %55 = vector.broadcast %cst_28 : f32 to vector<8x1xf32>
    %56 = arith.divf %54, %55 : vector<8x1xf32>
    %57 = vector.broadcast %49 : vector<8x1xf32> to vector<8x32xf32>
    %58 = arith.subf %45, %57 : vector<8x32xf32>
    %cst_29 = arith.constant 9.99999996E-13 : f32
    %59 = vector.broadcast %cst_29 : f32 to vector<8x1xf32>
    %60 = arith.addf %56, %59 : vector<8x1xf32>
    %61 = math.rsqrt %60 : vector<8x1xf32>
    %62 = vector.broadcast %61 : vector<8x1xf32> to vector<8x32xf32>
    %63 = arith.mulf %58, %62 : vector<8x32xf32>
    %c0_30 = arith.constant 0 : index
    %c0_31 = arith.constant 0 : index
    %64 = vector.load %arg13[%c0_30, %c0_31] : memref<1x32xf32, #tpu.memory_space<vmem>>, vector<1x32xf32>
    %65 = vector.broadcast %64 : vector<1x32xf32> to vector<8x32xf32>
    %66 = arith.mulf %63, %65 : vector<8x32xf32>
    %c0_32 = arith.constant 0 : index
    %c0_33 = arith.constant 0 : index
    %67 = vector.load %arg14[%c0_32, %c0_33] : memref<1x32xf32, #tpu.memory_space<vmem>>, vector<1x32xf32>
    %68 = vector.broadcast %67 : vector<1x32xf32> to vector<8x32xf32>
    %69 = arith.addf %66, %68 : vector<8x32xf32>
    %c0_34 = arith.constant 0 : index
    %c0_35 = arith.constant 0 : index
    %c0_36 = arith.constant 0 : index
    %70 = vector.load %arg15[%c0_34, %c0_35, %c0_36] : memref<1x8x32xf32, #tpu.memory_space<vmem>>, vector<1x8x32xf32>
    %71 = vector.shape_cast %70 : vector<1x8x32xf32> to vector<8x32xf32>
    %72 = vector.shape_cast %69 : vector<8x32xf32> to vector<1x8x32xf32>
    tpu.vector_store %arg15[%c0_34, %c0_35, %c0_36], %72 {strides = array<i32>} : memref<1x8x32xf32, #tpu.memory_space<vmem>>, vector<1x8x32xf32>,
    return
  }
  func.func @transform_0(%arg0: i32, %arg1: i32) -> (i32, i32, i32) {
    %c0_i32 = arith.constant 0 : i32
    %c0_i32_0 = arith.constant 0 : i32
    %c0_i32_1 = arith.constant 0 : i32
    return %arg0, %c0_i32, %c0_i32_0 : i32, i32, i32
  }
  func.func @transform_1(%arg0: i32, %arg1: i32) -> (i32, i32, i32) {
    %c0_i32 = arith.constant 0 : i32
    %c0_i32_0 = arith.constant 0 : i32
    %c0_i32_1 = arith.constant 0 : i32
    return %arg0, %c0_i32, %c0_i32_0 : i32, i32, i32
  }
  func.func @transform_2(%arg0: i32, %arg1: i32) -> (i32, i32, i32, i32) {
    %c0_i32 = arith.constant 0 : i32
    %c0_i32_0 = arith.constant 0 : i32
    %c0_i32_1 = arith.constant 0 : i32
    %c0_i32_2 = arith.constant 0 : i32
    return %arg0, %c0_i32, %c0_i32_0, %c0_i32_1 : i32, i32, i32, i32
  }
  func.func @transform_3(%arg0: i32, %arg1: i32) -> (i32, i32) {
    %c0_i32 = arith.constant 0 : i32
    %c0_i32_0 = arith.constant 0 : i32
    %c0_i32_1 = arith.constant 0 : i32
    return %c0_i32, %c0_i32_0 : i32, i32
  }
  func.func @transform_4(%arg0: i32, %arg1: i32) -> (i32, i32) {
    %c0_i32 = arith.constant 0 : i32
    %c0_i32_0 = arith.constant 0 : i32
    %c0_i32_1 = arith.constant 0 : i32
    return %c0_i32, %c0_i32_0 : i32, i32
  }
  func.func @transform_5(%arg0: i32, %arg1: i32) -> (i32, i32) {
    %c0_i32 = arith.constant 0 : i32
    %c0_i32_0 = arith.constant 0 : i32
    %c0_i32_1 = arith.constant 0 : i32
    return %c0_i32, %c0_i32_0 : i32, i32
  }
  func.func @transform_6(%arg0: i32, %arg1: i32) -> (i32, i32) {
    %c0_i32 = arith.constant 0 : i32
    %c0_i32_0 = arith.constant 0 : i32
    %c0_i32_1 = arith.constant 0 : i32
    return %c0_i32, %c0_i32_0 : i32, i32
  }
  func.func @transform_7(%arg0: i32, %arg1: i32) -> (i32, i32) {
    %c0_i32 = arith.constant 0 : i32
    %c0_i32_0 = arith.constant 0 : i32
    %c0_i32_1 = arith.constant 0 : i32
    return %c0_i32, %c0_i32_0 : i32, i32
  }
  func.func @transform_8(%arg0: i32, %arg1: i32) -> (i32, i32) {
    %c0_i32 = arith.constant 0 : i32
    %c0_i32_0 = arith.constant 0 : i32
    %c0_i32_1 = arith.constant 0 : i32
    return %c0_i32, %c0_i32_0 : i32, i32
  }
  func.func @transform_9(%arg0: i32, %arg1: i32) -> (i32, i32) {
    %c0_i32 = arith.constant 0 : i32
    %c0_i32_0 = arith.constant 0 : i32
    %c0_i32_1 = arith.constant 0 : i32
    return %c0_i32, %c0_i32_0 : i32, i32
  }
  func.func @transform_10(%arg0: i32, %arg1: i32) -> (i32, i32) {
    %c0_i32 = arith.constant 0 : i32
    %c0_i32_0 = arith.constant 0 : i32
    %c0_i32_1 = arith.constant 0 : i32
    return %c0_i32, %c0_i32_0 : i32, i32
  }
  func.func @transform_11(%arg0: i32, %arg1: i32) -> (i32, i32) {
    %c0_i32 = arith.constant 0 : i32
    %c0_i32_0 = arith.constant 0 : i32
    %c0_i32_1 = arith.constant 0 : i32
    return %c0_i32, %c0_i32_0 : i32, i32
  }
  func.func @transform_12(%arg0: i32, %arg1: i32) -> (i32, i32) {
    %c0_i32 = arith.constant 0 : i32
    %c0_i32_0 = arith.constant 0 : i32
    %c0_i32_1 = arith.constant 0 : i32
    return %c0_i32, %c0_i32_0 : i32, i32
  }
  func.func @transform_13(%arg0: i32, %arg1: i32) -> (i32, i32, i32) {
    %c0_i32 = arith.constant 0 : i32
    %c0_i32_0 = arith.constant 0 : i32
    return %arg0, %arg1, %c0_i32 : i32, i32, i32
  }
}

module attributes {stable_mosaic.version = 11 : i64} {
  func.func @_fused_bert_attention_kernel(%arg0: i32, %arg1: i32, %arg2: memref<1x8x32xbf16, #tpu.memory_space<vmem>>, %arg3: memref<1x8x32xbf16, #tpu.memory_space<vmem>>, %arg4: memref<1x1x1x8xf32, #tpu.memory_space<vmem>>, %arg5: memref<32x32xbf16, #tpu.memory_space<vmem>>, %arg6: memref<1x32xf32, #tpu.memory_space<vmem>>, %arg7: memref<32x64xbf16, #tpu.memory_space<vmem>>, %arg8: memref<1x64xf32, #tpu.memory_space<vmem>>, %arg9: memref<32x64xbf16, #tpu.memory_space<vmem>>, %arg10: memref<1x64xf32, #tpu.memory_space<vmem>>, %arg11: memref<32x32xbf16, #tpu.memory_space<vmem>>, %arg12: memref<1x32xf32, #tpu.memory_space<vmem>>, %arg13: memref<1x32xf32, #tpu.memory_space<vmem>>, %arg14: memref<1x32xf32, #tpu.memory_space<vmem>>, %arg15: memref<1x8x32xf32, #tpu.memory_space<vmem>>, %arg16: memref<4x8x8xbf16, #tpu.memory_space<vmem>>, %arg17: memref<4x8x8xbf16, #tpu.memory_space<vmem>>) attributes {dimension_semantics = [#tpu.dimension_semantics<parallel>, #tpu.dimension_semantics<arbitrary>], iteration_bounds = array<i64: 2, 1>, scalar_prefetch = 0 : i64, scratch_operands = 2 : i64, tpu.core_type = #tpu.core_type<tc>, window_params = [{transform_indices = @transform_0, window_bounds = array<i64: 1, 8, 32>}, {transform_indices = @transform_1, window_bounds = array<i64: 1, 8, 32>}, {transform_indices = @transform_2, window_bounds = array<i64: 1, 1, 1, 8>}, {pipeline_mode = #tpu.pipeline_mode<synchronous>, transform_indices = @transform_3, window_bounds = array<i64: 32, 32>}, {pipeline_mode = #tpu.pipeline_mode<synchronous>, transform_indices = @transform_4, window_bounds = array<i64: 1, 32>}, {pipeline_mode = #tpu.pipeline_mode<synchronous>, transform_indices = @transform_5, window_bounds = array<i64: 32, 64>}, {pipeline_mode = #tpu.pipeline_mode<synchronous>, transform_indices = @transform_6, window_bounds = array<i64: 1, 64>}, {pipeline_mode = #tpu.pipeline_mode<synchronous>, transform_indices = @transform_7, window_bounds = array<i64: 32, 64>}, {pipeline_mode = #tpu.pipeline_mode<synchronous>, transform_indices = @transform_8, window_bounds = array<i64: 1, 64>}, {pipeline_mode = #tpu.pipeline_mode<synchronous>, transform_indices = @transform_9, window_bounds = array<i64: 32, 32>}, {pipeline_mode = #tpu.pipeline_mode<synchronous>, transform_indices = @transform_10, window_bounds = array<i64: 1, 32>}, {pipeline_mode = #tpu.pipeline_mode<synchronous>, transform_indices = @transform_11, window_bounds = array<i64: 1, 32>}, {pipeline_mode = #tpu.pipeline_mode<synchronous>, transform_indices = @transform_12, window_bounds = array<i64: 1, 32>}, {transform_indices = @transform_13, window_bounds = array<i64: 1, 8, 32>}]} {
    %c0_i32 = arith.constant 0 : i32
    %0 = arith.cmpi eq, %arg1, %c0_i32 : i32
    %1 = arith.extui %0 : i1 to i32
    %c0_i32_0 = arith.constant 0 : i32
    %2 = arith.cmpi ne, %1, %c0_i32_0 : i32
    scf.if %2 {
      %c0_37 = arith.constant 0 : index
      %c0_38 = arith.constant 0 : index
      %c0_39 = arith.constant 0 : index
      %73 = vector.load %arg2[%c0_37, %c0_38, %c0_39] : memref<1x8x32xbf16, #tpu.memory_space<vmem>>, vector<1x8x32xbf16>
      %74 = vector.shape_cast %73 : vector<1x8x32xbf16> to vector<8x32xbf16>
      %c0_40 = arith.constant 0 : index
      %c0_41 = arith.constant 0 : index
      %c0_42 = arith.constant 0 : index
      %75 = vector.load %arg3[%c0_40, %c0_41, %c0_42] : memref<1x8x32xbf16, #tpu.memory_space<vmem>>, vector<1x8x32xbf16>
      %76 = vector.shape_cast %75 : vector<1x8x32xbf16> to vector<8x32xbf16>
      %c0_43 = arith.constant 0 : index
      %c0_44 = arith.constant 0 : index
      %77 = vector.load %arg7[%c0_43, %c0_44] : memref<32x64xbf16, #tpu.memory_space<vmem>>, vector<32x64xbf16>
      %cst_45 = arith.constant dense<0.000000e+00> : vector<8x64xf32>
      %78 = tpu.matmul %74, %77, %cst_45 {dimension_numbers = #tpu.dot_dimension_numbers<[1], [0], [0], [1], [0, 0, 1, 1], [], []>} : vector<8x32xbf16>, vector<32x64xbf16>, vector<8x64xf32> -> vector<8x64xf32>
      %c0_46 = arith.constant 0 : index
      %c0_47 = arith.constant 0 : index
      %79 = vector.load %arg8[%c0_46, %c0_47] : memref<1x64xf32, #tpu.memory_space<vmem>>, vector<1x64xf32>
      %80 = vector.broadcast %79 : vector<1x64xf32> to vector<8x64xf32>
      %81 = arith.addf %78, %80 : vector<8x64xf32>
      %c0_48 = arith.constant 0 : index
      %c0_49 = arith.constant 0 : index
      %82 = vector.load %arg9[%c0_48, %c0_49] : memref<32x64xbf16, #tpu.memory_space<vmem>>, vector<32x64xbf16>
      %cst_50 = arith.constant dense<0.000000e+00> : vector<8x64xf32>
      %83 = tpu.matmul %76, %82, %cst_50 {dimension_numbers = #tpu.dot_dimension_numbers<[1], [0], [0], [1], [0, 0, 1, 1], [], []>} : vector<8x32xbf16>, vector<32x64xbf16>, vector<8x64xf32> -> vector<8x64xf32>
      %84 = arith.addf %81, %83 : vector<8x64xf32>
      %c0_51 = arith.constant 0 : index
      %c0_52 = arith.constant 0 : index
      %85 = vector.load %arg10[%c0_51, %c0_52] : memref<1x64xf32, #tpu.memory_space<vmem>>, vector<1x64xf32>
      %86 = vector.broadcast %85 : vector<1x64xf32> to vector<8x64xf32>
      %87 = arith.addf %84, %86 : vector<8x64xf32>
      %88 = vector.extract_strided_slice %87 {offsets = [0, 0], sizes = [8, 32], strides = [1, 1]} : vector<8x64xf32> to vector<8x32xf32>
      %89 = vector.shape_cast %88 : vector<8x32xf32> to vector<8x4x8xf32>
      %90 = vector.extract_strided_slice %87 {offsets = [0, 32], sizes = [8, 32], strides = [1, 1]} : vector<8x64xf32> to vector<8x32xf32>
      %91 = vector.shape_cast %90 : vector<8x32xf32> to vector<8x4x8xf32>
      %92 = tpu.transpose %89, [1, 0, 2] : vector<8x4x8xf32> -> vector<4x8x8xf32>
      %93 = arith.truncf %92 : vector<4x8x8xf32> to vector<4x8x8xbf16>
      %c0_53 = arith.constant 0 : index
      %c0_54 = arith.constant 0 : index
      %c0_55 = arith.constant 0 : index
      %94 = vector.load %arg16[%c0_53, %c0_54, %c0_55] : memref<4x8x8xbf16, #tpu.memory_space<vmem>>, vector<4x8x8xbf16>
      tpu.vector_store %arg16[%c0_53, %c0_54, %c0_55], %93 {strides = array<i32>} : memref<4x8x8xbf16, #tpu.memory_space<vmem>>, vector<4x8x8xbf16>,
      %95 = tpu.transpose %91, [1, 0, 2] : vector<8x4x8xf32> -> vector<4x8x8xf32>
      %96 = arith.truncf %95 : vector<4x8x8xf32> to vector<4x8x8xbf16>
      %c0_56 = arith.constant 0 : index
      %c0_57 = arith.constant 0 : index
      %c0_58 = arith.constant 0 : index
      %97 = vector.load %arg17[%c0_56, %c0_57, %c0_58] : memref<4x8x8xbf16, #tpu.memory_space<vmem>>, vector<4x8x8xbf16>
      tpu.vector_store %arg17[%c0_56, %c0_57, %c0_58], %96 {strides = array<i32>} : memref<4x8x8xbf16, #tpu.memory_space<vmem>>, vector<4x8x8xbf16>,
    } else {
    }
    %c8_i32 = arith.constant 8 : i32
    %3 = arith.muli %arg1, %c8_i32 : i32
    %4 = tpu.assume_multiple %3, 8 : i32
    %c0 = arith.constant 0 : index
    %5 = arith.index_cast %4 : i32 to index
    %c0_1 = arith.constant 0 : index
    %6 = vector.load %arg2[%c0, %5, %c0_1] : memref<1x8x32xbf16, #tpu.memory_space<vmem>>, vector<1x8x32xbf16>
    %7 = vector.shape_cast %6 : vector<1x8x32xbf16> to vector<8x32xbf16>
    %c0_2 = arith.constant 0 : index
    %c0_3 = arith.constant 0 : index
    %8 = vector.load %arg5[%c0_2, %c0_3] : memref<32x32xbf16, #tpu.memory_space<vmem>>, vector<32x32xbf16>
    %cst = arith.constant dense<0.000000e+00> : vector<8x32xf32>
    %9 = tpu.matmul %7, %8, %cst {dimension_numbers = #tpu.dot_dimension_numbers<[1], [0], [0], [1], [0, 0, 1, 1], [], []>} : vector<8x32xbf16>, vector<32x32xbf16>, vector<8x32xf32> -> vector<8x32xf32>
    %c0_4 = arith.constant 0 : index
    %c0_5 = arith.constant 0 : index
    %10 = vector.load %arg6[%c0_4, %c0_5] : memref<1x32xf32, #tpu.memory_space<vmem>>, vector<1x32xf32>
    %11 = vector.broadcast %10 : vector<1x32xf32> to vector<8x32xf32>
    %12 = arith.addf %9, %11 : vector<8x32xf32>
    %13 = vector.shape_cast %12 : vector<8x32xf32> to vector<8x4x8xf32>
    %14 = tpu.transpose %13, [1, 0, 2] : vector<8x4x8xf32> -> vector<4x8x8xf32>
    %15 = arith.truncf %14 : vector<4x8x8xf32> to vector<4x8x8xbf16>
    %c0_6 = arith.constant 0 : index
    %c0_7 = arith.constant 0 : index
    %c0_8 = arith.constant 0 : index
    %c0_9 = arith.constant 0 : index
    %16 = vector.load %arg4[%c0_6, %c0_7, %c0_8, %c0_9] : memref<1x1x1x8xf32, #tpu.memory_space<vmem>>, vector<1x1x1x8xf32>
    %17 = vector.shape_cast %16 : vector<1x1x1x8xf32> to vector<8xf32>
    %c0_10 = arith.constant 0 : index
    %c0_11 = arith.constant 0 : index
    %c0_12 = arith.constant 0 : index
    %18 = vector.load %arg16[%c0_10, %c0_11, %c0_12] : memref<4x8x8xbf16, #tpu.memory_space<vmem>>, vector<4x8x8xbf16>
    "tpu.trace_start"() <{level = 10 : i32, message = "hqd,hkd->hqk"}> : () -> ()
    %cst_13 = arith.constant dense<0.000000e+00> : vector<4x8x8xf32>
    %19 = tpu.matmul %15, %18, %cst_13 {dimension_numbers = #tpu.dot_dimension_numbers<[2], [2], [1], [1], [0, 0, 0, 1, 1, 1], [0], [0]>} : vector<4x8x8xbf16>, vector<4x8x8xbf16>, vector<4x8x8xf32> -> vector<4x8x8xf32>
    "tpu.trace_stop"() : () -> ()
    %20 = vector.shape_cast %17 : vector<8xf32> to vector<1x1x8xf32>
    %21 = vector.broadcast %20 : vector<1x1x8xf32> to vector<4x8x8xf32>
    %22 = arith.addf %19, %21 : vector<4x8x8xf32>
    %cst_14 = arith.constant dense<0xFF800000> : vector<4x8xf32>
    %23 = vector.multi_reduction <maximumf>, %22, %cst_14 [2] : vector<4x8x8xf32> to vector<4x8xf32>
    %24 = vector.shape_cast %23 : vector<4x8xf32> to vector<4x8x1xf32>
    %25 = vector.broadcast %24 : vector<4x8x1xf32> to vector<4x8x8xf32>
    %26 = arith.subf %22, %25 : vector<4x8x8xf32>
    %27 = math.exp %26 : vector<4x8x8xf32>
    %cst_15 = arith.constant dense<0.000000e+00> : vector<4x8xf32>
    %28 = vector.multi_reduction <add>, %27, %cst_15 [2] : vector<4x8x8xf32> to vector<4x8xf32>
    %29 = vector.shape_cast %28 : vector<4x8xf32> to vector<4x8x1xf32>
    %30 = tpu.reciprocal %29 {approx = true} : vector<4x8x1xf32> -> vector<4x8x1xf32>
    %31 = vector.broadcast %30 : vector<4x8x1xf32> to vector<4x8x8xf32>
    %32 = arith.mulf %27, %31 : vector<4x8x8xf32>
    %33 = arith.truncf %32 : vector<4x8x8xf32> to vector<4x8x8xbf16>
    %c0_16 = arith.constant 0 : index
    %c0_17 = arith.constant 0 : index
    %c0_18 = arith.constant 0 : index
    %34 = vector.load %arg17[%c0_16, %c0_17, %c0_18] : memref<4x8x8xbf16, #tpu.memory_space<vmem>>, vector<4x8x8xbf16>
    "tpu.trace_start"() <{level = 10 : i32, message = "hqk,hkd->hqd"}> : () -> ()
    %cst_19 = arith.constant dense<0.000000e+00> : vector<4x8x8xf32>
    %35 = tpu.matmul %33, %34, %cst_19 {dimension_numbers = #tpu.dot_dimension_numbers<[2], [1], [1], [2], [0, 0, 0, 1, 1, 2], [0], [0]>} : vector<4x8x8xbf16>, vector<4x8x8xbf16>, vector<4x8x8xf32> -> vector<4x8x8xf32>
    "tpu.trace_stop"() : () -> ()
    %36 = tpu.transpose %35, [1, 0, 2] : vector<4x8x8xf32> -> vector<8x4x8xf32>
    %37 = vector.shape_cast %36 : vector<8x4x8xf32> to vector<8x32xf32>
    %38 = arith.truncf %37 : vector<8x32xf32> to vector<8x32xbf16>
    %c0_20 = arith.constant 0 : index
    %c0_21 = arith.constant 0 : index
    %39 = vector.load %arg11[%c0_20, %c0_21] : memref<32x32xbf16, #tpu.memory_space<vmem>>, vector<32x32xbf16>
    %cst_22 = arith.constant dense<0.000000e+00> : vector<8x32xf32>
    %40 = tpu.matmul %38, %39, %cst_22 {dimension_numbers = #tpu.dot_dimension_numbers<[1], [0], [0], [1], [0, 0, 1, 1], [], []>} : vector<8x32xbf16>, vector<32x32xbf16>, vector<8x32xf32> -> vector<8x32xf32>
    %c0_23 = arith.constant 0 : index
    %c0_24 = arith.constant 0 : index
    %41 = vector.load %arg12[%c0_23, %c0_24] : memref<1x32xf32, #tpu.memory_space<vmem>>, vector<1x32xf32>
    %42 = vector.broadcast %41 : vector<1x32xf32> to vector<8x32xf32>
    %43 = arith.addf %40, %42 : vector<8x32xf32>
    %44 = arith.extf %7 : vector<8x32xbf16> to vector<8x32xf32>
    %45 = arith.addf %43, %44 : vector<8x32xf32>
    %cst_25 = arith.constant dense<0.000000e+00> : vector<8xf32>
    %46 = vector.multi_reduction <add>, %45, %cst_25 [1] : vector<8x32xf32> to vector<8xf32>
    %47 = vector.shape_cast %46 : vector<8xf32> to vector<8x1xf32>
    %cst_26 = arith.constant 3.200000e+01 : f32
    %48 = vector.broadcast %cst_26 : f32 to vector<8x1xf32>
    %49 = arith.divf %47, %48 : vector<8x1xf32>
    %50 = vector.broadcast %49 : vector<8x1xf32> to vector<8x32xf32>
    %51 = arith.subf %45, %50 : vector<8x32xf32>
    %52 = arith.mulf %51, %51 : vector<8x32xf32>
    %cst_27 = arith.constant dense<0.000000e+00> : vector<8xf32>
    %53 = vector.multi_reduction <add>, %52, %cst_27 [1] : vector<8x32xf32> to vector<8xf32>
    %54 = vector.shape_cast %53 : vector<8xf32> to vector<8x1xf32>
    %cst_28 = arith.constant 3.200000e+01 : f32
    %55 = vector.broadcast %cst_28 : f32 to vector<8x1xf32>
    %56 = arith.divf %54, %55 : vector<8x1xf32>
    %57 = vector.broadcast %49 : vector<8x1xf32> to vector<8x32xf32>
    %58 = arith.subf %45, %57 : vector<8x32xf32>
    %cst_29 = arith.constant 9.99999996E-13 : f32
    %59 = vector.broadcast %cst_29 : f32 to vector<8x1xf32>
    %60 = arith.addf %56, %59 : vector<8x1xf32>
    %61 = math.rsqrt %60 : vector<8x1xf32>
    %62 = vector.broadcast %61 : vector<8x1xf32> to vector<8x32xf32>
    %63 = arith.mulf %58, %62 : vector<8x32xf32>
    %c0_30 = arith.constant 0 : index
    %c0_31 = arith.constant 0 : index
    %64 = vector.load %arg13[%c0_30, %c0_31] : memref<1x32xf32, #tpu.memory_space<vmem>>, vector<1x32xf32>
    %65 = vector.broadcast %64 : vector<1x32xf32> to vector<8x32xf32>
    %66 = arith.mulf %63, %65 : vector<8x32xf32>
    %c0_32 = arith.constant 0 : index
    %c0_33 = arith.constant 0 : index
    %67 = vector.load %arg14[%c0_32, %c0_33] : memref<1x32xf32, #tpu.memory_space<vmem>>, vector<1x32xf32>
    %68 = vector.broadcast %67 : vector<1x32xf32> to vector<8x32xf32>
    %69 = arith.addf %66, %68 : vector<8x32xf32>
    %c0_34 = arith.constant 0 : index
    %c0_35 = arith.constant 0 : index
    %c0_36 = arith.constant 0 : index
    %70 = vector.load %arg15[%c0_34, %c0_35, %c0_36] : memref<1x8x32xf32, #tpu.memory_space<vmem>>, vector<1x8x32xf32>
    %71 = vector.shape_cast %70 : vector<1x8x32xf32> to vector<8x32xf32>
    %72 = vector.shape_cast %69 : vector<8x32xf32> to vector<1x8x32xf32>
    tpu.vector_store %arg15[%c0_34, %c0_35, %c0_36], %72 {strides = array<i32>} : memref<1x8x32xf32, #tpu.memory_space<vmem>>, vector<1x8x32xf32>,
    return
  }
  func.func @transform_0(%arg0: i32, %arg1: i32) -> (i32, i32, i32) {
    %c0_i32 = arith.constant 0 : i32
    %c0_i32_0 = arith.constant 0 : i32
    %c0_i32_1 = arith.constant 0 : i32
    return %arg0, %c0_i32, %c0_i32_0 : i32, i32, i32
  }
  func.func @transform_1(%arg0: i32, %arg1: i32) -> (i32, i32, i32) {
    %c0_i32 = arith.constant 0 : i32
    %c0_i32_0 = arith.constant 0 : i32
    %c0_i32_1 = arith.constant 0 : i32
    return %arg0, %c0_i32, %c0_i32_0 : i32, i32, i32
  }
  func.func @transform_2(%arg0: i32, %arg1: i32) -> (i32, i32, i32, i32) {
    %c0_i32 = arith.constant 0 : i32
    %c0_i32_0 = arith.constant 0 : i32
    %c0_i32_1 = arith.constant 0 : i32
    %c0_i32_2 = arith.constant 0 : i32
    return %arg0, %c0_i32, %c0_i32_0, %c0_i32_1 : i32, i32, i32, i32
  }
  func.func @transform_3(%arg0: i32, %arg1: i32) -> (i32, i32) {
    %c0_i32 = arith.constant 0 : i32
    %c0_i32_0 = arith.constant 0 : i32
    %c0_i32_1 = arith.constant 0 : i32
    return %c0_i32, %c0_i32_0 : i32, i32
  }
  func.func @transform_4(%arg0: i32, %arg1: i32) -> (i32, i32) {
    %c0_i32 = arith.constant 0 : i32
    %c0_i32_0 = arith.constant 0 : i32
    %c0_i32_1 = arith.constant 0 : i32
    return %c0_i32, %c0_i32_0 : i32, i32
  }
  func.func @transform_5(%arg0: i32, %arg1: i32) -> (i32, i32) {
    %c0_i32 = arith.constant 0 : i32
    %c0_i32_0 = arith.constant 0 : i32
    %c0_i32_1 = arith.constant 0 : i32
    return %c0_i32, %c0_i32_0 : i32, i32
  }
  func.func @transform_6(%arg0: i32, %arg1: i32) -> (i32, i32) {
    %c0_i32 = arith.constant 0 : i32
    %c0_i32_0 = arith.constant 0 : i32
    %c0_i32_1 = arith.constant 0 : i32
    return %c0_i32, %c0_i32_0 : i32, i32
  }
  func.func @transform_7(%arg0: i32, %arg1: i32) -> (i32, i32) {
    %c0_i32 = arith.constant 0 : i32
    %c0_i32_0 = arith.constant 0 : i32
    %c0_i32_1 = arith.constant 0 : i32
    return %c0_i32, %c0_i32_0 : i32, i32
  }
  func.func @transform_8(%arg0: i32, %arg1: i32) -> (i32, i32) {
    %c0_i32 = arith.constant 0 : i32
    %c0_i32_0 = arith.constant 0 : i32
    %c0_i32_1 = arith.constant 0 : i32
    return %c0_i32, %c0_i32_0 : i32, i32
  }
  func.func @transform_9(%arg0: i32, %arg1: i32) -> (i32, i32) {
    %c0_i32 = arith.constant 0 : i32
    %c0_i32_0 = arith.constant 0 : i32
    %c0_i32_1 = arith.constant 0 : i32
    return %c0_i32, %c0_i32_0 : i32, i32
  }
  func.func @transform_10(%arg0: i32, %arg1: i32) -> (i32, i32) {
    %c0_i32 = arith.constant 0 : i32
    %c0_i32_0 = arith.constant 0 : i32
    %c0_i32_1 = arith.constant 0 : i32
    return %c0_i32, %c0_i32_0 : i32, i32
  }
  func.func @transform_11(%arg0: i32, %arg1: i32) -> (i32, i32) {
    %c0_i32 = arith.constant 0 : i32
    %c0_i32_0 = arith.constant 0 : i32
    %c0_i32_1 = arith.constant 0 : i32
    return %c0_i32, %c0_i32_0 : i32, i32
  }
  func.func @transform_12(%arg0: i32, %arg1: i32) -> (i32, i32) {
    %c0_i32 = arith.constant 0 : i32
    %c0_i32_0 = arith.constant 0 : i32
    %c0_i32_1 = arith.constant 0 : i32
    return %c0_i32, %c0_i32_0 : i32, i32
  }
  func.func @transform_13(%arg0: i32, %arg1: i32) -> (i32, i32, i32) {
    %c0_i32 = arith.constant 0 : i32
    %c0_i32_0 = arith.constant 0 : i32
    return %arg0, %arg1, %c0_i32 : i32, i32, i32
  }
}

</mosaic_0001>

<llo_original>
// kernel: tpu_custom_call.1
$region0: #{tpu_custom_call.1}
  #allocation0 [shape = 'u32[]', space=smem, size = 0x4, offset = 0x4, fixed_abs, tag = 'smem constant byte address 0x4 - core index']
  #allocation1 [shape = 'u32[144,128]{1,0:T(1,128)}', space=vmem, size = 0x12000, scoped, tag = 'internal scratch']
  #allocation2 [shape = 'bf16[4,8,8]{2,1,0:T(8,128)(2,1)}', space=vmem, size = 0x2000, scoped, tag = 'scratch operand']
  #allocation3 [shape = 'bf16[4,8,8]{2,1,0:T(8,128)(2,1)}', space=vmem, size = 0x2000, scoped, tag = 'scratch operand']
  %s0 = inlined_call_operand.hbm [shape: bf16[2,8,32], index: 0, kind: input, shape index: {}]
  %s1 = inlined_call_operand.hbm [shape: bf16[2,8,32], index: 1, kind: input, shape index: {}]
  %s2 = inlined_call_operand.vmem [shape: f32[2,1,1,8], index: 2, kind: input, shape index: {}]
  %s3 = inlined_call_operand.hbm [shape: bf16[32,32], index: 3, kind: input, shape index: {}]
  %s4 = inlined_call_operand.hbm [shape: f32[1,32], index: 4, kind: input, shape index: {}]
  %s5 = inlined_call_operand.vmem [shape: bf16[32,64], index: 5, kind: input, shape index: {}]
  %s6 = inlined_call_operand.hbm [shape: f32[1,64], index: 6, kind: input, shape index: {}]
  %s7 = inlined_call_operand.hbm [shape: bf16[32,64], index: 7, kind: input, shape index: {}]
  %s8 = inlined_call_operand.hbm [shape: f32[1,64], index: 8, kind: input, shape index: {}]
  %s9 = inlined_call_operand.vmem [shape: bf16[32,32], index: 9, kind: input, shape index: {}]
  %s10 = inlined_call_operand.vmem [shape: f32[1,32], index: 10, kind: input, shape index: {}]
  %s11 = inlined_call_operand.vmem [shape: f32[1,32], index: 11, kind: input, shape index: {}]
  %s12 = inlined_call_operand.vmem [shape: f32[1,32], index: 12, kind: input, shape index: {}]
  %s13 = inlined_call_operand.hbm [shape: f32[2,8,32], index: 13, kind: output, shape index: {}]
  %s14 = sld [smem:[#allocation0]]
  $region117: #{tpu_custom_call.1} parent=0
    _
  %s16 = ssub.s32 1, %s14
  %s17 = scalar_select 0, %s16, %s14
  $region1: #{tpu_custom_call.1} parent=0
    #allocation4 [shape = 'u8[4096]{0}', space=vmem, size = 0x1000, scoped, tag = 'input window, operand 0']
    #allocation5 [shape = 's32[2]{0}', space=sflag, size = 0x8, scoped, tag = 'scoped memory for tpu_custom_call.1']
    #allocation6 [shape = 's32[2]{0}', space=sflag, size = 0x8, scoped, tag = 'scoped memory for tpu_custom_call.1']
    #allocation7 [shape = 'u8[4096]{0}', space=vmem, size = 0x1000, scoped, tag = 'input window, operand 1']
    #allocation8 [shape = 's32[2]{0}', space=sflag, size = 0x8, scoped, tag = 'scoped memory for tpu_custom_call.1']
    #allocation9 [shape = 'u8[8192]{0}', space=vmem, size = 0x2000, scoped, tag = 'input window, operand 3, single buffered']
    #allocation10 [shape = 'u8[512]{0}', space=vmem, size = 0x400, scoped, tag = 'input window, operand 4, single buffered']
    #allocation11 [shape = 's32[1]{0}', space=sflag, size = 0x4, scoped, tag = 'scoped memory for tpu_custom_call.1']
    #allocation12 [shape = 'u8[512]{0}', space=vmem, size = 0x400, scoped, tag = 'input window, operand 6, single buffered']
    #allocation13 [shape = 'u8[8192]{0}', space=vmem, size = 0x2000, scoped, tag = 'input window, operand 7, single buffered']
    #allocation14 [shape = 's32[1]{0}', space=sflag, size = 0x4, scoped, tag = 'scoped memory for tpu_custom_call.1']
    #allocation15 [shape = 'u8[512]{0}', space=vmem, size = 0x400, scoped, tag = 'input window, operand 8, single buffered']
    #allocation16 [shape = 'u8[8192]{0}', space=vmem, size = 0x2000, scoped, tag = 'output window, operand 0']
    %18 = vsyncpa [#allocation5], 0
    %s19 = scalar_lea.sflag [#allocation5], 1
    %20 = vsyncpa %s19, 0
    %21 = vsyncpa [#allocation8], 0
    %s22 = scalar_lea.sflag [#allocation8], 1
    %23 = vsyncpa %s22, 0
    %24 = vsyncpa [#allocation11], 0
    %25 = vsyncpa [#allocation14], 0
    %26 = vsyncpa [#allocation6], 0
    %s27 = scalar_lea.sflag [#allocation6], 1
    %28 = vsyncpa %s27, 0
    loop: start=0, step=1, limit=4
    $region2: #{tpu_custom_call.1} parent=1 // loop_pre_header
      _
    $region3: #{tpu_custom_call.1} parent=1 // loop_header
      %s30 = sphi 0, %s34
      %p31 = scmp.ge.s32.totalorder %s30, 4
      %s37 = sphi 0, %s49
      %s38 = sphi 0, %s45
      %s39 = sphi 0, %s37
      %s40 = sphi 0, %s38
      %s41 = sphi 0, %s39
      %s42 = sphi 0, %s40
      %s52 = sphi 0, %s54
      %s55 = sphi 0, %s52
      %s56 = sphi 0, %s55
      %s72 = sphi 0, %s56
      %s78 = sphi 0, %s80
      %s81 = sphi 0, %s78
      %s82 = sphi 0, %s81
      %s98 = sphi 0, %s82
      %s104 = sphi 0, %s106
      %s107 = sphi 0, %s104
      %s108 = sphi 0, %s107
      %s124 = sphi 0, %s108
      %s128 = sphi 0, %s128
      %s130 = sphi 0, %s128
      %s131 = sphi 0, %s130
      %s145 = sphi 0, %s131
      %s149 = sphi 0, %s149
      %s151 = sphi 0, %s149
      %s152 = sphi 0, %s151
      %s166 = sphi 0, %s152
      %s170 = sphi 0, %s170
      %s172 = sphi 0, %s170
      %s173 = sphi 0, %s172
      %s187 = sphi 0, %s173
      %s191 = sphi 0, %s191
      %s193 = sphi 0, %s191
      %s194 = sphi 0, %s193
      %s208 = sphi 0, %s194
      %s212 = sphi 0, %s212
      %s214 = sphi 0, %s212
      %s215 = sphi 0, %s214
      %s229 = sphi 0, %s215
      %s233 = sphi 0, %s233
      %s235 = sphi 0, %s233
      %s236 = sphi 0, %s235
      %s250 = sphi 0, %s236
      %s254 = sphi 0, %s254
      %s256 = sphi 0, %s254
      %s257 = sphi 0, %s256
      %s271 = sphi 0, %s257
      %s275 = sphi 0, %s275
      %s277 = sphi 0, %s275
      %s278 = sphi 0, %s277
      %s292 = sphi 0, %s278
      %s296 = sphi 0, %s296
      %s298 = sphi 0, %s296
      %s299 = sphi 0, %s298
      %s313 = sphi 0, %s299
      %s317 = sphi 0, %s317
      %s319 = sphi 0, %s317
      %s320 = sphi 0, %s319
      %s334 = sphi 0, %s320
      %s342 = sphi 0, %s344
      %s345 = sphi 0, %s342
      %s346 = sphi 0, %s345
      %s362 = sphi 0, %s346
    $region4: #{tpu_custom_call.1} parent=1 // loop_header_branch
      %33 = sbr.rel (%p31) target = $region8
    $region5: #{tpu_custom_call.1} parent=1 // loop_body
      %s35 = ssub.s32 %s30, 1
      %s36 = ssub.s32 %s30, 2
      %s43 = sadd.s32 1, %s38
      %p44 = scmp.ge.s32.totalorder %s43, 1
      %s45 = scalar_select %p44, 0, %s43
      %s46 = sadd.s32 1, %s37
      %s47 = scalar_select %p44, %s46, %s37
      %p48 = scmp.ge.s32.totalorder %s47, 2
      %s49 = scalar_select %p48, 0, %s47
      %s50 = ssub.s32 %s37, %s49
      %p51 = scmp.eq.s32.totalorder %s50, 0
      %s53 = sadd.s32 %s52, 1
      %s54 = scalar_select %p51, %s52, %s53
      %p57 = pneg %p51
      %p58 = scmp.eq.s32.totalorder %s30, 1
      %p59 = por %p57, %p58
      %p60 = scmp.ne.s32.totalorder %s52, %s55
      %p61 = scmp.eq.s32.totalorder %s30, 0
      %p62 = por %p60, %p61
      %p63 = scmp.ne.s32.totalorder %s52, %s55
      %p64 = scmp.eq.s32.totalorder %s35, 1
      %p65 = por %p63, %p64
      %p66 = scmp.ne.s32.totalorder %s55, %s56
      %p67 = scmp.eq.s32.totalorder %s35, 0
      %p68 = por %p66, %p67
      %p69 = scmp.ne.s32.totalorder %s55, %s56
      %p70 = scmp.eq.s32.totalorder %s36, 1
      %p71 = por %p69, %p70
      %p73 = scmp.ne.s32.totalorder %s56, %s72
      %p74 = scmp.eq.s32.totalorder %s36, 0
      %p75 = por %p73, %p74
      %s76 = ssub.s32 %s37, %s49
      %p77 = scmp.eq.s32.totalorder %s76, 0
      %s79 = sadd.s32 %s78, 1
      %s80 = scalar_select %p77, %s78, %s79
      %p83 = pneg %p77
      %p84 = scmp.eq.s32.totalorder %s30, 1
      %p85 = por %p83, %p84
      %p86 = scmp.ne.s32.totalorder %s78, %s81
      %p87 = scmp.eq.s32.totalorder %s30, 0
      %p88 = por %p86, %p87
      %p89 = scmp.ne.s32.totalorder %s78, %s81
      %p90 = scmp.eq.s32.totalorder %s35, 1
      %p91 = por %p89, %p90
      %p92 = scmp.ne.s32.totalorder %s81, %s82
      %p93 = scmp.eq.s32.totalorder %s35, 0
      %p94 = por %p92, %p93
      %p95 = scmp.ne.s32.totalorder %s81, %s82
      %p96 = scmp.eq.s32.totalorder %s36, 1
      %p97 = por %p95, %p96
      %p99 = scmp.ne.s32.totalorder %s82, %s98
      %p100 = scmp.eq.s32.totalorder %s36, 0
      %p101 = por %p99, %p100
      %s102 = ssub.s32 %s37, %s49
      %p103 = scmp.eq.s32.totalorder %s102, 0
      %s105 = sadd.s32 %s104, 1
      %s106 = scalar_select %p103, %s104, %s105
      %p109 = pneg %p103
      %p110 = scmp.eq.s32.totalorder %s30, 1
      %p111 = por %p109, %p110
      %p112 = scmp.ne.s32.totalorder %s104, %s107
      %p113 = scmp.eq.s32.totalorder %s30, 0
      %p114 = por %p112, %p113
      %p115 = scmp.ne.s32.totalorder %s104, %s107
      %p116 = scmp.eq.s32.totalorder %s35, 1
      %p117 = por %p115, %p116
      %p118 = scmp.ne.s32.totalorder %s107, %s108
      %p119 = scmp.eq.s32.totalorder %s35, 0
      %p120 = por %p118, %p119
      %p121 = scmp.ne.s32.totalorder %s107, %s108
      %p122 = scmp.eq.s32.totalorder %s36, 1
      %p123 = por %p121, %p122
      %p125 = scmp.ne.s32.totalorder %s108, %s124
      %p126 = scmp.eq.s32.totalorder %s36, 0
      %p127 = por %p125, %p126
      %s129 = sadd.s32 %s128, 1
      %p132 = scmp.eq.s32.totalorder %s30, 1
      %p133 = scmp.ne.s32.totalorder %s128, %s130
      %p134 = scmp.eq.s32.totalorder %s30, 0
      %p135 = por %p133, %p134
      %p136 = scmp.ne.s32.totalorder %s128, %s130
      %p137 = scmp.eq.s32.totalorder %s35, 1
      %p138 = por %p136, %p137
      %p139 = scmp.ne.s32.totalorder %s130, %s131
      %p140 = scmp.eq.s32.totalorder %s35, 0
      %p141 = por %p139, %p140
      %p142 = scmp.ne.s32.totalorder %s130, %s131
      %p143 = scmp.eq.s32.totalorder %s36, 1
      %p144 = por %p142, %p143
      %p146 = scmp.ne.s32.totalorder %s131, %s145
      %p147 = scmp.eq.s32.totalorder %s36, 0
      %p148 = por %p146, %p147
      %s150 = sadd.s32 %s149, 1
      %p153 = scmp.eq.s32.totalorder %s30, 1
      %p154 = scmp.ne.s32.totalorder %s149, %s151
      %p155 = scmp.eq.s32.totalorder %s30, 0
      %p156 = por %p154, %p155
      %p157 = scmp.ne.s32.totalorder %s149, %s151
      %p158 = scmp.eq.s32.totalorder %s35, 1
      %p159 = por %p157, %p158
      %p160 = scmp.ne.s32.totalorder %s151, %s152
      %p161 = scmp.eq.s32.totalorder %s35, 0
      %p162 = por %p160, %p161
      %p163 = scmp.ne.s32.totalorder %s151, %s152
      %p164 = scmp.eq.s32.totalorder %s36, 1
      %p165 = por %p163, %p164
      %p167 = scmp.ne.s32.totalorder %s152, %s166
      %p168 = scmp.eq.s32.totalorder %s36, 0
      %p169 = por %p167, %p168
      %s171 = sadd.s32 %s170, 1
      %p174 = scmp.eq.s32.totalorder %s30, 1
      %p175 = scmp.ne.s32.totalorder %s170, %s172
      %p176 = scmp.eq.s32.totalorder %s30, 0
      %p177 = por %p175, %p176
      %p178 = scmp.ne.s32.totalorder %s170, %s172
      %p179 = scmp.eq.s32.totalorder %s35, 1
      %p180 = por %p178, %p179
      %p181 = scmp.ne.s32.totalorder %s172, %s173
      %p182 = scmp.eq.s32.totalorder %s35, 0
      %p183 = por %p181, %p182
      %p184 = scmp.ne.s32.totalorder %s172, %s173
      %p185 = scmp.eq.s32.totalorder %s36, 1
      %p186 = por %p184, %p185
      %p188 = scmp.ne.s32.totalorder %s173, %s187
      %p189 = scmp.eq.s32.totalorder %s36, 0
      %p190 = por %p188, %p189
      %s192 = sadd.s32 %s191, 1
      %p195 = scmp.eq.s32.totalorder %s30, 1
      %p196 = scmp.ne.s32.totalorder %s191, %s193
      %p197 = scmp.eq.s32.totalorder %s30, 0
      %p198 = por %p196, %p197
      %p199 = scmp.ne.s32.totalorder %s191, %s193
      %p200 = scmp.eq.s32.totalorder %s35, 1
      %p201 = por %p199, %p200
      %p202 = scmp.ne.s32.totalorder %s193, %s194
      %p203 = scmp.eq.s32.totalorder %s35, 0
      %p204 = por %p202, %p203
      %p205 = scmp.ne.s32.totalorder %s193, %s194
      %p206 = scmp.eq.s32.totalorder %s36, 1
      %p207 = por %p205, %p206
      %p209 = scmp.ne.s32.totalorder %s194, %s208
      %p210 = scmp.eq.s32.totalorder %s36, 0
      %p211 = por %p209, %p210
      %s213 = sadd.s32 %s212, 1
      %p216 = scmp.eq.s32.totalorder %s30, 1
      %p217 = scmp.ne.s32.totalorder %s212, %s214
      %p218 = scmp.eq.s32.totalorder %s30, 0
      %p219 = por %p217, %p218
      %p220 = scmp.ne.s32.totalorder %s212, %s214
      %p221 = scmp.eq.s32.totalorder %s35, 1
      %p222 = por %p220, %p221
      %p223 = scmp.ne.s32.totalorder %s214, %s215
      %p224 = scmp.eq.s32.totalorder %s35, 0
      %p225 = por %p223, %p224
      %p226 = scmp.ne.s32.totalorder %s214, %s215
      %p227 = scmp.eq.s32.totalorder %s36, 1
      %p228 = por %p226, %p227
      %p230 = scmp.ne.s32.totalorder %s215, %s229
      %p231 = scmp.eq.s32.totalorder %s36, 0
      %p232 = por %p230, %p231
      %s234 = sadd.s32 %s233, 1
      %p237 = scmp.eq.s32.totalorder %s30, 1
      %p238 = scmp.ne.s32.totalorder %s233, %s235
      %p239 = scmp.eq.s32.totalorder %s30, 0
      %p240 = por %p238, %p239
      %p241 = scmp.ne.s32.totalorder %s233, %s235
      %p242 = scmp.eq.s32.totalorder %s35, 1
      %p243 = por %p241, %p242
      %p244 = scmp.ne.s32.totalorder %s235, %s236
      %p245 = scmp.eq.s32.totalorder %s35, 0
      %p246 = por %p244, %p245
      %p247 = scmp.ne.s32.totalorder %s235, %s236
      %p248 = scmp.eq.s32.totalorder %s36, 1
      %p249 = por %p247, %p248
      %p251 = scmp.ne.s32.totalorder %s236, %s250
      %p252 = scmp.eq.s32.totalorder %s36, 0
      %p253 = por %p251, %p252
      %s255 = sadd.s32 %s254, 1
      %p258 = scmp.eq.s32.totalorder %s30, 1
      %p259 = scmp.ne.s32.totalorder %s254, %s256
      %p260 = scmp.eq.s32.totalorder %s30, 0
      %p261 = por %p259, %p260
      %p262 = scmp.ne.s32.totalorder %s254, %s256
      %p263 = scmp.eq.s32.totalorder %s35, 1
      %p264 = por %p262, %p263
      %p265 = scmp.ne.s32.totalorder %s256, %s257
      %p266 = scmp.eq.s32.totalorder %s35, 0
      %p267 = por %p265, %p266
      %p268 = scmp.ne.s32.totalorder %s256, %s257
      %p269 = scmp.eq.s32.totalorder %s36, 1
      %p270 = por %p268, %p269
      %p272 = scmp.ne.s32.totalorder %s257, %s271
      %p273 = scmp.eq.s32.totalorder %s36, 0
      %p274 = por %p272, %p273
      %s276 = sadd.s32 %s275, 1
      %p279 = scmp.eq.s32.totalorder %s30, 1
      %p280 = scmp.ne.s32.totalorder %s275, %s277
      %p281 = scmp.eq.s32.totalorder %s30, 0
      %p282 = por %p280, %p281
      %p283 = scmp.ne.s32.totalorder %s275, %s277
      %p284 = scmp.eq.s32.totalorder %s35, 1
      %p285 = por %p283, %p284
      %p286 = scmp.ne.s32.totalorder %s277, %s278
      %p287 = scmp.eq.s32.totalorder %s35, 0
      %p288 = por %p286, %p287
      %p289 = scmp.ne.s32.totalorder %s277, %s278
      %p290 = scmp.eq.s32.totalorder %s36, 1
      %p291 = por %p289, %p290
      %p293 = scmp.ne.s32.totalorder %s278, %s292
      %p294 = scmp.eq.s32.totalorder %s36, 0
      %p295 = por %p293, %p294
      %s297 = sadd.s32 %s296, 1
      %p300 = scmp.eq.s32.totalorder %s30, 1
      %p301 = scmp.ne.s32.totalorder %s296, %s298
      %p302 = scmp.eq.s32.totalorder %s30, 0
      %p303 = por %p301, %p302
      %p304 = scmp.ne.s32.totalorder %s296, %s298
      %p305 = scmp.eq.s32.totalorder %s35, 1
      %p306 = por %p304, %p305
      %p307 = scmp.ne.s32.totalorder %s298, %s299
      %p308 = scmp.eq.s32.totalorder %s35, 0
      %p309 = por %p307, %p308
      %p310 = scmp.ne.s32.totalorder %s298, %s299
      %p311 = scmp.eq.s32.totalorder %s36, 1
      %p312 = por %p310, %p311
      %p314 = scmp.ne.s32.totalorder %s299, %s313
      %p315 = scmp.eq.s32.totalorder %s36, 0
      %p316 = por %p314, %p315
      %s318 = sadd.s32 %s317, 1
      %p321 = scmp.eq.s32.totalorder %s30, 1
      %p322 = scmp.ne.s32.totalorder %s317, %s319
      %p323 = scmp.eq.s32.totalorder %s30, 0
      %p324 = por %p322, %p323
      %p325 = scmp.ne.s32.totalorder %s317, %s319
      %p326 = scmp.eq.s32.totalorder %s35, 1
      %p327 = por %p325, %p326
      %p328 = scmp.ne.s32.totalorder %s319, %s320
      %p329 = scmp.eq.s32.totalorder %s35, 0
      %p330 = por %p328, %p329
      %p331 = scmp.ne.s32.totalorder %s319, %s320
      %p332 = scmp.eq.s32.totalorder %s36, 1
      %p333 = por %p331, %p332
      %p335 = scmp.ne.s32.totalorder %s320, %s334
      %p336 = scmp.eq.s32.totalorder %s36, 0
      %p337 = por %p335, %p336
      %s338 = ssub.s32 %s37, %s49
      %s339 = ssub.s32 %s38, %s45
      %s340 = sor.u32 %s338, %s339
      %p341 = scmp.eq.s32.totalorder %s340, 0
      %s343 = sadd.s32 %s342, 1
      %s344 = scalar_select %p341, %s342, %s343
      %p347 = pneg %p341
      %p348 = scmp.eq.s32.totalorder %s30, 1
      %p349 = por %p347, %p348
      %p350 = scmp.ne.s32.totalorder %s342, %s345
      %p351 = scmp.eq.s32.totalorder %s30, 0
      %p352 = por %p350, %p351
      %p353 = scmp.ne.s32.totalorder %s342, %s345
      %p354 = scmp.eq.s32.totalorder %s35, 1
      %p355 = por %p353, %p354
      %p356 = scmp.ne.s32.totalorder %s345, %s346
      %p357 = scmp.eq.s32.totalorder %s35, 0
      %p358 = por %p356, %p357
      %p359 = scmp.ne.s32.totalorder %s345, %s346
      %p360 = scmp.eq.s32.totalorder %s36, 1
      %p361 = por %p359, %p360
      %p363 = scmp.ne.s32.totalorder %s346, %s362
      %p364 = scmp.eq.s32.totalorder %s36, 0
      %p365 = por %p363, %p364
      %p366 = scmp.le.s32.totalorder 1, %s30
      %p367 = scmp.lt.s32.totalorder %s30, 3
      %p368 = pnand %p366, %p367
      %p369 = pneg %p368
      // Predicated region
      $region9: #{tpu_custom_call.1} parent=5 // pred_check
        _
      $region10: #{tpu_custom_call.1} parent=5 // pred_check_branch
        %371 = sbr.rel (%p368) target = $region12
      $region11: #{tpu_custom_call.1} parent=5 // pred_region
        %s372 = ssub.s32 %s30, 1
        // Predicated region
        $region13: #{tpu_custom_call.1} parent=11 // pred_check
          %p373 = pneg %p141
        $region14: #{tpu_custom_call.1} parent=11 // pred_check_branch
          %375 = sbr.rel (%p373) target = $region16
        $region15: #{tpu_custom_call.1} parent=11 // pred_region
          %s377 = ssub.s32 256, 256
          %378 = vsyncadd [#allocation8], %s377
          %s379 = sshll.u32 [#allocation9], 4
          %s380 = int_to_ptr.vmem [resolvable:$true] %s379
          %385 = dma.hbm_to_vmem [thread:$0]  %s3, 256, %s380, [#allocation8], 64, 64, 4
        $region16: #{tpu_custom_call.1} parent=11 // pred_fallthru
          _
        // Predicated region
        $region17: #{tpu_custom_call.1} parent=11 // pred_check
          %p386 = pneg %p162
        $region18: #{tpu_custom_call.1} parent=11 // pred_check_branch
          %388 = sbr.rel (%p386) target = $region20
        $region19: #{tpu_custom_call.1} parent=11 // pred_region
          %s390 = ssub.s32 16, 16
          %391 = vsyncadd [#allocation11], %s390
          %s393 = sshll.u32 [#allocation10], 4
          %s394 = int_to_ptr.vmem [resolvable:$true] %s393
          %396 = dma.hbm_to_vmem [thread:$0]  %s4, 16, %s394, [#allocation11]
        $region20: #{tpu_custom_call.1} parent=11 // pred_fallthru
          _
        // Predicated region
        $region21: #{tpu_custom_call.1} parent=11 // pred_check
          %p397 = pneg %p183
        $region22: #{tpu_custom_call.1} parent=11 // pred_check_branch
          %399 = sbr.rel (%p397) target = $region24
        $region23: #{tpu_custom_call.1} parent=11 // pred_region
          _
        $region24: #{tpu_custom_call.1} parent=11 // pred_fallthru
          _
        // Predicated region
        $region25: #{tpu_custom_call.1} parent=11 // pred_check
          %p400 = pneg %p204
        $region26: #{tpu_custom_call.1} parent=11 // pred_check_branch
          %402 = sbr.rel (%p400) target = $region28
        $region27: #{tpu_custom_call.1} parent=11 // pred_region
          %s404 = ssub.s32 16, 16
          %405 = vsyncadd [#allocation11], %s404
          %s407 = sshll.u32 [#allocation12], 4
          %s408 = int_to_ptr.vmem [resolvable:$true] %s407
          %410 = dma.hbm_to_vmem [thread:$0]  %s6, 16, %s408, [#allocation11]
        $region28: #{tpu_custom_call.1} parent=11 // pred_fallthru
          _
        // Predicated region
        $region29: #{tpu_custom_call.1} parent=11 // pred_check
          %p411 = pneg %p225
        $region30: #{tpu_custom_call.1} parent=11 // pred_check_branch
          %413 = sbr.rel (%p411) target = $region32
        $region31: #{tpu_custom_call.1} parent=11 // pred_region
          %s415 = ssub.s32 256, 256
          %416 = vsyncadd [#allocation14], %s415
          %s417 = sshll.u32 [#allocation13], 4
          %s418 = int_to_ptr.vmem [resolvable:$true] %s417
          %423 = dma.hbm_to_vmem [thread:$0]  %s7, 256, %s418, [#allocation14], 64, 64, 4
        $region32: #{tpu_custom_call.1} parent=11 // pred_fallthru
          _
        // Predicated region
        $region33: #{tpu_custom_call.1} parent=11 // pred_check
          %p424 = pneg %p246
        $region34: #{tpu_custom_call.1} parent=11 // pred_check_branch
          %426 = sbr.rel (%p424) target = $region36
        $region35: #{tpu_custom_call.1} parent=11 // pred_region
          %s428 = ssub.s32 16, 16
          %429 = vsyncadd [#allocation14], %s428
          %s431 = sshll.u32 [#allocation15], 4
          %s432 = int_to_ptr.vmem [resolvable:$true] %s431
          %434 = dma.hbm_to_vmem [thread:$0]  %s8, 16, %s432, [#allocation14]
        $region36: #{tpu_custom_call.1} parent=11 // pred_fallthru
          _
        // Predicated region
        $region37: #{tpu_custom_call.1} parent=11 // pred_check
          %p435 = pneg %p267
        $region38: #{tpu_custom_call.1} parent=11 // pred_check_branch
          %437 = sbr.rel (%p435) target = $region40
        $region39: #{tpu_custom_call.1} parent=11 // pred_region
          _
        $region40: #{tpu_custom_call.1} parent=11 // pred_fallthru
          _
        // Predicated region
        $region41: #{tpu_custom_call.1} parent=11 // pred_check
          %p438 = pneg %p288
        $region42: #{tpu_custom_call.1} parent=11 // pred_check_branch
          %440 = sbr.rel (%p438) target = $region44
        $region43: #{tpu_custom_call.1} parent=11 // pred_region
          _
        $region44: #{tpu_custom_call.1} parent=11 // pred_fallthru
          _
        // Predicated region
        $region45: #{tpu_custom_call.1} parent=11 // pred_check
          %p441 = pneg %p309
        $region46: #{tpu_custom_call.1} parent=11 // pred_check_branch
          %443 = sbr.rel (%p441) target = $region48
        $region47: #{tpu_custom_call.1} parent=11 // pred_region
          _
        $region48: #{tpu_custom_call.1} parent=11 // pred_fallthru
          _
        // Predicated region
        $region49: #{tpu_custom_call.1} parent=11 // pred_check
          %p444 = pneg %p330
        $region50: #{tpu_custom_call.1} parent=11 // pred_check_branch
          %446 = sbr.rel (%p444) target = $region52
        $region51: #{tpu_custom_call.1} parent=11 // pred_region
          _
        $region52: #{tpu_custom_call.1} parent=11 // pred_fallthru
          _
      $region12: #{tpu_custom_call.1} parent=5 // pred_fallthru
        _
      %p447 = scmp.lt.s32.totalorder %s30, 2
      // Predicated region
      $region53: #{tpu_custom_call.1} parent=5 // pred_check
        %p448 = pneg %p447
      $region54: #{tpu_custom_call.1} parent=5 // pred_check_branch
        %450 = sbr.rel (%p448) target = $region56
      $region55: #{tpu_custom_call.1} parent=5 // pred_region
        // Predicated region
        $region57: #{tpu_custom_call.1} parent=55 // pred_check
          %p451 = pneg %p62
        $region58: #{tpu_custom_call.1} parent=55 // pred_check_branch
          %453 = sbr.rel (%p451) target = $region60
        $region59: #{tpu_custom_call.1} parent=55 // pred_region
          %s454 = sand.u32 %s52, 1
          %s455 = scalar_lea.sflag [#allocation5], %s454
          %s456 = sand.u32 %s52, 1
          %s457 = smul.addr %s456, 4
          %s458 = scalar_lea.vmem [#allocation4], %s457
          %s460 = ssub.s32 64, 64
          %461 = vsyncadd %s455, %s460
          %s462 = smul.addr %s37, 64
          %s463 = scalar_lea.hbm %s0, %s462
          %s465 = sshll.u32 %s458, 4
          %s466 = int_to_ptr.vmem [resolvable:$true] %s465
          %468 = dma.hbm_to_vmem [thread:$0]  %s463, 64, %s466, %s455
        $region60: #{tpu_custom_call.1} parent=55 // pred_fallthru
          _
        // Predicated region
        $region61: #{tpu_custom_call.1} parent=55 // pred_check
          %p469 = pneg %p88
        $region62: #{tpu_custom_call.1} parent=55 // pred_check_branch
          %471 = sbr.rel (%p469) target = $region64
        $region63: #{tpu_custom_call.1} parent=55 // pred_region
          %s472 = sand.u32 %s30, 1
          %s473 = scalar_lea.sflag [#allocation8], %s472
          %s474 = sand.u32 %s78, 1
          %s475 = smul.addr %s474, 4
          %s476 = scalar_lea.vmem [#allocation7], %s475
          %s478 = ssub.s32 64, 64
          %479 = vsyncadd %s473, %s478
          %s480 = smul.addr %s37, 64
          %s481 = scalar_lea.hbm %s1, %s480
          %s483 = sshll.u32 %s476, 4
          %s484 = int_to_ptr.vmem [resolvable:$true] %s483
          %486 = dma.hbm_to_vmem [thread:$0]  %s481, 64, %s484, %s473
        $region64: #{tpu_custom_call.1} parent=55 // pred_fallthru
          _
        // Predicated region
        $region65: #{tpu_custom_call.1} parent=55 // pred_check
          %p487 = pneg %p114
        $region66: #{tpu_custom_call.1} parent=55 // pred_check_branch
          %489 = sbr.rel (%p487) target = $region68
        $region67: #{tpu_custom_call.1} parent=55 // pred_region
          %p490 = scmp.lt.s32.totalorder %s37, 1
          %s491 = scalar_select %p490, %s37, 1
          %s492 = scalar_lea.vmem %s2, %s491
        $region68: #{tpu_custom_call.1} parent=55 // pred_fallthru
          _
      $region56: #{tpu_custom_call.1} parent=5 // pred_fallthru
        _
      %p493 = scmp.le.s32.totalorder 1, %s30
      %p494 = scmp.lt.s32.totalorder %s30, 3
      %p495 = pnand %p493, %p494
      %p496 = pneg %p495
      // Predicated region
      $region69: #{tpu_custom_call.1} parent=5 // pred_check
        _
      $region70: #{tpu_custom_call.1} parent=5 // pred_check_branch
        %498 = sbr.rel (%p495) target = $region72
      $region71: #{tpu_custom_call.1} parent=5 // pred_region
        %s499 = ssub.s32 %s30, 1
        %s500 = sand.u32 %s55, 1
        %s501 = scalar_lea.sflag [#allocation5], %s500
        %s502 = sand.u32 %s55, 1
        %s503 = smul.addr %s502, 4
        %s504 = scalar_lea.vmem [#allocation4], %s503
        // Predicated region
        $region73: #{tpu_custom_call.1} parent=71 // pred_check
          %p505 = pneg %p68
        $region74: #{tpu_custom_call.1} parent=71 // pred_check_branch
          %507 = sbr.rel (%p505) target = $region76
        $region75: #{tpu_custom_call.1} parent=71 // pred_region
          %508 = dma.done %s501, 64
        $region76: #{tpu_custom_call.1} parent=71 // pred_fallthru
          _
        %s509 = sand.u32 %s35, 1
        %s510 = scalar_lea.sflag [#allocation8], %s509
        %s511 = sand.u32 %s81, 1
        %s512 = smul.addr %s511, 4
        %s513 = scalar_lea.vmem [#allocation7], %s512
        // Predicated region
        $region77: #{tpu_custom_call.1} parent=71 // pred_check
          %p514 = pneg %p94
        $region78: #{tpu_custom_call.1} parent=71 // pred_check_branch
          %516 = sbr.rel (%p514) target = $region80
        $region79: #{tpu_custom_call.1} parent=71 // pred_region
          %517 = dma.done %s510, 64
        $region80: #{tpu_custom_call.1} parent=71 // pred_fallthru
          _
        // Predicated region
        $region81: #{tpu_custom_call.1} parent=71 // pred_check
          %p518 = pneg %p141
        $region82: #{tpu_custom_call.1} parent=71 // pred_check_branch
          %520 = sbr.rel (%p518) target = $region84
        $region83: #{tpu_custom_call.1} parent=71 // pred_region
          %521 = dma.done [#allocation8], 256
        $region84: #{tpu_custom_call.1} parent=71 // pred_fallthru
          _
        // Predicated region
        $region85: #{tpu_custom_call.1} parent=71 // pred_check
          %p522 = pneg %p162
        $region86: #{tpu_custom_call.1} parent=71 // pred_check_branch
          %524 = sbr.rel (%p522) target = $region88
        $region87: #{tpu_custom_call.1} parent=71 // pred_region
          %525 = dma.done [#allocation11], 16
        $region88: #{tpu_custom_call.1} parent=71 // pred_fallthru
          _
        // Predicated region
        $region89: #{tpu_custom_call.1} parent=71 // pred_check
          %p526 = pneg %p204
        $region90: #{tpu_custom_call.1} parent=71 // pred_check_branch
          %528 = sbr.rel (%p526) target = $region92
        $region91: #{tpu_custom_call.1} parent=71 // pred_region
          %529 = dma.done [#allocation11], 16
        $region92: #{tpu_custom_call.1} parent=71 // pred_fallthru
          _
        // Predicated region
        $region93: #{tpu_custom_call.1} parent=71 // pred_check
          %p530 = pneg %p225
        $region94: #{tpu_custom_call.1} parent=71 // pred_check_branch
          %532 = sbr.rel (%p530) target = $region96
        $region95: #{tpu_custom_call.1} parent=71 // pred_region
          %533 = dma.done [#allocation14], 256
        $region96: #{tpu_custom_call.1} parent=71 // pred_fallthru
          _
        // Predicated region
        $region97: #{tpu_custom_call.1} parent=71 // pred_check
          %p534 = pneg %p246
        $region98: #{tpu_custom_call.1} parent=71 // pred_check_branch
          %536 = sbr.rel (%p534) target = $region100
        $region99: #{tpu_custom_call.1} parent=71 // pred_region
          %537 = dma.done [#allocation14], 16
        $region100: #{tpu_custom_call.1} parent=71 // pred_fallthru
          _
        %s538 = sand.u32 %s55, 1
        %s539 = scalar_lea.sflag [#allocation5], %s538
        %s540 = sand.u32 %s55, 1
        %s541 = smul.addr %s540, 4
        %s542 = scalar_lea.vmem [#allocation4], %s541
        %p543 = pneg %p68
        %p544 = pneg %p65
        %s545 = sand.u32 %s35, 1
        %s546 = scalar_lea.sflag [#allocation8], %s545
        %s547 = sand.u32 %s81, 1
        %s548 = smul.addr %s547, 4
        %s549 = scalar_lea.vmem [#allocation7], %s548
        %p550 = pneg %p94
        %p551 = pneg %p91
        %p552 = scmp.lt.s32.totalorder %s39, 1
        %s553 = scalar_select %p552, %s39, 1
        %s554 = scalar_lea.vmem %s2, %s553
        %p555 = pneg %p120
        %p556 = pneg %p117
        %p557 = pneg %p141
        %p558 = pneg %p138
        %p559 = pneg %p162
        %p560 = pneg %p159
        %p561 = pneg %p183
        %p562 = pneg %p180
        %p563 = pneg %p204
        %p564 = pneg %p201
        %p565 = pneg %p225
        %p566 = pneg %p222
        %p567 = pneg %p246
        %p568 = pneg %p243
        %p569 = pneg %p267
        %p570 = pneg %p264
        %p571 = pneg %p288
        %p572 = pneg %p285
        %p573 = pneg %p309
        %p574 = pneg %p306
        %p575 = pneg %p330
        %p576 = pneg %p327
        %p577 = pneg %p358
        %p578 = pneg %p355
        %s579 = sand.u32 %s345, 1
        %s580 = scalar_lea.sflag [#allocation6], %s579
        %s581 = sand.u32 %s345, 1
        %s582 = smul.addr %s581, 8
        %s583 = scalar_lea.vmem [#allocation16], %s582
        %p584 = scmp.lt.s32.totalorder %s39, 1
        %s585 = scalar_select %p584, %s39, 1
        %s586 = scalar_lea.vmem %s2, %s585
        %p588 = scmp.eq.s32.totalorder %s40, 0
        // Predicated region
        $region101: #{tpu_custom_call.1} parent=71 // pred_check
          %p589 = pneg %p588
        $region102: #{tpu_custom_call.1} parent=71 // pred_check_branch
          %591 = sbr.rel (%p589) target = $region104
        $region103: #{tpu_custom_call.1} parent=71 // pred_region
          %v592 = vld [vmem:[%s504] sm:$0xf]
          %v593 = vld [vmem:[%s513] sm:$0xf]
          %v594 = vld [vmem:[%s5] sm:$0xf]
          %v595 = vld [vmem:[%s5 + $0x4] sm:$0xf]
          %v596 = vld [vmem:[%s5 + $0x8] sm:$0xf]
          %v597 = vld [vmem:[%s5 + $0xc] sm:$0xf]
          %v598 = vld [vmem:[#allocation12] sm:$0x1]
          %v600 = vlaneseq
          %v601 = vshrl.u32 %v600, 7
          %v602 = vsub.s32 0, %v601
          %v603 = vrot.slane %v598, %v602
          %v609 = vunpack.c.l.b16 %v594
          %v610 = vunpack.c.l.b16 %v595
          %v611 = vunpack.c.l.b16 %v596
          %v612 = vunpack.c.l.b16 %v597
          %v613 = vpack.c.b16 %v610, %v609
          %v614 = vpack.c.b16 %v612, %v611
          %vm617 = vcmask 261120
          %v619 = vsel %vm617, %v592, 0
          %621 = vmatprep.subr.bf16.mxu0 0
          %622 = vmatpush1.bf16.msra.mxu0 %v613
          %623 = vmatprep.subr.bf16.mxu0 0
          %624 = vmatpush1.bf16.msra.mxu0 %v614
          %625 = vmatprep.subr.bf16.mxu0 0
          %626 = vmatpush1.bf16.msra.mxu0 0
          %627 = vmatprep.subr.bf16.mxu0 0
          %628 = vmatpush1.bf16.msra.mxu0 0
          %629 = vmatprep.subr.bf16.mxu0 0
          %630 = vmatpush1.bf16.msra.mxu0 0
          %631 = vmatprep.subr.bf16.mxu0 0
          %632 = vmatpush1.bf16.msra.mxu0 0
          %633 = vmatprep.subr.bf16.mxu0 0
          %634 = vmatpush1.bf16.msra.mxu0 0
          %635 = vmatprep.subr.bf16.mxu0 0
          %636 = vmatpush1.bf16.msra.mxu0 0
          %637 = vmatprep.subr.bf16.mxu0 0
          %638 = vmatpush1.bf16.msra.mxu0 0
          %639 = vmatprep.subr.bf16.mxu0 0
          %640 = vmatpush1.bf16.msra.mxu0 0
          %641 = vmatprep.subr.bf16.mxu0 0
          %642 = vmatpush1.bf16.msra.mxu0 0
          %643 = vmatprep.subr.bf16.mxu0 0
          %644 = vmatpush1.bf16.msra.mxu0 0
          %645 = vmatprep.subr.bf16.mxu0 0
          %646 = vmatpush1.bf16.msra.mxu0 0
          %647 = vmatprep.subr.bf16.mxu0 0
          %648 = vmatpush1.bf16.msra.mxu0 0
          %649 = vmatprep.subr.bf16.mxu0 0
          %650 = vmatpush1.bf16.msra.mxu0 0
          %651 = vmatprep.subr.bf16.mxu0 0
          %652 = vmatpush1.bf16.msra.mxu0 0
          %653 = vmatprep.mubr.bf16.mxu0 0
          %654 = vmatmul.mubr.bf16.gmra.mrb[0].mxu0 %v619
          %v655 = vpop.f32.mrb[0].mxu0
          %v656 = vadd.f32 %v603, %v655
          %v657 = vpop.f32.mrb[0].mxu0
          %v658 = vpop.f32.mrb[0].mxu0
          %v659 = vpop.f32.mrb[0].mxu0
          %660 = vdwg.mxu0
          %v661 = vld [vmem:[#allocation13] sm:$0xf]
          %v662 = vld [vmem:[#allocation13 + $0x4] sm:$0xf]
          %v663 = vld [vmem:[#allocation13 + $0x8] sm:$0xf]
          %v664 = vld [vmem:[#allocation13 + $0xc] sm:$0xf]
          %v669 = vunpack.c.l.b16 %v661
          %v670 = vunpack.c.l.b16 %v662
          %v671 = vunpack.c.l.b16 %v663
          %v672 = vunpack.c.l.b16 %v664
          %v673 = vpack.c.b16 %v670, %v669
          %v674 = vpack.c.b16 %v672, %v671
          %v678 = vsel %vm617, %v593, 0
          %680 = vmatprep.subr.bf16.mxu0 0
          %681 = vmatpush1.bf16.msra.mxu0 %v673
          %682 = vmatprep.subr.bf16.mxu0 0
          %683 = vmatpush1.bf16.msra.mxu0 %v674
          %684 = vmatprep.subr.bf16.mxu0 0
          %685 = vmatpush1.bf16.msra.mxu0 0
          %686 = vmatprep.subr.bf16.mxu0 0
          %687 = vmatpush1.bf16.msra.mxu0 0
          %688 = vmatprep.subr.bf16.mxu0 0
          %689 = vmatpush1.bf16.msra.mxu0 0
          %690 = vmatprep.subr.bf16.mxu0 0
          %691 = vmatpush1.bf16.msra.mxu0 0
          %692 = vmatprep.subr.bf16.mxu0 0
          %693 = vmatpush1.bf16.msra.mxu0 0
          %694 = vmatprep.subr.bf16.mxu0 0
          %695 = vmatpush1.bf16.msra.mxu0 0
          %696 = vmatprep.subr.bf16.mxu0 0
          %697 = vmatpush1.bf16.msra.mxu0 0
          %698 = vmatprep.subr.bf16.mxu0 0
          %699 = vmatpush1.bf16.msra.mxu0 0
          %700 = vmatprep.subr.bf16.mxu0 0
          %701 = vmatpush1.bf16.msra.mxu0 0
          %702 = vmatprep.subr.bf16.mxu0 0
          %703 = vmatpush1.bf16.msra.mxu0 0
          %704 = vmatprep.subr.bf16.mxu0 0
          %705 = vmatpush1.bf16.msra.mxu0 0
          %706 = vmatprep.subr.bf16.mxu0 0
          %707 = vmatpush1.bf16.msra.mxu0 0
          %708 = vmatprep.subr.bf16.mxu0 0
          %709 = vmatpush1.bf16.msra.mxu0 0
          %710 = vmatprep.subr.bf16.mxu0 0
          %711 = vmatpush1.bf16.msra.mxu0 0
          %712 = vmatprep.mubr.bf16.mxu0 0
          %713 = vmatmul.mubr.bf16.gmra.mrb[0].mxu0 %v678
          %v714 = vpop.f32.mrb[0].mxu0
          %v715 = vadd.f32 0.0, %v714
          %v716 = vpop.f32.mrb[0].mxu0
          %v717 = vpop.f32.mrb[0].mxu0
          %v718 = vpop.f32.mrb[0].mxu0
          %719 = vdwg.mxu0
          %v720 = vadd.f32 %v656, %v715
          %v721 = vld [vmem:[#allocation15] sm:$0x1]
          %v723 = vlaneseq
          %v724 = vshrl.u32 %v723, 7
          %v725 = vsub.s32 0, %v724
          %v726 = vrot.slane %v721, %v725
          %v728 = vadd.f32 %v720, %v726
          %730 = vrot.lane.b32.xlu0 %v728, 120
          %v731 = vpop.permute.xlu0 %730
          %733 = vrot.lane.b32.xlu0 %v728, 112
          %v734 = vpop.permute.xlu0 %733
          %736 = vrot.lane.b32.xlu0 %v728, 104
          %v737 = vpop.permute.xlu0 %736
          %v739 = vcombine.low %v728, %v734
          %v740 = vcombine.high %v728, %v734
          %v742 = vunpack.c.l.s4 1983009808
          %v743 = vunpack.c.0.s8 %v742
          %v744 = vlaneseq
          %v745 = vshrl.u32 %v744, 7
          %v746 = vsub.s32 %v743, %v745
          %v747 = vrot.slane %v739, %v746
          %v749 = vunpack.c.l.s4 1983009808
          %v750 = vunpack.c.0.s8 %v749
          %v751 = vlaneseq
          %v752 = vshrl.u32 %v751, 7
          %v753 = vsub.s32 %v750, %v752
          %v754 = vrot.slane %v740, %v753
          %v755 = vcombine.low %v731, %v737
          %v756 = vcombine.high %v731, %v737
          %v758 = vunpack.c.l.s4 1983009808
          %v759 = vunpack.c.0.s8 %v758
          %v760 = vlaneseq
          %v761 = vshrl.u32 %v760, 7
          %v762 = vsub.s32 %v759, %v761
          %v763 = vrot.slane %v755, %v762
          %v765 = vunpack.c.l.s4 1983009808
          %v766 = vunpack.c.0.s8 %v765
          %v767 = vlaneseq
          %v768 = vshrl.u32 %v767, 7
          %v769 = vsub.s32 %v766, %v768
          %v770 = vrot.slane %v756, %v769
          %v771 = vcombine.low %v747, %v763
          %v772 = vcombine.high %v747, %v763
          %v774 = vunpack.c.l.s4 1934713408
          %v775 = vunpack.c.0.s8 %v774
          %v776 = vlaneseq
          %v777 = vshrl.u32 %v776, 7
          %v778 = vsub.s32 %v775, %v777
          %v779 = vrot.slane %v771, %v778
          %v781 = vunpack.c.l.s4 1934713408
          %v782 = vunpack.c.0.s8 %v781
          %v783 = vlaneseq
          %v784 = vshrl.u32 %v783, 7
          %v785 = vsub.s32 %v782, %v784
          %v786 = vrot.slane %v772, %v785
          %v787 = vcombine.low %v754, %v770
          %v788 = vcombine.high %v754, %v770
          %v790 = vunpack.c.l.s4 1934713408
          %v791 = vunpack.c.0.s8 %v790
          %v792 = vlaneseq
          %v793 = vshrl.u32 %v792, 7
          %v794 = vsub.s32 %v791, %v793
          %v795 = vrot.slane %v787, %v794
          %v797 = vunpack.c.l.s4 1934713408
          %v798 = vunpack.c.0.s8 %v797
          %v799 = vlaneseq
          %v800 = vshrl.u32 %v799, 7
          %v801 = vsub.s32 %v798, %v800
          %v802 = vrot.slane %v788, %v801
          %v803 = vcombine.high %v779, 0.0
          %v804 = vcombine.high %v786, 0.0
          %v805 = vcombine.high %v795, 0.0
          %v806 = vcombine.high %v802, 0.0
          %807 = vrot.lane.b32.xlu0 %v728, 96
          %v808 = vpop.permute.xlu0 %807
          %809 = vrot.lane.b32.xlu0 %v731, 96
          %v810 = vpop.permute.xlu0 %809
          %811 = vrot.lane.b32.xlu0 %v734, 96
          %v812 = vpop.permute.xlu0 %811
          %813 = vrot.lane.b32.xlu0 %v737, 96
          %v814 = vpop.permute.xlu0 %813
          %v819 = vcombine.low %v808, %v812
          %v820 = vcombine.high %v808, %v812
          %v822 = vunpack.c.l.s4 1983009808
          %v823 = vunpack.c.0.s8 %v822
          %v824 = vlaneseq
          %v825 = vshrl.u32 %v824, 7
          %v826 = vsub.s32 %v823, %v825
          %v827 = vrot.slane %v819, %v826
          %v829 = vunpack.c.l.s4 1983009808
          %v830 = vunpack.c.0.s8 %v829
          %v831 = vlaneseq
          %v832 = vshrl.u32 %v831, 7
          %v833 = vsub.s32 %v830, %v832
          %v834 = vrot.slane %v820, %v833
          %v835 = vcombine.low %v810, %v814
          %v836 = vcombine.high %v810, %v814
          %v838 = vunpack.c.l.s4 1983009808
          %v839 = vunpack.c.0.s8 %v838
          %v840 = vlaneseq
          %v841 = vshrl.u32 %v840, 7
          %v842 = vsub.s32 %v839, %v841
          %v843 = vrot.slane %v835, %v842
          %v845 = vunpack.c.l.s4 1983009808
          %v846 = vunpack.c.0.s8 %v845
          %v847 = vlaneseq
          %v848 = vshrl.u32 %v847, 7
          %v849 = vsub.s32 %v846, %v848
          %v850 = vrot.slane %v836, %v849
          %v851 = vcombine.low %v827, %v843
          %v852 = vcombine.high %v827, %v843
          %v854 = vunpack.c.l.s4 1934713408
          %v855 = vunpack.c.0.s8 %v854
          %v856 = vlaneseq
          %v857 = vshrl.u32 %v856, 7
          %v858 = vsub.s32 %v855, %v857
          %v859 = vrot.slane %v851, %v858
          %v861 = vunpack.c.l.s4 1934713408
          %v862 = vunpack.c.0.s8 %v861
          %v863 = vlaneseq
          %v864 = vshrl.u32 %v863, 7
          %v865 = vsub.s32 %v862, %v864
          %v866 = vrot.slane %v852, %v865
          %v867 = vcombine.low %v834, %v850
          %v868 = vcombine.high %v834, %v850
          %v870 = vunpack.c.l.s4 1934713408
          %v871 = vunpack.c.0.s8 %v870
          %v872 = vlaneseq
          %v873 = vshrl.u32 %v872, 7
          %v874 = vsub.s32 %v871, %v873
          %v875 = vrot.slane %v867, %v874
          %v877 = vunpack.c.l.s4 1934713408
          %v878 = vunpack.c.0.s8 %v877
          %v879 = vlaneseq
          %v880 = vshrl.u32 %v879, 7
          %v881 = vsub.s32 %v878, %v880
          %v882 = vrot.slane %v868, %v881
          %v883 = vcombine.high %v859, 0.0
          %v884 = vcombine.high %v866, 0.0
          %v885 = vcombine.high %v875, 0.0
          %v886 = vcombine.high %v882, 0.0
          %v887 = vcombine.low %v779, %v786
          %v889 = vunpack.c.l.s4 1983009808
          %v890 = vunpack.c.0.s8 %v889
          %v891 = vlaneseq
          %v892 = vshrl.u32 %v891, 7
          %v893 = vsub.s32 %v890, %v892
          %v894 = vrot.slane %v887, %v893
          %v895 = vcombine.low %v803, %v804
          %v897 = vunpack.c.l.s4 1983009808
          %v898 = vunpack.c.0.s8 %v897
          %v899 = vlaneseq
          %v900 = vshrl.u32 %v899, 7
          %v901 = vsub.s32 %v898, %v900
          %v902 = vrot.slane %v895, %v901
          %v903 = vcombine.low %v795, %v802
          %v905 = vunpack.c.l.s4 1983009808
          %v906 = vunpack.c.0.s8 %v905
          %v907 = vlaneseq
          %v908 = vshrl.u32 %v907, 7
          %v909 = vsub.s32 %v906, %v908
          %v910 = vrot.slane %v903, %v909
          %v911 = vcombine.low %v805, %v806
          %v913 = vunpack.c.l.s4 1983009808
          %v914 = vunpack.c.0.s8 %v913
          %v915 = vlaneseq
          %v916 = vshrl.u32 %v915, 7
          %v917 = vsub.s32 %v914, %v916
          %v918 = vrot.slane %v911, %v917
          %v919 = vcombine.low %v894, %v902
          %v920 = vcombine.high %v894, %v902
          %v922 = vunpack.c.l.s4 1934713408
          %v923 = vunpack.c.0.s8 %v922
          %v924 = vlaneseq
          %v925 = vshrl.u32 %v924, 7
          %v926 = vsub.s32 %v923, %v925
          %v927 = vrot.slane %v919, %v926
          %v929 = vunpack.c.l.s4 1934713408
          %v930 = vunpack.c.0.s8 %v929
          %v931 = vlaneseq
          %v932 = vshrl.u32 %v931, 7
          %v933 = vsub.s32 %v930, %v932
          %v934 = vrot.slane %v920, %v933
          %v935 = vcombine.low %v910, %v918
          %v936 = vcombine.high %v910, %v918
          %v938 = vunpack.c.l.s4 1934713408
          %v939 = vunpack.c.0.s8 %v938
          %v940 = vlaneseq
          %v941 = vshrl.u32 %v940, 7
          %v942 = vsub.s32 %v939, %v941
          %v943 = vrot.slane %v935, %v942
          %v945 = vunpack.c.l.s4 1934713408
          %v946 = vunpack.c.0.s8 %v945
          %v947 = vlaneseq
          %v948 = vshrl.u32 %v947, 7
          %v949 = vsub.s32 %v946, %v948
          %v950 = vrot.slane %v936, %v949
          %v951 = vcombine.low %v927, %v943
          %v952 = vcombine.high %v927, %v943
          %v953 = vcombine.low %v934, %v950
          %v954 = vcombine.high %v934, %v950
          %v955 = vpack.c.bf16 %v951, %v951
          %v956 = vpack.c.bf16 %v952, %v952
          %v957 = vpack.c.bf16 %v953, %v953
          %v958 = vpack.c.bf16 %v954, %v954
          %vm959 = vcmask 60416
          %960 = vst.msk [vmem:[#allocation2] sm:$0xf] %vm959, %v955
          %961 = vst.msk [vmem:[#allocation2 + $0x4] sm:$0xf] %vm959, %v956
          %962 = vst.msk [vmem:[#allocation2 + $0x8] sm:$0xf] %vm959, %v957
          %963 = vst.msk [vmem:[#allocation2 + $0xc] sm:$0xf] %vm959, %v958
          %v964 = vcombine.low %v859, %v866
          %v966 = vunpack.c.l.s4 1983009808
          %v967 = vunpack.c.0.s8 %v966
          %v968 = vlaneseq
          %v969 = vshrl.u32 %v968, 7
          %v970 = vsub.s32 %v967, %v969
          %v971 = vrot.slane %v964, %v970
          %v972 = vcombine.low %v883, %v884
          %v974 = vunpack.c.l.s4 1983009808
          %v975 = vunpack.c.0.s8 %v974
          %v976 = vlaneseq
          %v977 = vshrl.u32 %v976, 7
          %v978 = vsub.s32 %v975, %v977
          %v979 = vrot.slane %v972, %v978
          %v980 = vcombine.low %v875, %v882
          %v982 = vunpack.c.l.s4 1983009808
          %v983 = vunpack.c.0.s8 %v982
          %v984 = vlaneseq
          %v985 = vshrl.u32 %v984, 7
          %v986 = vsub.s32 %v983, %v985
          %v987 = vrot.slane %v980, %v986
          %v988 = vcombine.low %v885, %v886
          %v990 = vunpack.c.l.s4 1983009808
          %v991 = vunpack.c.0.s8 %v990
          %v992 = vlaneseq
          %v993 = vshrl.u32 %v992, 7
          %v994 = vsub.s32 %v991, %v993
          %v995 = vrot.slane %v988, %v994
          %v996 = vcombine.low %v971, %v979
          %v997 = vcombine.high %v971, %v979
          %v999 = vunpack.c.l.s4 1934713408
          %v1000 = vunpack.c.0.s8 %v999
          %v1001 = vlaneseq
          %v1002 = vshrl.u32 %v1001, 7
          %v1003 = vsub.s32 %v1000, %v1002
          %v1004 = vrot.slane %v996, %v1003
          %v1006 = vunpack.c.l.s4 1934713408
          %v1007 = vunpack.c.0.s8 %v1006
          %v1008 = vlaneseq
          %v1009 = vshrl.u32 %v1008, 7
          %v1010 = vsub.s32 %v1007, %v1009
          %v1011 = vrot.slane %v997, %v1010
          %v1012 = vcombine.low %v987, %v995
          %v1013 = vcombine.high %v987, %v995
          %v1015 = vunpack.c.l.s4 1934713408
          %v1016 = vunpack.c.0.s8 %v1015
          %v1017 = vlaneseq
          %v1018 = vshrl.u32 %v1017, 7
          %v1019 = vsub.s32 %v1016, %v1018
          %v1020 = vrot.slane %v1012, %v1019
          %v1022 = vunpack.c.l.s4 1934713408
          %v1023 = vunpack.c.0.s8 %v1022
          %v1024 = vlaneseq
          %v1025 = vshrl.u32 %v1024, 7
          %v1026 = vsub.s32 %v1023, %v1025
          %v1027 = vrot.slane %v1013, %v1026
          %v1028 = vcombine.low %v1004, %v1020
          %v1029 = vcombine.high %v1004, %v1020
          %v1030 = vcombine.low %v1011, %v1027
          %v1031 = vcombine.high %v1011, %v1027
          %v1032 = vpack.c.bf16 %v1028, %v1028
          %v1033 = vpack.c.bf16 %v1029, %v1029
          %v1034 = vpack.c.bf16 %v1030, %v1030
          %v1035 = vpack.c.bf16 %v1031, %v1031
          %1036 = vst.msk [vmem:[#allocation3] sm:$0xf] %vm959, %v1032
          %1037 = vst.msk [vmem:[#allocation3 + $0x4] sm:$0xf] %vm959, %v1033
          %1038 = vst.msk [vmem:[#allocation3 + $0x8] sm:$0xf] %vm959, %v1034
          %1039 = vst.msk [vmem:[#allocation3 + $0xc] sm:$0xf] %vm959, %v1035
        $region104: #{tpu_custom_call.1} parent=71 // pred_fallthru
          _
        %s1040 = smul.u32 %s40, 8
        %s1041 = sshra.s32 %s1040, 3
        %s1042 = sand.u32 %s1040, 7
        %s1043 = smul.addr %s1041, 4
        %s1044 = scalar_lea.vmem %s504, %s1043 [#allocation4]
        %v1045 = vld [vmem:[%s1044] sm:$0xf]
        %v1046 = vld [vmem:[#allocation9] sm:$0xf]
        %v1047 = vld [vmem:[#allocation9 + $0x4] sm:$0xf]
        %v1048 = vld [vmem:[#allocation9 + $0x8] sm:$0xf]
        %v1049 = vld [vmem:[#allocation9 + $0xc] sm:$0xf]
        %v1050 = vld [vmem:[#allocation10] sm:$0x1]
        %v1052 = vlaneseq
        %v1053 = vshrl.u32 %v1052, 7
        %v1054 = vsub.s32 0, %v1053
        %v1055 = vrot.slane %v1050, %v1054
        %v1061 = vunpack.c.l.b16 %v1046
        %v1062 = vunpack.c.l.b16 %v1047
        %v1063 = vunpack.c.l.b16 %v1048
        %v1064 = vunpack.c.l.b16 %v1049
        %v1065 = vpack.c.b16 %v1062, %v1061
        %v1066 = vpack.c.b16 %v1064, %v1063
        %vm1069 = vcmask 261120
        %v1071 = vsel %vm1069, %v1045, 0
        %1073 = vmatprep.subr.bf16.mxu0 0
        %1074 = vmatpush1.bf16.msra.mxu0 %v1065
        %1075 = vmatprep.subr.bf16.mxu0 0
        %1076 = vmatpush1.bf16.msra.mxu0 %v1066
        %1077 = vmatprep.subr.bf16.mxu0 0
        %1078 = vmatpush1.bf16.msra.mxu0 0
        %1079 = vmatprep.subr.bf16.mxu0 0
        %1080 = vmatpush1.bf16.msra.mxu0 0
        %1081 = vmatprep.subr.bf16.mxu0 0
        %1082 = vmatpush1.bf16.msra.mxu0 0
        %1083 = vmatprep.subr.bf16.mxu0 0
        %1084 = vmatpush1.bf16.msra.mxu0 0
        %1085 = vmatprep.subr.bf16.mxu0 0
        %1086 = vmatpush1.bf16.msra.mxu0 0
        %1087 = vmatprep.subr.bf16.mxu0 0
        %1088 = vmatpush1.bf16.msra.mxu0 0
        %1089 = vmatprep.subr.bf16.mxu0 0
        %1090 = vmatpush1.bf16.msra.mxu0 0
        %1091 = vmatprep.subr.bf16.mxu0 0
        %1092 = vmatpush1.bf16.msra.mxu0 0
        %1093 = vmatprep.subr.bf16.mxu0 0
        %1094 = vmatpush1.bf16.msra.mxu0 0
        %1095 = vmatprep.subr.bf16.mxu0 0
        %1096 = vmatpush1.bf16.msra.mxu0 0
        %1097 = vmatprep.subr.bf16.mxu0 0
        %1098 = vmatpush1.bf16.msra.mxu0 0
        %1099 = vmatprep.subr.bf16.mxu0 0
        %1100 = vmatpush1.bf16.msra.mxu0 0
        %1101 = vmatprep.subr.bf16.mxu0 0
        %1102 = vmatpush1.bf16.msra.mxu0 0
        %1103 = vmatprep.subr.bf16.mxu0 0
        %1104 = vmatpush1.bf16.msra.mxu0 0
        %1105 = vmatprep.mubr.bf16.mxu0 0
        %1106 = vmatmul.mubr.bf16.gmra.mrb[0].mxu0 %v1071
        %v1107 = vpop.f32.mrb[0].mxu0
        %v1108 = vadd.f32 %v1055, %v1107
        %v1109 = vpop.f32.mrb[0].mxu0
        %v1110 = vpop.f32.mrb[0].mxu0
        %v1111 = vpop.f32.mrb[0].mxu0
        %1112 = vdwg.mxu0
        %1114 = vrot.lane.b32.xlu0 %v1108, 120
        %v1115 = vpop.permute.xlu0 %1114
        %1117 = vrot.lane.b32.xlu0 %v1108, 112
        %v1118 = vpop.permute.xlu0 %1117
        %1120 = vrot.lane.b32.xlu0 %v1108, 104
        %v1121 = vpop.permute.xlu0 %1120
        %v1123 = vcombine.low %v1108, %v1118
        %v1124 = vcombine.high %v1108, %v1118
        %v1126 = vunpack.c.l.s4 1983009808
        %v1127 = vunpack.c.0.s8 %v1126
        %v1128 = vlaneseq
        %v1129 = vshrl.u32 %v1128, 7
        %v1130 = vsub.s32 %v1127, %v1129
        %v1131 = vrot.slane %v1123, %v1130
        %v1133 = vunpack.c.l.s4 1983009808
        %v1134 = vunpack.c.0.s8 %v1133
        %v1135 = vlaneseq
        %v1136 = vshrl.u32 %v1135, 7
        %v1137 = vsub.s32 %v1134, %v1136
        %v1138 = vrot.slane %v1124, %v1137
        %v1139 = vcombine.low %v1115, %v1121
        %v1140 = vcombine.high %v1115, %v1121
        %v1142 = vunpack.c.l.s4 1983009808
        %v1143 = vunpack.c.0.s8 %v1142
        %v1144 = vlaneseq
        %v1145 = vshrl.u32 %v1144, 7
        %v1146 = vsub.s32 %v1143, %v1145
        %v1147 = vrot.slane %v1139, %v1146
        %v1149 = vunpack.c.l.s4 1983009808
        %v1150 = vunpack.c.0.s8 %v1149
        %v1151 = vlaneseq
        %v1152 = vshrl.u32 %v1151, 7
        %v1153 = vsub.s32 %v1150, %v1152
        %v1154 = vrot.slane %v1140, %v1153
        %v1155 = vcombine.low %v1131, %v1147
        %v1156 = vcombine.high %v1131, %v1147
        %v1158 = vunpack.c.l.s4 1934713408
        %v1159 = vunpack.c.0.s8 %v1158
        %v1160 = vlaneseq
        %v1161 = vshrl.u32 %v1160, 7
        %v1162 = vsub.s32 %v1159, %v1161
        %v1163 = vrot.slane %v1155, %v1162
        %v1165 = vunpack.c.l.s4 1934713408
        %v1166 = vunpack.c.0.s8 %v1165
        %v1167 = vlaneseq
        %v1168 = vshrl.u32 %v1167, 7
        %v1169 = vsub.s32 %v1166, %v1168
        %v1170 = vrot.slane %v1156, %v1169
        %v1171 = vcombine.low %v1138, %v1154
        %v1172 = vcombine.high %v1138, %v1154
        %v1174 = vunpack.c.l.s4 1934713408
        %v1175 = vunpack.c.0.s8 %v1174
        %v1176 = vlaneseq
        %v1177 = vshrl.u32 %v1176, 7
        %v1178 = vsub.s32 %v1175, %v1177
        %v1179 = vrot.slane %v1171, %v1178
        %v1181 = vunpack.c.l.s4 1934713408
        %v1182 = vunpack.c.0.s8 %v1181
        %v1183 = vlaneseq
        %v1184 = vshrl.u32 %v1183, 7
        %v1185 = vsub.s32 %v1182, %v1184
        %v1186 = vrot.slane %v1172, %v1185
        %v1187 = vcombine.high %v1163, 0.0
        %v1188 = vcombine.high %v1170, 0.0
        %v1189 = vcombine.high %v1179, 0.0
        %v1190 = vcombine.high %v1186, 0.0
        %v1191 = vcombine.low %v1163, %v1170
        %v1193 = vunpack.c.l.s4 1983009808
        %v1194 = vunpack.c.0.s8 %v1193
        %v1195 = vlaneseq
        %v1196 = vshrl.u32 %v1195, 7
        %v1197 = vsub.s32 %v1194, %v1196
        %v1198 = vrot.slane %v1191, %v1197
        %v1199 = vcombine.low %v1187, %v1188
        %v1201 = vunpack.c.l.s4 1983009808
        %v1202 = vunpack.c.0.s8 %v1201
        %v1203 = vlaneseq
        %v1204 = vshrl.u32 %v1203, 7
        %v1205 = vsub.s32 %v1202, %v1204
        %v1206 = vrot.slane %v1199, %v1205
        %v1207 = vcombine.low %v1179, %v1186
        %v1209 = vunpack.c.l.s4 1983009808
        %v1210 = vunpack.c.0.s8 %v1209
        %v1211 = vlaneseq
        %v1212 = vshrl.u32 %v1211, 7
        %v1213 = vsub.s32 %v1210, %v1212
        %v1214 = vrot.slane %v1207, %v1213
        %v1215 = vcombine.low %v1189, %v1190
        %v1217 = vunpack.c.l.s4 1983009808
        %v1218 = vunpack.c.0.s8 %v1217
        %v1219 = vlaneseq
        %v1220 = vshrl.u32 %v1219, 7
        %v1221 = vsub.s32 %v1218, %v1220
        %v1222 = vrot.slane %v1215, %v1221
        %v1223 = vcombine.low %v1198, %v1206
        %v1224 = vcombine.high %v1198, %v1206
        %v1226 = vunpack.c.l.s4 1934713408
        %v1227 = vunpack.c.0.s8 %v1226
        %v1228 = vlaneseq
        %v1229 = vshrl.u32 %v1228, 7
        %v1230 = vsub.s32 %v1227, %v1229
        %v1231 = vrot.slane %v1223, %v1230
        %v1233 = vunpack.c.l.s4 1934713408
        %v1234 = vunpack.c.0.s8 %v1233
        %v1235 = vlaneseq
        %v1236 = vshrl.u32 %v1235, 7
        %v1237 = vsub.s32 %v1234, %v1236
        %v1238 = vrot.slane %v1224, %v1237
        %v1239 = vcombine.low %v1214, %v1222
        %v1240 = vcombine.high %v1214, %v1222
        %v1242 = vunpack.c.l.s4 1934713408
        %v1243 = vunpack.c.0.s8 %v1242
        %v1244 = vlaneseq
        %v1245 = vshrl.u32 %v1244, 7
        %v1246 = vsub.s32 %v1243, %v1245
        %v1247 = vrot.slane %v1239, %v1246
        %v1249 = vunpack.c.l.s4 1934713408
        %v1250 = vunpack.c.0.s8 %v1249
        %v1251 = vlaneseq
        %v1252 = vshrl.u32 %v1251, 7
        %v1253 = vsub.s32 %v1250, %v1252
        %v1254 = vrot.slane %v1240, %v1253
        %v1255 = vcombine.low %v1231, %v1247
        %v1256 = vcombine.high %v1231, %v1247
        %v1257 = vcombine.low %v1238, %v1254
        %v1258 = vcombine.high %v1238, %v1254
        %v1259 = vpack.c.bf16 %v1255, %v1255
        %v1260 = vpack.c.bf16 %v1256, %v1256
        %v1261 = vpack.c.bf16 %v1257, %v1257
        %v1262 = vpack.c.bf16 %v1258, %v1258
        %v1263 = vld [vmem:[%s586] sm:$0x1]
        %v1264 = vld [vmem:[#allocation2] sm:$0xf]
        %v1265 = vld [vmem:[#allocation2 + $0x4] sm:$0xf]
        %v1266 = vld [vmem:[#allocation2 + $0x8] sm:$0xf]
        %v1267 = vld [vmem:[#allocation2 + $0xc] sm:$0xf]
        %v1269 = vlaneseq
        %v1270 = vshrl.u32 %v1269, 7
        %v1271 = vsub.s32 0, %v1270
        %v1272 = vrot.slane %v1263, %v1271
        %vm1274 = vcmask 64512
        %v1276 = vsel %vm1274, %v1259, 0
        %v1279 = vsel %vm1274, %v1264, 0
        %1281 = vmatprep.subr.bf16.mxu0 0
        %1282 = vmatpush1.bf16.xpose.msra.mxu0 %v1279
        %1283 = vmatprep.subr.bf16.mxu0 0
        %1284 = vmatpush1.bf16.xpose.msra.mxu0 0
        %1285 = vmatprep.subr.bf16.mxu0 0
        %1286 = vmatpush1.bf16.xpose.msra.mxu0 0
        %1287 = vmatprep.subr.bf16.mxu0 0
        %1288 = vmatpush1.bf16.xpose.msra.mxu0 0
        %1289 = vmatprep.subr.bf16.mxu0 0
        %1290 = vmatpush1.bf16.xpose.msra.mxu0 0
        %1291 = vmatprep.subr.bf16.mxu0 0
        %1292 = vmatpush1.bf16.xpose.msra.mxu0 0
        %1293 = vmatprep.subr.bf16.mxu0 0
        %1294 = vmatpush1.bf16.xpose.msra.mxu0 0
        %1295 = vmatprep.subr.bf16.mxu0 0
        %1296 = vmatpush1.bf16.xpose.msra.mxu0 0
        %1297 = vmatprep.subr.bf16.mxu0 0
        %1298 = vmatpush1.bf16.xpose.msra.mxu0 0
        %1299 = vmatprep.subr.bf16.mxu0 0
        %1300 = vmatpush1.bf16.xpose.msra.mxu0 0
        %1301 = vmatprep.subr.bf16.mxu0 0
        %1302 = vmatpush1.bf16.xpose.msra.mxu0 0
        %1303 = vmatprep.subr.bf16.mxu0 0
        %1304 = vmatpush1.bf16.xpose.msra.mxu0 0
        %1305 = vmatprep.subr.bf16.mxu0 0
        %1306 = vmatpush1.bf16.xpose.msra.mxu0 0
        %1307 = vmatprep.subr.bf16.mxu0 0
        %1308 = vmatpush1.bf16.xpose.msra.mxu0 0
        %1309 = vmatprep.subr.bf16.mxu0 0
        %1310 = vmatpush1.bf16.xpose.msra.mxu0 0
        %1311 = vmatprep.subr.bf16.mxu0 0
        %1312 = vmatpush1.bf16.xpose.msra.mxu0 0
        %1313 = vmatprep.mubr.bf16.mxu0 0
        %1314 = vmatmul.mubr.bf16.gmra.mrb[0].mxu0 %v1276
        %v1315 = vpop.f32.mrb[0].mxu0
        %v1316 = vadd.f32 %v1272, %v1315
        %v1317 = vpop.f32.mrb[0].mxu0
        %v1318 = vpop.f32.mrb[0].mxu0
        %v1319 = vpop.f32.mrb[0].mxu0
        %1320 = vdwg.mxu0
        %v1322 = vsel %vm1274, %v1260, 0
        %v1325 = vsel %vm1274, %v1265, 0
        %1327 = vmatprep.subr.bf16.mxu0 0
        %1328 = vmatpush1.bf16.xpose.msra.mxu0 %v1325
        %1329 = vmatprep.subr.bf16.mxu0 0
        %1330 = vmatpush1.bf16.xpose.msra.mxu0 0
        %1331 = vmatprep.subr.bf16.mxu0 0
        %1332 = vmatpush1.bf16.xpose.msra.mxu0 0
        %1333 = vmatprep.subr.bf16.mxu0 0
        %1334 = vmatpush1.bf16.xpose.msra.mxu0 0
        %1335 = vmatprep.subr.bf16.mxu0 0
        %1336 = vmatpush1.bf16.xpose.msra.mxu0 0
        %1337 = vmatprep.subr.bf16.mxu0 0
        %1338 = vmatpush1.bf16.xpose.msra.mxu0 0
        %1339 = vmatprep.subr.bf16.mxu0 0
        %1340 = vmatpush1.bf16.xpose.msra.mxu0 0
        %1341 = vmatprep.subr.bf16.mxu0 0
        %1342 = vmatpush1.bf16.xpose.msra.mxu0 0
        %1343 = vmatprep.subr.bf16.mxu0 0
        %1344 = vmatpush1.bf16.xpose.msra.mxu0 0
        %1345 = vmatprep.subr.bf16.mxu0 0
        %1346 = vmatpush1.bf16.xpose.msra.mxu0 0
        %1347 = vmatprep.subr.bf16.mxu0 0
        %1348 = vmatpush1.bf16.xpose.msra.mxu0 0
        %1349 = vmatprep.subr.bf16.mxu0 0
        %1350 = vmatpush1.bf16.xpose.msra.mxu0 0
        %1351 = vmatprep.subr.bf16.mxu0 0
        %1352 = vmatpush1.bf16.xpose.msra.mxu0 0
        %1353 = vmatprep.subr.bf16.mxu0 0
        %1354 = vmatpush1.bf16.xpose.msra.mxu0 0
        %1355 = vmatprep.subr.bf16.mxu0 0
        %1356 = vmatpush1.bf16.xpose.msra.mxu0 0
        %1357 = vmatprep.subr.bf16.mxu0 0
        %1358 = vmatpush1.bf16.xpose.msra.mxu0 0
        %1359 = vmatprep.mubr.bf16.mxu0 0
        %1360 = vmatmul.mubr.bf16.gmra.mrb[0].mxu0 %v1322
        %v1361 = vpop.f32.mrb[0].mxu0
        %v1362 = vadd.f32 %v1272, %v1361
        %v1363 = vpop.f32.mrb[0].mxu0
        %v1364 = vpop.f32.mrb[0].mxu0
        %v1365 = vpop.f32.mrb[0].mxu0
        %1366 = vdwg.mxu0
        %v1368 = vsel %vm1274, %v1261, 0
        %v1371 = vsel %vm1274, %v1266, 0
        %1373 = vmatprep.subr.bf16.mxu0 0
        %1374 = vmatpush1.bf16.xpose.msra.mxu0 %v1371
        %1375 = vmatprep.subr.bf16.mxu0 0
        %1376 = vmatpush1.bf16.xpose.msra.mxu0 0
        %1377 = vmatprep.subr.bf16.mxu0 0
        %1378 = vmatpush1.bf16.xpose.msra.mxu0 0
        %1379 = vmatprep.subr.bf16.mxu0 0
        %1380 = vmatpush1.bf16.xpose.msra.mxu0 0
        %1381 = vmatprep.subr.bf16.mxu0 0
        %1382 = vmatpush1.bf16.xpose.msra.mxu0 0
        %1383 = vmatprep.subr.bf16.mxu0 0
        %1384 = vmatpush1.bf16.xpose.msra.mxu0 0
        %1385 = vmatprep.subr.bf16.mxu0 0
        %1386 = vmatpush1.bf16.xpose.msra.mxu0 0
        %1387 = vmatprep.subr.bf16.mxu0 0
        %1388 = vmatpush1.bf16.xpose.msra.mxu0 0
        %1389 = vmatprep.subr.bf16.mxu0 0
        %1390 = vmatpush1.bf16.xpose.msra.mxu0 0
        %1391 = vmatprep.subr.bf16.mxu0 0
        %1392 = vmatpush1.bf16.xpose.msra.mxu0 0
        %1393 = vmatprep.subr.bf16.mxu0 0
        %1394 = vmatpush1.bf16.xpose.msra.mxu0 0
        %1395 = vmatprep.subr.bf16.mxu0 0
        %1396 = vmatpush1.bf16.xpose.msra.mxu0 0
        %1397 = vmatprep.subr.bf16.mxu0 0
        %1398 = vmatpush1.bf16.xpose.msra.mxu0 0
        %1399 = vmatprep.subr.bf16.mxu0 0
        %1400 = vmatpush1.bf16.xpose.msra.mxu0 0
        %1401 = vmatprep.subr.bf16.mxu0 0
        %1402 = vmatpush1.bf16.xpose.msra.mxu0 0
        %1403 = vmatprep.subr.bf16.mxu0 0
        %1404 = vmatpush1.bf16.xpose.msra.mxu0 0
        %1405 = vmatprep.mubr.bf16.mxu0 0
        %1406 = vmatmul.mubr.bf16.gmra.mrb[0].mxu0 %v1368
        %v1407 = vpop.f32.mrb[0].mxu0
        %v1408 = vadd.f32 %v1272, %v1407
        %v1409 = vpop.f32.mrb[0].mxu0
        %v1410 = vpop.f32.mrb[0].mxu0
        %v1411 = vpop.f32.mrb[0].mxu0
        %1412 = vdwg.mxu0
        %v1414 = vsel %vm1274, %v1262, 0
        %v1417 = vsel %vm1274, %v1267, 0
        %1419 = vmatprep.subr.bf16.mxu0 0
        %1420 = vmatpush1.bf16.xpose.msra.mxu0 %v1417
        %1421 = vmatprep.subr.bf16.mxu0 0
        %1422 = vmatpush1.bf16.xpose.msra.mxu0 0
        %1423 = vmatprep.subr.bf16.mxu0 0
        %1424 = vmatpush1.bf16.xpose.msra.mxu0 0
        %1425 = vmatprep.subr.bf16.mxu0 0
        %1426 = vmatpush1.bf16.xpose.msra.mxu0 0
        %1427 = vmatprep.subr.bf16.mxu0 0
        %1428 = vmatpush1.bf16.xpose.msra.mxu0 0
        %1429 = vmatprep.subr.bf16.mxu0 0
        %1430 = vmatpush1.bf16.xpose.msra.mxu0 0
        %1431 = vmatprep.subr.bf16.mxu0 0
        %1432 = vmatpush1.bf16.xpose.msra.mxu0 0
        %1433 = vmatprep.subr.bf16.mxu0 0
        %1434 = vmatpush1.bf16.xpose.msra.mxu0 0
        %1435 = vmatprep.subr.bf16.mxu0 0
        %1436 = vmatpush1.bf16.xpose.msra.mxu0 0
        %1437 = vmatprep.subr.bf16.mxu0 0
        %1438 = vmatpush1.bf16.xpose.msra.mxu0 0
        %1439 = vmatprep.subr.bf16.mxu0 0
        %1440 = vmatpush1.bf16.xpose.msra.mxu0 0
        %1441 = vmatprep.subr.bf16.mxu0 0
        %1442 = vmatpush1.bf16.xpose.msra.mxu0 0
        %1443 = vmatprep.subr.bf16.mxu0 0
        %1444 = vmatpush1.bf16.xpose.msra.mxu0 0
        %1445 = vmatprep.subr.bf16.mxu0 0
        %1446 = vmatpush1.bf16.xpose.msra.mxu0 0
        %1447 = vmatprep.subr.bf16.mxu0 0
        %1448 = vmatpush1.bf16.xpose.msra.mxu0 0
        %1449 = vmatprep.subr.bf16.mxu0 0
        %1450 = vmatpush1.bf16.xpose.msra.mxu0 0
        %1451 = vmatprep.mubr.bf16.mxu0 0
        %1452 = vmatmul.mubr.bf16.gmra.mrb[0].mxu0 %v1414
        %v1453 = vpop.f32.mrb[0].mxu0
        %v1454 = vadd.f32 %v1272, %v1453
        %v1455 = vpop.f32.mrb[0].mxu0
        %v1456 = vpop.f32.mrb[0].mxu0
        %v1457 = vpop.f32.mrb[0].mxu0
        %1458 = vdwg.mxu0
        %v1459 = vsel %vm1274, %v1316, -inf
        %1460 = vmax.xlane.f32.xlu0 %v1459
        %v1461 = vpop.xlane.xlu0 %1460
        %v1462 = vsel %vm1274, %v1362, -inf
        %1463 = vmax.xlane.f32.xlu0 %v1462
        %v1464 = vpop.xlane.xlu0 %1463
        %v1465 = vsel %vm1274, %v1408, -inf
        %1466 = vmax.xlane.f32.xlu0 %v1465
        %v1467 = vpop.xlane.xlu0 %1466
        %v1468 = vsel %vm1274, %v1454, -inf
        %1469 = vmax.xlane.f32.xlu0 %v1468
        %v1470 = vpop.xlane.xlu0 %1469
        %v1471 = vsub.f32 %v1316, %v1461
        %v1472 = vsub.f32 %v1362, %v1464
        %v1473 = vsub.f32 %v1408, %v1467
        %v1474 = vsub.f32 %v1454, %v1470
        %v1475 = vmul.f32 %v1471, 1.442695
        %v1476 = vpow.pop %v1475
        %v1477 = vmul.f32 %v1472, 1.442695
        %v1478 = vpow.pop %v1477
        %v1479 = vmul.f32 %v1473, 1.442695
        %v1480 = vpow.pop %v1479
        %v1481 = vmul.f32 %v1474, 1.442695
        %v1482 = vpow.pop %v1481
        %v1483 = vsel %vm1274, %v1476, 0.0
        %1484 = vadd.xlane.f32.xlu0 %v1483
        %v1485 = vpop.xlane.xlu0 %1484
        %v1486 = vsel %vm1274, %v1478, 0.0
        %1487 = vadd.xlane.f32.xlu0 %v1486
        %v1488 = vpop.xlane.xlu0 %1487
        %v1489 = vsel %vm1274, %v1480, 0.0
        %1490 = vadd.xlane.f32.xlu0 %v1489
        %v1491 = vpop.xlane.xlu0 %1490
        %v1492 = vsel %vm1274, %v1482, 0.0
        %1493 = vadd.xlane.f32.xlu0 %v1492
        %v1494 = vpop.xlane.xlu0 %1493
        %v1495 = vrcp.pop %v1485
        %v1496 = vrcp.pop %v1488
        %v1497 = vrcp.pop %v1491
        %v1498 = vrcp.pop %v1494
        %v1499 = vmul.f32 %v1476, %v1495
        %v1500 = vmul.f32 %v1478, %v1496
        %v1501 = vmul.f32 %v1480, %v1497
        %v1502 = vmul.f32 %v1482, %v1498
        %v1503 = vpack.c.bf16 %v1499, %v1499
        %v1504 = vpack.c.bf16 %v1500, %v1500
        %v1505 = vpack.c.bf16 %v1501, %v1501
        %v1506 = vpack.c.bf16 %v1502, %v1502
        %v1507 = vld [vmem:[#allocation3] sm:$0xf]
        %v1508 = vld [vmem:[#allocation3 + $0x4] sm:$0xf]
        %v1509 = vld [vmem:[#allocation3 + $0x8] sm:$0xf]
        %v1510 = vld [vmem:[#allocation3 + $0xc] sm:$0xf]
        %v1512 = vsel %vm1274, %v1503, 0
        %vm1514 = vcmask 1043456
        %v1516 = vsel %vm1514, %v1507, 0
        %1518 = vmatprep.subr.bf16.mxu0 0
        %1519 = vmatpush1.bf16.msra.mxu0 %v1516
        %1520 = vmatprep.subr.bf16.mxu0 0
        %1521 = vmatpush1.bf16.msra.mxu0 0
        %1522 = vmatprep.subr.bf16.mxu0 0
        %1523 = vmatpush1.bf16.msra.mxu0 0
        %1524 = vmatprep.subr.bf16.mxu0 0
        %1525 = vmatpush1.bf16.msra.mxu0 0
        %1526 = vmatprep.subr.bf16.mxu0 0
        %1527 = vmatpush1.bf16.msra.mxu0 0
        %1528 = vmatprep.subr.bf16.mxu0 0
        %1529 = vmatpush1.bf16.msra.mxu0 0
        %1530 = vmatprep.subr.bf16.mxu0 0
        %1531 = vmatpush1.bf16.msra.mxu0 0
        %1532 = vmatprep.subr.bf16.mxu0 0
        %1533 = vmatpush1.bf16.msra.mxu0 0
        %1534 = vmatprep.subr.bf16.mxu0 0
        %1535 = vmatpush1.bf16.msra.mxu0 0
        %1536 = vmatprep.subr.bf16.mxu0 0
        %1537 = vmatpush1.bf16.msra.mxu0 0
        %1538 = vmatprep.subr.bf16.mxu0 0
        %1539 = vmatpush1.bf16.msra.mxu0 0
        %1540 = vmatprep.subr.bf16.mxu0 0
        %1541 = vmatpush1.bf16.msra.mxu0 0
        %1542 = vmatprep.subr.bf16.mxu0 0
        %1543 = vmatpush1.bf16.msra.mxu0 0
        %1544 = vmatprep.subr.bf16.mxu0 0
        %1545 = vmatpush1.bf16.msra.mxu0 0
        %1546 = vmatprep.subr.bf16.mxu0 0
        %1547 = vmatpush1.bf16.msra.mxu0 0
        %1548 = vmatprep.subr.bf16.mxu0 0
        %1549 = vmatpush1.bf16.msra.mxu0 0
        %1550 = vmatprep.mubr.bf16.mxu0 0
        %1551 = vmatmul.mubr.bf16.gmra.mrb[0].mxu0 %v1512
        %v1552 = vpop.f32.mrb[0].mxu0
        %v1553 = vadd.f32 0.0, %v1552
        %v1554 = vpop.f32.mrb[0].mxu0
        %v1555 = vpop.f32.mrb[0].mxu0
        %v1556 = vpop.f32.mrb[0].mxu0
        %1557 = vdwg.mxu0
        %v1559 = vsel %vm1274, %v1504, 0
        %v1562 = vsel %vm1514, %v1508, 0
        %1564 = vmatprep.subr.bf16.mxu0 0
        %1565 = vmatpush1.bf16.msra.mxu0 %v1562
        %1566 = vmatprep.subr.bf16.mxu0 0
        %1567 = vmatpush1.bf16.msra.mxu0 0
        %1568 = vmatprep.subr.bf16.mxu0 0
        %1569 = vmatpush1.bf16.msra.mxu0 0
        %1570 = vmatprep.subr.bf16.mxu0 0
        %1571 = vmatpush1.bf16.msra.mxu0 0
        %1572 = vmatprep.subr.bf16.mxu0 0
        %1573 = vmatpush1.bf16.msra.mxu0 0
        %1574 = vmatprep.subr.bf16.mxu0 0
        %1575 = vmatpush1.bf16.msra.mxu0 0
        %1576 = vmatprep.subr.bf16.mxu0 0
        %1577 = vmatpush1.bf16.msra.mxu0 0
        %1578 = vmatprep.subr.bf16.mxu0 0
        %1579 = vmatpush1.bf16.msra.mxu0 0
        %1580 = vmatprep.subr.bf16.mxu0 0
        %1581 = vmatpush1.bf16.msra.mxu0 0
        %1582 = vmatprep.subr.bf16.mxu0 0
        %1583 = vmatpush1.bf16.msra.mxu0 0
        %1584 = vmatprep.subr.bf16.mxu0 0
        %1585 = vmatpush1.bf16.msra.mxu0 0
        %1586 = vmatprep.subr.bf16.mxu0 0
        %1587 = vmatpush1.bf16.msra.mxu0 0
        %1588 = vmatprep.subr.bf16.mxu0 0
        %1589 = vmatpush1.bf16.msra.mxu0 0
        %1590 = vmatprep.subr.bf16.mxu0 0
        %1591 = vmatpush1.bf16.msra.mxu0 0
        %1592 = vmatprep.subr.bf16.mxu0 0
        %1593 = vmatpush1.bf16.msra.mxu0 0
        %1594 = vmatprep.subr.bf16.mxu0 0
        %1595 = vmatpush1.bf16.msra.mxu0 0
        %1596 = vmatprep.mubr.bf16.mxu0 0
        %1597 = vmatmul.mubr.bf16.gmra.mrb[0].mxu0 %v1559
        %v1598 = vpop.f32.mrb[0].mxu0
        %v1599 = vadd.f32 0.0, %v1598
        %v1600 = vpop.f32.mrb[0].mxu0
        %v1601 = vpop.f32.mrb[0].mxu0
        %v1602 = vpop.f32.mrb[0].mxu0
        %1603 = vdwg.mxu0
        %v1605 = vsel %vm1274, %v1505, 0
        %v1608 = vsel %vm1514, %v1509, 0
        %1610 = vmatprep.subr.bf16.mxu0 0
        %1611 = vmatpush1.bf16.msra.mxu0 %v1608
        %1612 = vmatprep.subr.bf16.mxu0 0
        %1613 = vmatpush1.bf16.msra.mxu0 0
        %1614 = vmatprep.subr.bf16.mxu0 0
        %1615 = vmatpush1.bf16.msra.mxu0 0
        %1616 = vmatprep.subr.bf16.mxu0 0
        %1617 = vmatpush1.bf16.msra.mxu0 0
        %1618 = vmatprep.subr.bf16.mxu0 0
        %1619 = vmatpush1.bf16.msra.mxu0 0
        %1620 = vmatprep.subr.bf16.mxu0 0
        %1621 = vmatpush1.bf16.msra.mxu0 0
        %1622 = vmatprep.subr.bf16.mxu0 0
        %1623 = vmatpush1.bf16.msra.mxu0 0
        %1624 = vmatprep.subr.bf16.mxu0 0
        %1625 = vmatpush1.bf16.msra.mxu0 0
        %1626 = vmatprep.subr.bf16.mxu0 0
        %1627 = vmatpush1.bf16.msra.mxu0 0
        %1628 = vmatprep.subr.bf16.mxu0 0
        %1629 = vmatpush1.bf16.msra.mxu0 0
        %1630 = vmatprep.subr.bf16.mxu0 0
        %1631 = vmatpush1.bf16.msra.mxu0 0
        %1632 = vmatprep.subr.bf16.mxu0 0
        %1633 = vmatpush1.bf16.msra.mxu0 0
        %1634 = vmatprep.subr.bf16.mxu0 0
        %1635 = vmatpush1.bf16.msra.mxu0 0
        %1636 = vmatprep.subr.bf16.mxu0 0
        %1637 = vmatpush1.bf16.msra.mxu0 0
        %1638 = vmatprep.subr.bf16.mxu0 0
        %1639 = vmatpush1.bf16.msra.mxu0 0
        %1640 = vmatprep.subr.bf16.mxu0 0
        %1641 = vmatpush1.bf16.msra.mxu0 0
        %1642 = vmatprep.mubr.bf16.mxu0 0
        %1643 = vmatmul.mubr.bf16.gmra.mrb[0].mxu0 %v1605
        %v1644 = vpop.f32.mrb[0].mxu0
        %v1645 = vadd.f32 0.0, %v1644
        %v1646 = vpop.f32.mrb[0].mxu0
        %v1647 = vpop.f32.mrb[0].mxu0
        %v1648 = vpop.f32.mrb[0].mxu0
        %1649 = vdwg.mxu0
        %v1651 = vsel %vm1274, %v1506, 0
        %v1654 = vsel %vm1514, %v1510, 0
        %1656 = vmatprep.subr.bf16.mxu0 0
        %1657 = vmatpush1.bf16.msra.mxu0 %v1654
        %1658 = vmatprep.subr.bf16.mxu0 0
        %1659 = vmatpush1.bf16.msra.mxu0 0
        %1660 = vmatprep.subr.bf16.mxu0 0
        %1661 = vmatpush1.bf16.msra.mxu0 0
        %1662 = vmatprep.subr.bf16.mxu0 0
        %1663 = vmatpush1.bf16.msra.mxu0 0
        %1664 = vmatprep.subr.bf16.mxu0 0
        %1665 = vmatpush1.bf16.msra.mxu0 0
        %1666 = vmatprep.subr.bf16.mxu0 0
        %1667 = vmatpush1.bf16.msra.mxu0 0
        %1668 = vmatprep.subr.bf16.mxu0 0
        %1669 = vmatpush1.bf16.msra.mxu0 0
        %1670 = vmatprep.subr.bf16.mxu0 0
        %1671 = vmatpush1.bf16.msra.mxu0 0
        %1672 = vmatprep.subr.bf16.mxu0 0
        %1673 = vmatpush1.bf16.msra.mxu0 0
        %1674 = vmatprep.subr.bf16.mxu0 0
        %1675 = vmatpush1.bf16.msra.mxu0 0
        %1676 = vmatprep.subr.bf16.mxu0 0
        %1677 = vmatpush1.bf16.msra.mxu0 0
        %1678 = vmatprep.subr.bf16.mxu0 0
        %1679 = vmatpush1.bf16.msra.mxu0 0
        %1680 = vmatprep.subr.bf16.mxu0 0
        %1681 = vmatpush1.bf16.msra.mxu0 0
        %1682 = vmatprep.subr.bf16.mxu0 0
        %1683 = vmatpush1.bf16.msra.mxu0 0
        %1684 = vmatprep.subr.bf16.mxu0 0
        %1685 = vmatpush1.bf16.msra.mxu0 0
        %1686 = vmatprep.subr.bf16.mxu0 0
        %1687 = vmatpush1.bf16.msra.mxu0 0
        %1688 = vmatprep.mubr.bf16.mxu0 0
        %1689 = vmatmul.mubr.bf16.gmra.mrb[0].mxu0 %v1651
        %v1690 = vpop.f32.mrb[0].mxu0
        %v1691 = vadd.f32 0.0, %v1690
        %v1692 = vpop.f32.mrb[0].mxu0
        %v1693 = vpop.f32.mrb[0].mxu0
        %v1694 = vpop.f32.mrb[0].mxu0
        %1695 = vdwg.mxu0
        %v1696 = vcombine.low %v1553, %v1645
        %v1697 = vcombine.high %v1553, %v1645
        %v1699 = vunpack.c.l.s4 1983009808
        %v1700 = vunpack.c.0.s8 %v1699
        %v1701 = vlaneseq
        %v1702 = vshrl.u32 %v1701, 7
        %v1703 = vsub.s32 %v1700, %v1702
        %v1704 = vrot.slane %v1696, %v1703
        %v1706 = vunpack.c.l.s4 1983009808
        %v1707 = vunpack.c.0.s8 %v1706
        %v1708 = vlaneseq
        %v1709 = vshrl.u32 %v1708, 7
        %v1710 = vsub.s32 %v1707, %v1709
        %v1711 = vrot.slane %v1697, %v1710
        %v1712 = vcombine.low %v1599, %v1691
        %v1713 = vcombine.high %v1599, %v1691
        %v1715 = vunpack.c.l.s4 1983009808
        %v1716 = vunpack.c.0.s8 %v1715
        %v1717 = vlaneseq
        %v1718 = vshrl.u32 %v1717, 7
        %v1719 = vsub.s32 %v1716, %v1718
        %v1720 = vrot.slane %v1712, %v1719
        %v1722 = vunpack.c.l.s4 1983009808
        %v1723 = vunpack.c.0.s8 %v1722
        %v1724 = vlaneseq
        %v1725 = vshrl.u32 %v1724, 7
        %v1726 = vsub.s32 %v1723, %v1725
        %v1727 = vrot.slane %v1713, %v1726
        %v1728 = vcombine.low %v1704, %v1720
        %v1729 = vcombine.high %v1704, %v1720
        %v1731 = vunpack.c.l.s4 1934713408
        %v1732 = vunpack.c.0.s8 %v1731
        %v1733 = vlaneseq
        %v1734 = vshrl.u32 %v1733, 7
        %v1735 = vsub.s32 %v1732, %v1734
        %v1736 = vrot.slane %v1728, %v1735
        %v1738 = vunpack.c.l.s4 1934713408
        %v1739 = vunpack.c.0.s8 %v1738
        %v1740 = vlaneseq
        %v1741 = vshrl.u32 %v1740, 7
        %v1742 = vsub.s32 %v1739, %v1741
        %v1743 = vrot.slane %v1729, %v1742
        %v1744 = vcombine.low %v1711, %v1727
        %v1745 = vcombine.high %v1711, %v1727
        %v1747 = vunpack.c.l.s4 1934713408
        %v1748 = vunpack.c.0.s8 %v1747
        %v1749 = vlaneseq
        %v1750 = vshrl.u32 %v1749, 7
        %v1751 = vsub.s32 %v1748, %v1750
        %v1752 = vrot.slane %v1744, %v1751
        %v1754 = vunpack.c.l.s4 1934713408
        %v1755 = vunpack.c.0.s8 %v1754
        %v1756 = vlaneseq
        %v1757 = vshrl.u32 %v1756, 7
        %v1758 = vsub.s32 %v1755, %v1757
        %v1759 = vrot.slane %v1745, %v1758
        %v1760 = vcombine.high %v1736, 0.0
        %v1761 = vcombine.high %v1743, 0.0
        %v1762 = vcombine.high %v1752, 0.0
        %v1763 = vcombine.high %v1759, 0.0
        %v1764 = vcombine.low %v1736, %v1743
        %v1766 = vunpack.c.l.s4 1983009808
        %v1767 = vunpack.c.0.s8 %v1766
        %v1768 = vlaneseq
        %v1769 = vshrl.u32 %v1768, 7
        %v1770 = vsub.s32 %v1767, %v1769
        %v1771 = vrot.slane %v1764, %v1770
        %v1772 = vcombine.low %v1760, %v1761
        %v1774 = vunpack.c.l.s4 1983009808
        %v1775 = vunpack.c.0.s8 %v1774
        %v1776 = vlaneseq
        %v1777 = vshrl.u32 %v1776, 7
        %v1778 = vsub.s32 %v1775, %v1777
        %v1779 = vrot.slane %v1772, %v1778
        %v1780 = vcombine.low %v1752, %v1759
        %v1782 = vunpack.c.l.s4 1983009808
        %v1783 = vunpack.c.0.s8 %v1782
        %v1784 = vlaneseq
        %v1785 = vshrl.u32 %v1784, 7
        %v1786 = vsub.s32 %v1783, %v1785
        %v1787 = vrot.slane %v1780, %v1786
        %v1788 = vcombine.low %v1762, %v1763
        %v1790 = vunpack.c.l.s4 1983009808
        %v1791 = vunpack.c.0.s8 %v1790
        %v1792 = vlaneseq
        %v1793 = vshrl.u32 %v1792, 7
        %v1794 = vsub.s32 %v1791, %v1793
        %v1795 = vrot.slane %v1788, %v1794
        %v1796 = vcombine.low %v1771, %v1779
        %v1797 = vcombine.high %v1771, %v1779
        %v1799 = vunpack.c.l.s4 1934713408
        %v1800 = vunpack.c.0.s8 %v1799
        %v1801 = vlaneseq
        %v1802 = vshrl.u32 %v1801, 7
        %v1803 = vsub.s32 %v1800, %v1802
        %v1804 = vrot.slane %v1796, %v1803
        %v1806 = vunpack.c.l.s4 1934713408
        %v1807 = vunpack.c.0.s8 %v1806
        %v1808 = vlaneseq
        %v1809 = vshrl.u32 %v1808, 7
        %v1810 = vsub.s32 %v1807, %v1809
        %v1811 = vrot.slane %v1797, %v1810
        %v1812 = vcombine.low %v1787, %v1795
        %v1813 = vcombine.high %v1787, %v1795
        %v1815 = vunpack.c.l.s4 1934713408
        %v1816 = vunpack.c.0.s8 %v1815
        %v1817 = vlaneseq
        %v1818 = vshrl.u32 %v1817, 7
        %v1819 = vsub.s32 %v1816, %v1818
        %v1820 = vrot.slane %v1812, %v1819
        %v1822 = vunpack.c.l.s4 1934713408
        %v1823 = vunpack.c.0.s8 %v1822
        %v1824 = vlaneseq
        %v1825 = vshrl.u32 %v1824, 7
        %v1826 = vsub.s32 %v1823, %v1825
        %v1827 = vrot.slane %v1813, %v1826
        %v1828 = vcombine.low %v1804, %v1820
        %v1829 = vcombine.high %v1804, %v1820
        %v1830 = vcombine.low %v1811, %v1827
        %v1831 = vcombine.high %v1811, %v1827
        %1833 = vrot.lane.b32.xlu0 %v1829, 8
        %v1834 = vpop.permute.xlu0 %1833
        %1837 = vrot.lane.b32.xlu0 %v1830, 16
        %v1838 = vpop.permute.xlu0 %1837
        %1841 = vrot.lane.b32.xlu0 %v1831, 24
        %v1842 = vpop.permute.xlu0 %1841
        %v1844 = vsel %vm1274, %v1828, %v1834
        %vm1845 = vcmask 130048
        %v1846 = vsel %vm1845, %v1844, %v1838
        %vm1847 = vcmask 195584
        %v1848 = vsel %vm1847, %v1846, %v1842
        %v1849 = vpack.c.bf16 %v1848, %v1848
        %v1850 = vld [vmem:[%s9] sm:$0xf]
        %v1851 = vld [vmem:[%s9 + $0x4] sm:$0xf]
        %v1852 = vld [vmem:[%s9 + $0x8] sm:$0xf]
        %v1853 = vld [vmem:[%s9 + $0xc] sm:$0xf]
        %v1854 = vld [vmem:[%s10] sm:$0x1]
        %v1856 = vlaneseq
        %v1857 = vshrl.u32 %v1856, 7
        %v1858 = vsub.s32 0, %v1857
        %v1859 = vrot.slane %v1854, %v1858
        %v1865 = vunpack.c.l.b16 %v1850
        %v1866 = vunpack.c.l.b16 %v1851
        %v1867 = vunpack.c.l.b16 %v1852
        %v1868 = vunpack.c.l.b16 %v1853
        %v1869 = vpack.c.b16 %v1866, %v1865
        %v1870 = vpack.c.b16 %v1868, %v1867
        %v1874 = vsel %vm1069, %v1849, 0
        %1876 = vmatprep.subr.bf16.mxu0 0
        %1877 = vmatpush1.bf16.msra.mxu0 %v1869
        %1878 = vmatprep.subr.bf16.mxu0 0
        %1879 = vmatpush1.bf16.msra.mxu0 %v1870
        %1880 = vmatprep.subr.bf16.mxu0 0
        %1881 = vmatpush1.bf16.msra.mxu0 0
        %1882 = vmatprep.subr.bf16.mxu0 0
        %1883 = vmatpush1.bf16.msra.mxu0 0
        %1884 = vmatprep.subr.bf16.mxu0 0
        %1885 = vmatpush1.bf16.msra.mxu0 0
        %1886 = vmatprep.subr.bf16.mxu0 0
        %1887 = vmatpush1.bf16.msra.mxu0 0
        %1888 = vmatprep.subr.bf16.mxu0 0
        %1889 = vmatpush1.bf16.msra.mxu0 0
        %1890 = vmatprep.subr.bf16.mxu0 0
        %1891 = vmatpush1.bf16.msra.mxu0 0
        %1892 = vmatprep.subr.bf16.mxu0 0
        %1893 = vmatpush1.bf16.msra.mxu0 0
        %1894 = vmatprep.subr.bf16.mxu0 0
        %1895 = vmatpush1.bf16.msra.mxu0 0
        %1896 = vmatprep.subr.bf16.mxu0 0
        %1897 = vmatpush1.bf16.msra.mxu0 0
        %1898 = vmatprep.subr.bf16.mxu0 0
        %1899 = vmatpush1.bf16.msra.mxu0 0
        %1900 = vmatprep.subr.bf16.mxu0 0
        %1901 = vmatpush1.bf16.msra.mxu0 0
        %1902 = vmatprep.subr.bf16.mxu0 0
        %1903 = vmatpush1.bf16.msra.mxu0 0
        %1904 = vmatprep.subr.bf16.mxu0 0
        %1905 = vmatpush1.bf16.msra.mxu0 0
        %1906 = vmatprep.subr.bf16.mxu0 0
        %1907 = vmatpush1.bf16.msra.mxu0 0
        %1908 = vmatprep.mubr.bf16.mxu0 0
        %1909 = vmatmul.mubr.bf16.gmra.mrb[0].mxu0 %v1874
        %v1910 = vpop.f32.mrb[0].mxu0
        %v1911 = vadd.f32 %v1859, %v1910
        %v1912 = vpop.f32.mrb[0].mxu0
        %v1913 = vpop.f32.mrb[0].mxu0
        %v1914 = vpop.f32.mrb[0].mxu0
        %1915 = vdwg.mxu0
        %v1916 = vunpack.c.l.bf16 %v1045
        %v1917 = vadd.f32 %v1911, %v1916
        %v1918 = vsel %vm1069, %v1917, 0.0
        %1919 = vadd.xlane.f32.xlu0 %v1918
        %v1920 = vpop.xlane.xlu0 %1919
        %v1921 = vrcp.pop 32.0
        %v1922 = vmul.f32 %v1920, %v1921
        %v1923 = vsub.f32 %v1917, %v1922
        %v1924 = vmul.f32 %v1923, %v1923
        %v1925 = vsel %vm1069, %v1924, 0.0
        %1926 = vadd.xlane.f32.xlu0 %v1925
        %v1927 = vpop.xlane.xlu0 %1926
        %v1928 = vmul.f32 %v1927, %v1921
        %v1929 = vadd.f32 %v1928, 1e-12
        %v1930 = vrsqrt.pop %v1929
        %v1931 = vmul.f32 %v1923, %v1930
        %v1932 = vld [vmem:[%s11] sm:$0x1]
        %v1934 = vlaneseq
        %v1935 = vshrl.u32 %v1934, 7
        %v1936 = vsub.s32 0, %v1935
        %v1937 = vrot.slane %v1932, %v1936
        %v1939 = vmul.f32 %v1931, %v1937
        %v1940 = vld [vmem:[%s12] sm:$0x1]
        %v1942 = vlaneseq
        %v1943 = vshrl.u32 %v1942, 7
        %v1944 = vsub.s32 0, %v1943
        %v1945 = vrot.slane %v1940, %v1944
        %v1947 = vadd.f32 %v1939, %v1945
        %1948 = vst.msk [vmem:[%s583] sm:$0xff] %vm1069, %v1947
        %s1949 = sand.u32 %s345, 1
        %s1950 = scalar_lea.sflag [#allocation6], %s1949
        %s1951 = sand.u32 %s345, 1
        %s1952 = smul.addr %s1951, 8
        %s1953 = scalar_lea.vmem [#allocation16], %s1952
        // Predicated region
        $region105: #{tpu_custom_call.1} parent=71 // pred_check
          %p1954 = pneg %p355
        $region106: #{tpu_custom_call.1} parent=71 // pred_check_branch
          %1956 = sbr.rel (%p1954) target = $region108
        $region107: #{tpu_custom_call.1} parent=71 // pred_region
          %s1958 = ssub.s32 128, 128
          %1959 = vsyncadd %s1950, %s1958
          %s1960 = sadd.s32 %s40, %s39
          %s1961 = smul.addr %s1960, 128
          %s1962 = scalar_lea.hbm %s13, %s1961
          %s1964 = sshll.u32 %s1953, 4
          %s1965 = int_to_ptr.vmem [resolvable:$true] %s1964
          %1967 = dma.vmem_to_hbm [thread:$0]  %s1965, 128, %s1962, %s1950
        $region108: #{tpu_custom_call.1} parent=71 // pred_fallthru
          _
      $region72: #{tpu_custom_call.1} parent=5 // pred_fallthru
        _
      %p1968 = scmp.le.s32.totalorder 2, %s30
      // Predicated region
      $region109: #{tpu_custom_call.1} parent=5 // pred_check
        %p1969 = pneg %p1968
      $region110: #{tpu_custom_call.1} parent=5 // pred_check_branch
        %1971 = sbr.rel (%p1969) target = $region112
      $region111: #{tpu_custom_call.1} parent=5 // pred_region
        %s1972 = ssub.s32 %s30, 2
        // Predicated region
        $region113: #{tpu_custom_call.1} parent=111 // pred_check
          %p1973 = pneg %p361
        $region114: #{tpu_custom_call.1} parent=111 // pred_check_branch
          %1975 = sbr.rel (%p1973) target = $region116
        $region115: #{tpu_custom_call.1} parent=111 // pred_region
          %s1976 = sand.u32 %s346, 1
          %s1977 = scalar_lea.sflag [#allocation6], %s1976
          %s1978 = sand.u32 %s346, 1
          %s1979 = smul.addr %s1978, 8
          %s1980 = scalar_lea.vmem [#allocation16], %s1979
          %1981 = dma.done %s1977, 128
        $region116: #{tpu_custom_call.1} parent=111 // pred_fallthru
          _
      $region112: #{tpu_custom_call.1} parent=5 // pred_fallthru
        _
    $region6: #{tpu_custom_call.1} parent=1 // loop_footer
      %s34 = sadd.s32 1, %s30
    $region7: #{tpu_custom_call.1} parent=1 // loop_footer_branch
      %29 = sbr.rel target = $region3
    $region8: #{tpu_custom_call.1} parent=1 // loop_exit
      _
    %1982 = vsyncpa [#allocation5], 1
    %s1983 = scalar_lea.sflag [#allocation5], 1
    %1984 = vsyncpa %s1983, 1
    %1985 = vsyncpa [#allocation8], 1
    %s1986 = scalar_lea.sflag [#allocation8], 1
    %1987 = vsyncpa %s1986, 1
    %1988 = vsyncpa [#allocation11], 1
    %1989 = vsyncpa [#allocation14], 1
    %1990 = vsyncpa [#allocation6], 1
    %s1991 = scalar_lea.sflag [#allocation6], 1
    %1992 = vsyncpa %s1991, 1

// kernel: tpu_custom_call.1
$region0: #{tpu_custom_call.1}
  #allocation0 [shape = 'u32[]', space=smem, size = 0x4, offset = 0x4, fixed_abs, tag = 'smem constant byte address 0x4 - core index']
  #allocation1 [shape = 'u32[144,128]{1,0:T(1,128)}', space=vmem, size = 0x12000, scoped, tag = 'internal scratch']
  #allocation2 [shape = 'bf16[4,8,8]{2,1,0:T(8,128)(2,1)}', space=vmem, size = 0x2000, scoped, tag = 'scratch operand']
  #allocation3 [shape = 'bf16[4,8,8]{2,1,0:T(8,128)(2,1)}', space=vmem, size = 0x2000, scoped, tag = 'scratch operand']
  %s0 = inlined_call_operand.hbm [shape: bf16[2,8,32], index: 0, kind: input, shape index: {}]
  %s1 = inlined_call_operand.hbm [shape: bf16[2,8,32], index: 1, kind: input, shape index: {}]
  %s2 = inlined_call_operand.vmem [shape: f32[2,1,1,8], index: 2, kind: input, shape index: {}]
  %s3 = inlined_call_operand.hbm [shape: bf16[32,32], index: 3, kind: input, shape index: {}]
  %s4 = inlined_call_operand.hbm [shape: f32[1,32], index: 4, kind: input, shape index: {}]
  %s5 = inlined_call_operand.vmem [shape: bf16[32,64], index: 5, kind: input, shape index: {}]
  %s6 = inlined_call_operand.hbm [shape: f32[1,64], index: 6, kind: input, shape index: {}]
  %s7 = inlined_call_operand.hbm [shape: bf16[32,64], index: 7, kind: input, shape index: {}]
  %s8 = inlined_call_operand.hbm [shape: f32[1,64], index: 8, kind: input, shape index: {}]
  %s9 = inlined_call_operand.vmem [shape: bf16[32,32], index: 9, kind: input, shape index: {}]
  %s10 = inlined_call_operand.vmem [shape: f32[1,32], index: 10, kind: input, shape index: {}]
  %s11 = inlined_call_operand.vmem [shape: f32[1,32], index: 11, kind: input, shape index: {}]
  %s12 = inlined_call_operand.vmem [shape: f32[1,32], index: 12, kind: input, shape index: {}]
  %s13 = inlined_call_operand.hbm [shape: f32[2,8,32], index: 13, kind: output, shape index: {}]
  %s14 = sld [smem:[#allocation0]]
  $region117: #{tpu_custom_call.1} parent=0
    _
  %s16 = ssub.s32 1, %s14
  %s17 = scalar_select 0, %s16, %s14
  $region1: #{tpu_custom_call.1} parent=0
    #allocation4 [shape = 'u8[4096]{0}', space=vmem, size = 0x1000, scoped, tag = 'input window, operand 0']
    #allocation5 [shape = 's32[2]{0}', space=sflag, size = 0x8, scoped, tag = 'scoped memory for tpu_custom_call.1']
    #allocation6 [shape = 's32[2]{0}', space=sflag, size = 0x8, scoped, tag = 'scoped memory for tpu_custom_call.1']
    #allocation7 [shape = 'u8[4096]{0}', space=vmem, size = 0x1000, scoped, tag = 'input window, operand 1']
    #allocation8 [shape = 's32[2]{0}', space=sflag, size = 0x8, scoped, tag = 'scoped memory for tpu_custom_call.1']
    #allocation9 [shape = 'u8[8192]{0}', space=vmem, size = 0x2000, scoped, tag = 'input window, operand 3, single buffered']
    #allocation10 [shape = 'u8[512]{0}', space=vmem, size = 0x400, scoped, tag = 'input window, operand 4, single buffered']
    #allocation11 [shape = 's32[1]{0}', space=sflag, size = 0x4, scoped, tag = 'scoped memory for tpu_custom_call.1']
    #allocation12 [shape = 'u8[512]{0}', space=vmem, size = 0x400, scoped, tag = 'input window, operand 6, single buffered']
    #allocation13 [shape = 'u8[8192]{0}', space=vmem, size = 0x2000, scoped, tag = 'input window, operand 7, single buffered']
    #allocation14 [shape = 's32[1]{0}', space=sflag, size = 0x4, scoped, tag = 'scoped memory for tpu_custom_call.1']
    #allocation15 [shape = 'u8[512]{0}', space=vmem, size = 0x400, scoped, tag = 'input window, operand 8, single buffered']
    #allocation16 [shape = 'u8[8192]{0}', space=vmem, size = 0x2000, scoped, tag = 'output window, operand 0']
    %18 = vsyncpa [#allocation5], 0
    %s19 = scalar_lea.sflag [#allocation5], 1
    %20 = vsyncpa %s19, 0
    %21 = vsyncpa [#allocation8], 0
    %s22 = scalar_lea.sflag [#allocation8], 1
    %23 = vsyncpa %s22, 0
    %24 = vsyncpa [#allocation11], 0
    %25 = vsyncpa [#allocation14], 0
    %26 = vsyncpa [#allocation6], 0
    %s27 = scalar_lea.sflag [#allocation6], 1
    %28 = vsyncpa %s27, 0
    loop: start=0, step=1, limit=4
    $region2: #{tpu_custom_call.1} parent=1 // loop_pre_header
      _
    $region3: #{tpu_custom_call.1} parent=1 // loop_header
      %s30 = sphi 0, %s34
      %p31 = scmp.ge.s32.totalorder %s30, 4
      %s37 = sphi 0, %s49
      %s38 = sphi 0, %s45
      %s39 = sphi 0, %s37
      %s40 = sphi 0, %s38
      %s41 = sphi 0, %s39
      %s42 = sphi 0, %s40
      %s52 = sphi 0, %s54
      %s55 = sphi 0, %s52
      %s56 = sphi 0, %s55
      %s72 = sphi 0, %s56
      %s78 = sphi 0, %s80
      %s81 = sphi 0, %s78
      %s82 = sphi 0, %s81
      %s98 = sphi 0, %s82
      %s104 = sphi 0, %s106
      %s107 = sphi 0, %s104
      %s108 = sphi 0, %s107
      %s124 = sphi 0, %s108
      %s128 = sphi 0, %s128
      %s130 = sphi 0, %s128
      %s131 = sphi 0, %s130
      %s145 = sphi 0, %s131
      %s149 = sphi 0, %s149
      %s151 = sphi 0, %s149
      %s152 = sphi 0, %s151
      %s166 = sphi 0, %s152
      %s170 = sphi 0, %s170
      %s172 = sphi 0, %s170
      %s173 = sphi 0, %s172
      %s187 = sphi 0, %s173
      %s191 = sphi 0, %s191
      %s193 = sphi 0, %s191
      %s194 = sphi 0, %s193
      %s208 = sphi 0, %s194
      %s212 = sphi 0, %s212
      %s214 = sphi 0, %s212
      %s215 = sphi 0, %s214
      %s229 = sphi 0, %s215
      %s233 = sphi 0, %s233
      %s235 = sphi 0, %s233
      %s236 = sphi 0, %s235
      %s250 = sphi 0, %s236
      %s254 = sphi 0, %s254
      %s256 = sphi 0, %s254
      %s257 = sphi 0, %s256
      %s271 = sphi 0, %s257
      %s275 = sphi 0, %s275
      %s277 = sphi 0, %s275
      %s278 = sphi 0, %s277
      %s292 = sphi 0, %s278
      %s296 = sphi 0, %s296
      %s298 = sphi 0, %s296
      %s299 = sphi 0, %s298
      %s313 = sphi 0, %s299
      %s317 = sphi 0, %s317
      %s319 = sphi 0, %s317
      %s320 = sphi 0, %s319
      %s334 = sphi 0, %s320
      %s342 = sphi 0, %s344
      %s345 = sphi 0, %s342
      %s346 = sphi 0, %s345
      %s362 = sphi 0, %s346
    $region4: #{tpu_custom_call.1} parent=1 // loop_header_branch
      %33 = sbr.rel (%p31) target = $region8
    $region5: #{tpu_custom_call.1} parent=1 // loop_body
      %s35 = ssub.s32 %s30, 1
      %s36 = ssub.s32 %s30, 2
      %s43 = sadd.s32 1, %s38
      %p44 = scmp.ge.s32.totalorder %s43, 1
      %s45 = scalar_select %p44, 0, %s43
      %s46 = sadd.s32 1, %s37
      %s47 = scalar_select %p44, %s46, %s37
      %p48 = scmp.ge.s32.totalorder %s47, 2
      %s49 = scalar_select %p48, 0, %s47
      %s50 = ssub.s32 %s37, %s49
      %p51 = scmp.eq.s32.totalorder %s50, 0
      %s53 = sadd.s32 %s52, 1
      %s54 = scalar_select %p51, %s52, %s53
      %p57 = pneg %p51
      %p58 = scmp.eq.s32.totalorder %s30, 1
      %p59 = por %p57, %p58
      %p60 = scmp.ne.s32.totalorder %s52, %s55
      %p61 = scmp.eq.s32.totalorder %s30, 0
      %p62 = por %p60, %p61
      %p63 = scmp.ne.s32.totalorder %s52, %s55
      %p64 = scmp.eq.s32.totalorder %s35, 1
      %p65 = por %p63, %p64
      %p66 = scmp.ne.s32.totalorder %s55, %s56
      %p67 = scmp.eq.s32.totalorder %s35, 0
      %p68 = por %p66, %p67
      %p69 = scmp.ne.s32.totalorder %s55, %s56
      %p70 = scmp.eq.s32.totalorder %s36, 1
      %p71 = por %p69, %p70
      %p73 = scmp.ne.s32.totalorder %s56, %s72
      %p74 = scmp.eq.s32.totalorder %s36, 0
      %p75 = por %p73, %p74
      %s76 = ssub.s32 %s37, %s49
      %p77 = scmp.eq.s32.totalorder %s76, 0
      %s79 = sadd.s32 %s78, 1
      %s80 = scalar_select %p77, %s78, %s79
      %p83 = pneg %p77
      %p84 = scmp.eq.s32.totalorder %s30, 1
      %p85 = por %p83, %p84
      %p86 = scmp.ne.s32.totalorder %s78, %s81
      %p87 = scmp.eq.s32.totalorder %s30, 0
      %p88 = por %p86, %p87
      %p89 = scmp.ne.s32.totalorder %s78, %s81
      %p90 = scmp.eq.s32.totalorder %s35, 1
      %p91 = por %p89, %p90
      %p92 = scmp.ne.s32.totalorder %s81, %s82
      %p93 = scmp.eq.s32.totalorder %s35, 0
      %p94 = por %p92, %p93
      %p95 = scmp.ne.s32.totalorder %s81, %s82
      %p96 = scmp.eq.s32.totalorder %s36, 1
      %p97 = por %p95, %p96
      %p99 = scmp.ne.s32.totalorder %s82, %s98
      %p100 = scmp.eq.s32.totalorder %s36, 0
      %p101 = por %p99, %p100
      %s102 = ssub.s32 %s37, %s49
      %p103 = scmp.eq.s32.totalorder %s102, 0
      %s105 = sadd.s32 %s104, 1
      %s106 = scalar_select %p103, %s104, %s105
      %p109 = pneg %p103
      %p110 = scmp.eq.s32.totalorder %s30, 1
      %p111 = por %p109, %p110
      %p112 = scmp.ne.s32.totalorder %s104, %s107
      %p113 = scmp.eq.s32.totalorder %s30, 0
      %p114 = por %p112, %p113
      %p115 = scmp.ne.s32.totalorder %s104, %s107
      %p116 = scmp.eq.s32.totalorder %s35, 1
      %p117 = por %p115, %p116
      %p118 = scmp.ne.s32.totalorder %s107, %s108
      %p119 = scmp.eq.s32.totalorder %s35, 0
      %p120 = por %p118, %p119
      %p121 = scmp.ne.s32.totalorder %s107, %s108
      %p122 = scmp.eq.s32.totalorder %s36, 1
      %p123 = por %p121, %p122
      %p125 = scmp.ne.s32.totalorder %s108, %s124
      %p126 = scmp.eq.s32.totalorder %s36, 0
      %p127 = por %p125, %p126
      %s129 = sadd.s32 %s128, 1
      %p132 = scmp.eq.s32.totalorder %s30, 1
      %p133 = scmp.ne.s32.totalorder %s128, %s130
      %p134 = scmp.eq.s32.totalorder %s30, 0
      %p135 = por %p133, %p134
      %p136 = scmp.ne.s32.totalorder %s128, %s130
      %p137 = scmp.eq.s32.totalorder %s35, 1
      %p138 = por %p136, %p137
      %p139 = scmp.ne.s32.totalorder %s130, %s131
      %p140 = scmp.eq.s32.totalorder %s35, 0
      %p141 = por %p139, %p140
      %p142 = scmp.ne.s32.totalorder %s130, %s131
      %p143 = scmp.eq.s32.totalorder %s36, 1
      %p144 = por %p142, %p143
      %p146 = scmp.ne.s32.totalorder %s131, %s145
      %p147 = scmp.eq.s32.totalorder %s36, 0
      %p148 = por %p146, %p147
      %s150 = sadd.s32 %s149, 1
      %p153 = scmp.eq.s32.totalorder %s30, 1
      %p154 = scmp.ne.s32.totalorder %s149, %s151
      %p155 = scmp.eq.s32.totalorder %s30, 0
      %p156 = por %p154, %p155
      %p157 = scmp.ne.s32.totalorder %s149, %s151
      %p158 = scmp.eq.s32.totalorder %s35, 1
      %p159 = por %p157, %p158
      %p160 = scmp.ne.s32.totalorder %s151, %s152
      %p161 = scmp.eq.s32.totalorder %s35, 0
      %p162 = por %p160, %p161
      %p163 = scmp.ne.s32.totalorder %s151, %s152
      %p164 = scmp.eq.s32.totalorder %s36, 1
      %p165 = por %p163, %p164
      %p167 = scmp.ne.s32.totalorder %s152, %s166
      %p168 = scmp.eq.s32.totalorder %s36, 0
      %p169 = por %p167, %p168
      %s171 = sadd.s32 %s170, 1
      %p174 = scmp.eq.s32.totalorder %s30, 1
      %p175 = scmp.ne.s32.totalorder %s170, %s172
      %p176 = scmp.eq.s32.totalorder %s30, 0
      %p177 = por %p175, %p176
      %p178 = scmp.ne.s32.totalorder %s170, %s172
      %p179 = scmp.eq.s32.totalorder %s35, 1
      %p180 = por %p178, %p179
      %p181 = scmp.ne.s32.totalorder %s172, %s173
      %p182 = scmp.eq.s32.totalorder %s35, 0
      %p183 = por %p181, %p182
      %p184 = scmp.ne.s32.totalorder %s172, %s173
      %p185 = scmp.eq.s32.totalorder %s36, 1
      %p186 = por %p184, %p185
      %p188 = scmp.ne.s32.totalorder %s173, %s187
      %p189 = scmp.eq.s32.totalorder %s36, 0
      %p190 = por %p188, %p189
      %s192 = sadd.s32 %s191, 1
      %p195 = scmp.eq.s32.totalorder %s30, 1
      %p196 = scmp.ne.s32.totalorder %s191, %s193
      %p197 = scmp.eq.s32.totalorder %s30, 0
      %p198 = por %p196, %p197
      %p199 = scmp.ne.s32.totalorder %s191, %s193
      %p200 = scmp.eq.s32.totalorder %s35, 1
      %p201 = por %p199, %p200
      %p202 = scmp.ne.s32.totalorder %s193, %s194
      %p203 = scmp.eq.s32.totalorder %s35, 0
      %p204 = por %p202, %p203
      %p205 = scmp.ne.s32.totalorder %s193, %s194
      %p206 = scmp.eq.s32.totalorder %s36, 1
      %p207 = por %p205, %p206
      %p209 = scmp.ne.s32.totalorder %s194, %s208
      %p210 = scmp.eq.s32.totalorder %s36, 0
      %p211 = por %p209, %p210
      %s213 = sadd.s32 %s212, 1
      %p216 = scmp.eq.s32.totalorder %s30, 1
      %p217 = scmp.ne.s32.totalorder %s212, %s214
      %p218 = scmp.eq.s32.totalorder %s30, 0
      %p219 = por %p217, %p218
      %p220 = scmp.ne.s32.totalorder %s212, %s214
      %p221 = scmp.eq.s32.totalorder %s35, 1
      %p222 = por %p220, %p221
      %p223 = scmp.ne.s32.totalorder %s214, %s215
      %p224 = scmp.eq.s32.totalorder %s35, 0
      %p225 = por %p223, %p224
      %p226 = scmp.ne.s32.totalorder %s214, %s215
      %p227 = scmp.eq.s32.totalorder %s36, 1
      %p228 = por %p226, %p227
      %p230 = scmp.ne.s32.totalorder %s215, %s229
      %p231 = scmp.eq.s32.totalorder %s36, 0
      %p232 = por %p230, %p231
      %s234 = sadd.s32 %s233, 1
      %p237 = scmp.eq.s32.totalorder %s30, 1
      %p238 = scmp.ne.s32.totalorder %s233, %s235
      %p239 = scmp.eq.s32.totalorder %s30, 0
      %p240 = por %p238, %p239
      %p241 = scmp.ne.s32.totalorder %s233, %s235
      %p242 = scmp.eq.s32.totalorder %s35, 1
      %p243 = por %p241, %p242
      %p244 = scmp.ne.s32.totalorder %s235, %s236
      %p245 = scmp.eq.s32.totalorder %s35, 0
      %p246 = por %p244, %p245
      %p247 = scmp.ne.s32.totalorder %s235, %s236
      %p248 = scmp.eq.s32.totalorder %s36, 1
      %p249 = por %p247, %p248
      %p251 = scmp.ne.s32.totalorder %s236, %s250
      %p252 = scmp.eq.s32.totalorder %s36, 0
      %p253 = por %p251, %p252
      %s255 = sadd.s32 %s254, 1
      %p258 = scmp.eq.s32.totalorder %s30, 1
      %p259 = scmp.ne.s32.totalorder %s254, %s256
      %p260 = scmp.eq.s32.totalorder %s30, 0
      %p261 = por %p259, %p260
      %p262 = scmp.ne.s32.totalorder %s254, %s256
      %p263 = scmp.eq.s32.totalorder %s35, 1
      %p264 = por %p262, %p263
      %p265 = scmp.ne.s32.totalorder %s256, %s257
      %p266 = scmp.eq.s32.totalorder %s35, 0
      %p267 = por %p265, %p266
      %p268 = scmp.ne.s32.totalorder %s256, %s257
      %p269 = scmp.eq.s32.totalorder %s36, 1
      %p270 = por %p268, %p269
      %p272 = scmp.ne.s32.totalorder %s257, %s271
      %p273 = scmp.eq.s32.totalorder %s36, 0
      %p274 = por %p272, %p273
      %s276 = sadd.s32 %s275, 1
      %p279 = scmp.eq.s32.totalorder %s30, 1
      %p280 = scmp.ne.s32.totalorder %s275, %s277
      %p281 = scmp.eq.s32.totalorder %s30, 0
      %p282 = por %p280, %p281
      %p283 = scmp.ne.s32.totalorder %s275, %s277
      %p284 = scmp.eq.s32.totalorder %s35, 1
      %p285 = por %p283, %p284
      %p286 = scmp.ne.s32.totalorder %s277, %s278
      %p287 = scmp.eq.s32.totalorder %s35, 0
      %p288 = por %p286, %p287
      %p289 = scmp.ne.s32.totalorder %s277, %s278
      %p290 = scmp.eq.s32.totalorder %s36, 1
      %p291 = por %p289, %p290
      %p293 = scmp.ne.s32.totalorder %s278, %s292
      %p294 = scmp.eq.s32.totalorder %s36, 0
      %p295 = por %p293, %p294
      %s297 = sadd.s32 %s296, 1
      %p300 = scmp.eq.s32.totalorder %s30, 1
      %p301 = scmp.ne.s32.totalorder %s296, %s298
      %p302 = scmp.eq.s32.totalorder %s30, 0
      %p303 = por %p301, %p302
      %p304 = scmp.ne.s32.totalorder %s296, %s298
      %p305 = scmp.eq.s32.totalorder %s35, 1
      %p306 = por %p304, %p305
      %p307 = scmp.ne.s32.totalorder %s298, %s299
      %p308 = scmp.eq.s32.totalorder %s35, 0
      %p309 = por %p307, %p308
      %p310 = scmp.ne.s32.totalorder %s298, %s299
      %p311 = scmp.eq.s32.totalorder %s36, 1
      %p312 = por %p310, %p311
      %p314 = scmp.ne.s32.totalorder %s299, %s313
      %p315 = scmp.eq.s32.totalorder %s36, 0
      %p316 = por %p314, %p315
      %s318 = sadd.s32 %s317, 1
      %p321 = scmp.eq.s32.totalorder %s30, 1
      %p322 = scmp.ne.s32.totalorder %s317, %s319
      %p323 = scmp.eq.s32.totalorder %s30, 0
      %p324 = por %p322, %p323
      %p325 = scmp.ne.s32.totalorder %s317, %s319
      %p326 = scmp.eq.s32.totalorder %s35, 1
      %p327 = por %p325, %p326
      %p328 = scmp.ne.s32.totalorder %s319, %s320
      %p329 = scmp.eq.s32.totalorder %s35, 0
      %p330 = por %p328, %p329
      %p331 = scmp.ne.s32.totalorder %s319, %s320
      %p332 = scmp.eq.s32.totalorder %s36, 1
      %p333 = por %p331, %p332
      %p335 = scmp.ne.s32.totalorder %s320, %s334
      %p336 = scmp.eq.s32.totalorder %s36, 0
      %p337 = por %p335, %p336
      %s338 = ssub.s32 %s37, %s49
      %s339 = ssub.s32 %s38, %s45
      %s340 = sor.u32 %s338, %s339
      %p341 = scmp.eq.s32.totalorder %s340, 0
      %s343 = sadd.s32 %s342, 1
      %s344 = scalar_select %p341, %s342, %s343
      %p347 = pneg %p341
      %p348 = scmp.eq.s32.totalorder %s30, 1
      %p349 = por %p347, %p348
      %p350 = scmp.ne.s32.totalorder %s342, %s345
      %p351 = scmp.eq.s32.totalorder %s30, 0
      %p352 = por %p350, %p351
      %p353 = scmp.ne.s32.totalorder %s342, %s345
      %p354 = scmp.eq.s32.totalorder %s35, 1
      %p355 = por %p353, %p354
      %p356 = scmp.ne.s32.totalorder %s345, %s346
      %p357 = scmp.eq.s32.totalorder %s35, 0
      %p358 = por %p356, %p357
      %p359 = scmp.ne.s32.totalorder %s345, %s346
      %p360 = scmp.eq.s32.totalorder %s36, 1
      %p361 = por %p359, %p360
      %p363 = scmp.ne.s32.totalorder %s346, %s362
      %p364 = scmp.eq.s32.totalorder %s36, 0
      %p365 = por %p363, %p364
      %p366 = scmp.le.s32.totalorder 1, %s30
      %p367 = scmp.lt.s32.totalorder %s30, 3
      %p368 = pnand %p366, %p367
      %p369 = pneg %p368
      // Predicated region
      $region9: #{tpu_custom_call.1} parent=5 // pred_check
        _
      $region10: #{tpu_custom_call.1} parent=5 // pred_check_branch
        %371 = sbr.rel (%p368) target = $region12
      $region11: #{tpu_custom_call.1} parent=5 // pred_region
        %s372 = ssub.s32 %s30, 1
        // Predicated region
        $region13: #{tpu_custom_call.1} parent=11 // pred_check
          %p373 = pneg %p141
        $region14: #{tpu_custom_call.1} parent=11 // pred_check_branch
          %375 = sbr.rel (%p373) target = $region16
        $region15: #{tpu_custom_call.1} parent=11 // pred_region
          %s377 = ssub.s32 256, 256
          %378 = vsyncadd [#allocation8], %s377
          %s379 = sshll.u32 [#allocation9], 4
          %s380 = int_to_ptr.vmem [resolvable:$true] %s379
          %385 = dma.hbm_to_vmem [thread:$0]  %s3, 256, %s380, [#allocation8], 64, 64, 4
        $region16: #{tpu_custom_call.1} parent=11 // pred_fallthru
          _
        // Predicated region
        $region17: #{tpu_custom_call.1} parent=11 // pred_check
          %p386 = pneg %p162
        $region18: #{tpu_custom_call.1} parent=11 // pred_check_branch
          %388 = sbr.rel (%p386) target = $region20
        $region19: #{tpu_custom_call.1} parent=11 // pred_region
          %s390 = ssub.s32 16, 16
          %391 = vsyncadd [#allocation11], %s390
          %s393 = sshll.u32 [#allocation10], 4
          %s394 = int_to_ptr.vmem [resolvable:$true] %s393
          %396 = dma.hbm_to_vmem [thread:$0]  %s4, 16, %s394, [#allocation11]
        $region20: #{tpu_custom_call.1} parent=11 // pred_fallthru
          _
        // Predicated region
        $region21: #{tpu_custom_call.1} parent=11 // pred_check
          %p397 = pneg %p183
        $region22: #{tpu_custom_call.1} parent=11 // pred_check_branch
          %399 = sbr.rel (%p397) target = $region24
        $region23: #{tpu_custom_call.1} parent=11 // pred_region
          _
        $region24: #{tpu_custom_call.1} parent=11 // pred_fallthru
          _
        // Predicated region
        $region25: #{tpu_custom_call.1} parent=11 // pred_check
          %p400 = pneg %p204
        $region26: #{tpu_custom_call.1} parent=11 // pred_check_branch
          %402 = sbr.rel (%p400) target = $region28
        $region27: #{tpu_custom_call.1} parent=11 // pred_region
          %s404 = ssub.s32 16, 16
          %405 = vsyncadd [#allocation11], %s404
          %s407 = sshll.u32 [#allocation12], 4
          %s408 = int_to_ptr.vmem [resolvable:$true] %s407
          %410 = dma.hbm_to_vmem [thread:$0]  %s6, 16, %s408, [#allocation11]
        $region28: #{tpu_custom_call.1} parent=11 // pred_fallthru
          _
        // Predicated region
        $region29: #{tpu_custom_call.1} parent=11 // pred_check
          %p411 = pneg %p225
        $region30: #{tpu_custom_call.1} parent=11 // pred_check_branch
          %413 = sbr.rel (%p411) target = $region32
        $region31: #{tpu_custom_call.1} parent=11 // pred_region
          %s415 = ssub.s32 256, 256
          %416 = vsyncadd [#allocation14], %s415
          %s417 = sshll.u32 [#allocation13], 4
          %s418 = int_to_ptr.vmem [resolvable:$true] %s417
          %423 = dma.hbm_to_vmem [thread:$0]  %s7, 256, %s418, [#allocation14], 64, 64, 4
        $region32: #{tpu_custom_call.1} parent=11 // pred_fallthru
          _
        // Predicated region
        $region33: #{tpu_custom_call.1} parent=11 // pred_check
          %p424 = pneg %p246
        $region34: #{tpu_custom_call.1} parent=11 // pred_check_branch
          %426 = sbr.rel (%p424) target = $region36
        $region35: #{tpu_custom_call.1} parent=11 // pred_region
          %s428 = ssub.s32 16, 16
          %429 = vsyncadd [#allocation14], %s428
          %s431 = sshll.u32 [#allocation15], 4
          %s432 = int_to_ptr.vmem [resolvable:$true] %s431
          %434 = dma.hbm_to_vmem [thread:$0]  %s8, 16, %s432, [#allocation14]
        $region36: #{tpu_custom_call.1} parent=11 // pred_fallthru
          _
        // Predicated region
        $region37: #{tpu_custom_call.1} parent=11 // pred_check
          %p435 = pneg %p267
        $region38: #{tpu_custom_call.1} parent=11 // pred_check_branch
          %437 = sbr.rel (%p435) target = $region40
        $region39: #{tpu_custom_call.1} parent=11 // pred_region
          _
        $region40: #{tpu_custom_call.1} parent=11 // pred_fallthru
          _
        // Predicated region
        $region41: #{tpu_custom_call.1} parent=11 // pred_check
          %p438 = pneg %p288
        $region42: #{tpu_custom_call.1} parent=11 // pred_check_branch
          %440 = sbr.rel (%p438) target = $region44
        $region43: #{tpu_custom_call.1} parent=11 // pred_region
          _
        $region44: #{tpu_custom_call.1} parent=11 // pred_fallthru
          _
        // Predicated region
        $region45: #{tpu_custom_call.1} parent=11 // pred_check
          %p441 = pneg %p309
        $region46: #{tpu_custom_call.1} parent=11 // pred_check_branch
          %443 = sbr.rel (%p441) target = $region48
        $region47: #{tpu_custom_call.1} parent=11 // pred_region
          _
        $region48: #{tpu_custom_call.1} parent=11 // pred_fallthru
          _
        // Predicated region
        $region49: #{tpu_custom_call.1} parent=11 // pred_check
          %p444 = pneg %p330
        $region50: #{tpu_custom_call.1} parent=11 // pred_check_branch
          %446 = sbr.rel (%p444) target = $region52
        $region51: #{tpu_custom_call.1} parent=11 // pred_region
          _
        $region52: #{tpu_custom_call.1} parent=11 // pred_fallthru
          _
      $region12: #{tpu_custom_call.1} parent=5 // pred_fallthru
        _
      %p447 = scmp.lt.s32.totalorder %s30, 2
      // Predicated region
      $region53: #{tpu_custom_call.1} parent=5 // pred_check
        %p448 = pneg %p447
      $region54: #{tpu_custom_call.1} parent=5 // pred_check_branch
        %450 = sbr.rel (%p448) target = $region56
      $region55: #{tpu_custom_call.1} parent=5 // pred_region
        // Predicated region
        $region57: #{tpu_custom_call.1} parent=55 // pred_check
          %p451 = pneg %p62
        $region58: #{tpu_custom_call.1} parent=55 // pred_check_branch
          %453 = sbr.rel (%p451) target = $region60
        $region59: #{tpu_custom_call.1} parent=55 // pred_region
          %s454 = sand.u32 %s52, 1
          %s455 = scalar_lea.sflag [#allocation5], %s454
          %s456 = sand.u32 %s52, 1
          %s457 = smul.addr %s456, 4
          %s458 = scalar_lea.vmem [#allocation4], %s457
          %s460 = ssub.s32 64, 64
          %461 = vsyncadd %s455, %s460
          %s462 = smul.addr %s37, 64
          %s463 = scalar_lea.hbm %s0, %s462
          %s465 = sshll.u32 %s458, 4
          %s466 = int_to_ptr.vmem [resolvable:$true] %s465
          %468 = dma.hbm_to_vmem [thread:$0]  %s463, 64, %s466, %s455
        $region60: #{tpu_custom_call.1} parent=55 // pred_fallthru
          _
        // Predicated region
        $region61: #{tpu_custom_call.1} parent=55 // pred_check
          %p469 = pneg %p88
        $region62: #{tpu_custom_call.1} parent=55 // pred_check_branch
          %471 = sbr.rel (%p469) target = $region64
        $region63: #{tpu_custom_call.1} parent=55 // pred_region
          %s472 = sand.u32 %s30, 1
          %s473 = scalar_lea.sflag [#allocation8], %s472
          %s474 = sand.u32 %s78, 1
          %s475 = smul.addr %s474, 4
          %s476 = scalar_lea.vmem [#allocation7], %s475
          %s478 = ssub.s32 64, 64
          %479 = vsyncadd %s473, %s478
          %s480 = smul.addr %s37, 64
          %s481 = scalar_lea.hbm %s1, %s480
          %s483 = sshll.u32 %s476, 4
          %s484 = int_to_ptr.vmem [resolvable:$true] %s483
          %486 = dma.hbm_to_vmem [thread:$0]  %s481, 64, %s484, %s473
        $region64: #{tpu_custom_call.1} parent=55 // pred_fallthru
          _
        // Predicated region
        $region65: #{tpu_custom_call.1} parent=55 // pred_check
          %p487 = pneg %p114
        $region66: #{tpu_custom_call.1} parent=55 // pred_check_branch
          %489 = sbr.rel (%p487) target = $region68
        $region67: #{tpu_custom_call.1} parent=55 // pred_region
          %p490 = scmp.lt.s32.totalorder %s37, 1
          %s491 = scalar_select %p490, %s37, 1
          %s492 = scalar_lea.vmem %s2, %s491
        $region68: #{tpu_custom_call.1} parent=55 // pred_fallthru
          _
      $region56: #{tpu_custom_call.1} parent=5 // pred_fallthru
        _
      %p493 = scmp.le.s32.totalorder 1, %s30
      %p494 = scmp.lt.s32.totalorder %s30, 3
      %p495 = pnand %p493, %p494
      %p496 = pneg %p495
      // Predicated region
      $region69: #{tpu_custom_call.1} parent=5 // pred_check
        _
      $region70: #{tpu_custom_call.1} parent=5 // pred_check_branch
        %498 = sbr.rel (%p495) target = $region72
      $region71: #{tpu_custom_call.1} parent=5 // pred_region
        %s499 = ssub.s32 %s30, 1
        %s500 = sand.u32 %s55, 1
        %s501 = scalar_lea.sflag [#allocation5], %s500
        %s502 = sand.u32 %s55, 1
        %s503 = smul.addr %s502, 4
        %s504 = scalar_lea.vmem [#allocation4], %s503
        // Predicated region
        $region73: #{tpu_custom_call.1} parent=71 // pred_check
          %p505 = pneg %p68
        $region74: #{tpu_custom_call.1} parent=71 // pred_check_branch
          %507 = sbr.rel (%p505) target = $region76
        $region75: #{tpu_custom_call.1} parent=71 // pred_region
          %508 = dma.done %s501, 64
        $region76: #{tpu_custom_call.1} parent=71 // pred_fallthru
          _
        %s509 = sand.u32 %s35, 1
        %s510 = scalar_lea.sflag [#allocation8], %s509
        %s511 = sand.u32 %s81, 1
        %s512 = smul.addr %s511, 4
        %s513 = scalar_lea.vmem [#allocation7], %s512
        // Predicated region
        $region77: #{tpu_custom_call.1} parent=71 // pred_check
          %p514 = pneg %p94
        $region78: #{tpu_custom_call.1} parent=71 // pred_check_branch
          %516 = sbr.rel (%p514) target = $region80
        $region79: #{tpu_custom_call.1} parent=71 // pred_region
          %517 = dma.done %s510, 64
        $region80: #{tpu_custom_call.1} parent=71 // pred_fallthru
          _
        // Predicated region
        $region81: #{tpu_custom_call.1} parent=71 // pred_check
          %p518 = pneg %p141
        $region82: #{tpu_custom_call.1} parent=71 // pred_check_branch
          %520 = sbr.rel (%p518) target = $region84
        $region83: #{tpu_custom_call.1} parent=71 // pred_region
          %521 = dma.done [#allocation8], 256
        $region84: #{tpu_custom_call.1} parent=71 // pred_fallthru
          _
        // Predicated region
        $region85: #{tpu_custom_call.1} parent=71 // pred_check
          %p522 = pneg %p162
        $region86: #{tpu_custom_call.1} parent=71 // pred_check_branch
          %524 = sbr.rel (%p522) target = $region88
        $region87: #{tpu_custom_call.1} parent=71 // pred_region
          %525 = dma.done [#allocation11], 16
        $region88: #{tpu_custom_call.1} parent=71 // pred_fallthru
          _
        // Predicated region
        $region89: #{tpu_custom_call.1} parent=71 // pred_check
          %p526 = pneg %p204
        $region90: #{tpu_custom_call.1} parent=71 // pred_check_branch
          %528 = sbr.rel (%p526) target = $region92
        $region91: #{tpu_custom_call.1} parent=71 // pred_region
          %529 = dma.done [#allocation11], 16
        $region92: #{tpu_custom_call.1} parent=71 // pred_fallthru
          _
        // Predicated region
        $region93: #{tpu_custom_call.1} parent=71 // pred_check
          %p530 = pneg %p225
        $region94: #{tpu_custom_call.1} parent=71 // pred_check_branch
          %532 = sbr.rel (%p530) target = $region96
        $region95: #{tpu_custom_call.1} parent=71 // pred_region
          %533 = dma.done [#allocation14], 256
        $region96: #{tpu_custom_call.1} parent=71 // pred_fallthru
          _
        // Predicated region
        $region97: #{tpu_custom_call.1} parent=71 // pred_check
          %p534 = pneg %p246
        $region98: #{tpu_custom_call.1} parent=71 // pred_check_branch
          %536 = sbr.rel (%p534) target = $region100
        $region99: #{tpu_custom_call.1} parent=71 // pred_region
          %537 = dma.done [#allocation14], 16
        $region100: #{tpu_custom_call.1} parent=71 // pred_fallthru
          _
        %s538 = sand.u32 %s55, 1
        %s539 = scalar_lea.sflag [#allocation5], %s538
        %s540 = sand.u32 %s55, 1
        %s541 = smul.addr %s540, 4
        %s542 = scalar_lea.vmem [#allocation4], %s541
        %p543 = pneg %p68
        %p544 = pneg %p65
        %s545 = sand.u32 %s35, 1
        %s546 = scalar_lea.sflag [#allocation8], %s545
        %s547 = sand.u32 %s81, 1
        %s548 = smul.addr %s547, 4
        %s549 = scalar_lea.vmem [#allocation7], %s548
        %p550 = pneg %p94
        %p551 = pneg %p91
        %p552 = scmp.lt.s32.totalorder %s39, 1
        %s553 = scalar_select %p552, %s39, 1
        %s554 = scalar_lea.vmem %s2, %s553
        %p555 = pneg %p120
        %p556 = pneg %p117
        %p557 = pneg %p141
        %p558 = pneg %p138
        %p559 = pneg %p162
        %p560 = pneg %p159
        %p561 = pneg %p183
        %p562 = pneg %p180
        %p563 = pneg %p204
        %p564 = pneg %p201
        %p565 = pneg %p225
        %p566 = pneg %p222
        %p567 = pneg %p246
        %p568 = pneg %p243
        %p569 = pneg %p267
        %p570 = pneg %p264
        %p571 = pneg %p288
        %p572 = pneg %p285
        %p573 = pneg %p309
        %p574 = pneg %p306
        %p575 = pneg %p330
        %p576 = pneg %p327
        %p577 = pneg %p358
        %p578 = pneg %p355
        %s579 = sand.u32 %s345, 1
        %s580 = scalar_lea.sflag [#allocation6], %s579
        %s581 = sand.u32 %s345, 1
        %s582 = smul.addr %s581, 8
        %s583 = scalar_lea.vmem [#allocation16], %s582
        %p584 = scmp.lt.s32.totalorder %s39, 1
        %s585 = scalar_select %p584, %s39, 1
        %s586 = scalar_lea.vmem %s2, %s585
        %p588 = scmp.eq.s32.totalorder %s40, 0
        // Predicated region
        $region101: #{tpu_custom_call.1} parent=71 // pred_check
          %p589 = pneg %p588
        $region102: #{tpu_custom_call.1} parent=71 // pred_check_branch
          %591 = sbr.rel (%p589) target = $region104
        $region103: #{tpu_custom_call.1} parent=71 // pred_region
          %v592 = vld [vmem:[%s504] sm:$0xf]
          %v593 = vld [vmem:[%s513] sm:$0xf]
          %v594 = vld [vmem:[%s5] sm:$0xf]
          %v595 = vld [vmem:[%s5 + $0x4] sm:$0xf]
          %v596 = vld [vmem:[%s5 + $0x8] sm:$0xf]
          %v597 = vld [vmem:[%s5 + $0xc] sm:$0xf]
          %v598 = vld [vmem:[#allocation12] sm:$0x1]
          %v600 = vlaneseq
          %v601 = vshrl.u32 %v600, 7
          %v602 = vsub.s32 0, %v601
          %v603 = vrot.slane %v598, %v602
          %v609 = vunpack.c.l.b16 %v594
          %v610 = vunpack.c.l.b16 %v595
          %v611 = vunpack.c.l.b16 %v596
          %v612 = vunpack.c.l.b16 %v597
          %v613 = vpack.c.b16 %v610, %v609
          %v614 = vpack.c.b16 %v612, %v611
          %vm617 = vcmask 261120
          %v619 = vsel %vm617, %v592, 0
          %621 = vmatprep.subr.bf16.mxu0 0
          %622 = vmatpush1.bf16.msra.mxu0 %v613
          %623 = vmatprep.subr.bf16.mxu0 0
          %624 = vmatpush1.bf16.msra.mxu0 %v614
          %625 = vmatprep.subr.bf16.mxu0 0
          %626 = vmatpush1.bf16.msra.mxu0 0
          %627 = vmatprep.subr.bf16.mxu0 0
          %628 = vmatpush1.bf16.msra.mxu0 0
          %629 = vmatprep.subr.bf16.mxu0 0
          %630 = vmatpush1.bf16.msra.mxu0 0
          %631 = vmatprep.subr.bf16.mxu0 0
          %632 = vmatpush1.bf16.msra.mxu0 0
          %633 = vmatprep.subr.bf16.mxu0 0
          %634 = vmatpush1.bf16.msra.mxu0 0
          %635 = vmatprep.subr.bf16.mxu0 0
          %636 = vmatpush1.bf16.msra.mxu0 0
          %637 = vmatprep.subr.bf16.mxu0 0
          %638 = vmatpush1.bf16.msra.mxu0 0
          %639 = vmatprep.subr.bf16.mxu0 0
          %640 = vmatpush1.bf16.msra.mxu0 0
          %641 = vmatprep.subr.bf16.mxu0 0
          %642 = vmatpush1.bf16.msra.mxu0 0
          %643 = vmatprep.subr.bf16.mxu0 0
          %644 = vmatpush1.bf16.msra.mxu0 0
          %645 = vmatprep.subr.bf16.mxu0 0
          %646 = vmatpush1.bf16.msra.mxu0 0
          %647 = vmatprep.subr.bf16.mxu0 0
          %648 = vmatpush1.bf16.msra.mxu0 0
          %649 = vmatprep.subr.bf16.mxu0 0
          %650 = vmatpush1.bf16.msra.mxu0 0
          %651 = vmatprep.subr.bf16.mxu0 0
          %652 = vmatpush1.bf16.msra.mxu0 0
          %653 = vmatprep.mubr.bf16.mxu0 0
          %654 = vmatmul.mubr.bf16.gmra.mrb[0].mxu0 %v619
          %v655 = vpop.f32.mrb[0].mxu0
          %v656 = vadd.f32 %v603, %v655
          %v657 = vpop.f32.mrb[0].mxu0
          %v658 = vpop.f32.mrb[0].mxu0
          %v659 = vpop.f32.mrb[0].mxu0
          %660 = vdwg.mxu0
          %v661 = vld [vmem:[#allocation13] sm:$0xf]
          %v662 = vld [vmem:[#allocation13 + $0x4] sm:$0xf]
          %v663 = vld [vmem:[#allocation13 + $0x8] sm:$0xf]
          %v664 = vld [vmem:[#allocation13 + $0xc] sm:$0xf]
          %v669 = vunpack.c.l.b16 %v661
          %v670 = vunpack.c.l.b16 %v662
          %v671 = vunpack.c.l.b16 %v663
          %v672 = vunpack.c.l.b16 %v664
          %v673 = vpack.c.b16 %v670, %v669
          %v674 = vpack.c.b16 %v672, %v671
          %v678 = vsel %vm617, %v593, 0
          %680 = vmatprep.subr.bf16.mxu0 0
          %681 = vmatpush1.bf16.msra.mxu0 %v673
          %682 = vmatprep.subr.bf16.mxu0 0
          %683 = vmatpush1.bf16.msra.mxu0 %v674
          %684 = vmatprep.subr.bf16.mxu0 0
          %685 = vmatpush1.bf16.msra.mxu0 0
          %686 = vmatprep.subr.bf16.mxu0 0
          %687 = vmatpush1.bf16.msra.mxu0 0
          %688 = vmatprep.subr.bf16.mxu0 0
          %689 = vmatpush1.bf16.msra.mxu0 0
          %690 = vmatprep.subr.bf16.mxu0 0
          %691 = vmatpush1.bf16.msra.mxu0 0
          %692 = vmatprep.subr.bf16.mxu0 0
          %693 = vmatpush1.bf16.msra.mxu0 0
          %694 = vmatprep.subr.bf16.mxu0 0
          %695 = vmatpush1.bf16.msra.mxu0 0
          %696 = vmatprep.subr.bf16.mxu0 0
          %697 = vmatpush1.bf16.msra.mxu0 0
          %698 = vmatprep.subr.bf16.mxu0 0
          %699 = vmatpush1.bf16.msra.mxu0 0
          %700 = vmatprep.subr.bf16.mxu0 0
          %701 = vmatpush1.bf16.msra.mxu0 0
          %702 = vmatprep.subr.bf16.mxu0 0
          %703 = vmatpush1.bf16.msra.mxu0 0
          %704 = vmatprep.subr.bf16.mxu0 0
          %705 = vmatpush1.bf16.msra.mxu0 0
          %706 = vmatprep.subr.bf16.mxu0 0
          %707 = vmatpush1.bf16.msra.mxu0 0
          %708 = vmatprep.subr.bf16.mxu0 0
          %709 = vmatpush1.bf16.msra.mxu0 0
          %710 = vmatprep.subr.bf16.mxu0 0
          %711 = vmatpush1.bf16.msra.mxu0 0
          %712 = vmatprep.mubr.bf16.mxu0 0
          %713 = vmatmul.mubr.bf16.gmra.mrb[0].mxu0 %v678
          %v714 = vpop.f32.mrb[0].mxu0
          %v715 = vadd.f32 0.0, %v714
          %v716 = vpop.f32.mrb[0].mxu0
          %v717 = vpop.f32.mrb[0].mxu0
          %v718 = vpop.f32.mrb[0].mxu0
          %719 = vdwg.mxu0
          %v720 = vadd.f32 %v656, %v715
          %v721 = vld [vmem:[#allocation15] sm:$0x1]
          %v723 = vlaneseq
          %v724 = vshrl.u32 %v723, 7
          %v725 = vsub.s32 0, %v724
          %v726 = vrot.slane %v721, %v725
          %v728 = vadd.f32 %v720, %v726
          %730 = vrot.lane.b32.xlu0 %v728, 120
          %v731 = vpop.permute.xlu0 %730
          %733 = vrot.lane.b32.xlu0 %v728, 112
          %v734 = vpop.permute.xlu0 %733
          %736 = vrot.lane.b32.xlu0 %v728, 104
          %v737 = vpop.permute.xlu0 %736
          %v739 = vcombine.low %v728, %v734
          %v740 = vcombine.high %v728, %v734
          %v742 = vunpack.c.l.s4 1983009808
          %v743 = vunpack.c.0.s8 %v742
          %v744 = vlaneseq
          %v745 = vshrl.u32 %v744, 7
          %v746 = vsub.s32 %v743, %v745
          %v747 = vrot.slane %v739, %v746
          %v749 = vunpack.c.l.s4 1983009808
          %v750 = vunpack.c.0.s8 %v749
          %v751 = vlaneseq
          %v752 = vshrl.u32 %v751, 7
          %v753 = vsub.s32 %v750, %v752
          %v754 = vrot.slane %v740, %v753
          %v755 = vcombine.low %v731, %v737
          %v756 = vcombine.high %v731, %v737
          %v758 = vunpack.c.l.s4 1983009808
          %v759 = vunpack.c.0.s8 %v758
          %v760 = vlaneseq
          %v761 = vshrl.u32 %v760, 7
          %v762 = vsub.s32 %v759, %v761
          %v763 = vrot.slane %v755, %v762
          %v765 = vunpack.c.l.s4 1983009808
          %v766 = vunpack.c.0.s8 %v765
          %v767 = vlaneseq
          %v768 = vshrl.u32 %v767, 7
          %v769 = vsub.s32 %v766, %v768
          %v770 = vrot.slane %v756, %v769
          %v771 = vcombine.low %v747, %v763
          %v772 = vcombine.high %v747, %v763
          %v774 = vunpack.c.l.s4 1934713408
          %v775 = vunpack.c.0.s8 %v774
          %v776 = vlaneseq
          %v777 = vshrl.u32 %v776, 7
          %v778 = vsub.s32 %v775, %v777
          %v779 = vrot.slane %v771, %v778
          %v781 = vunpack.c.l.s4 1934713408
          %v782 = vunpack.c.0.s8 %v781
          %v783 = vlaneseq
          %v784 = vshrl.u32 %v783, 7
          %v785 = vsub.s32 %v782, %v784
          %v786 = vrot.slane %v772, %v785
          %v787 = vcombine.low %v754, %v770
          %v788 = vcombine.high %v754, %v770
          %v790 = vunpack.c.l.s4 1934713408
          %v791 = vunpack.c.0.s8 %v790
          %v792 = vlaneseq
          %v793 = vshrl.u32 %v792, 7
          %v794 = vsub.s32 %v791, %v793
          %v795 = vrot.slane %v787, %v794
          %v797 = vunpack.c.l.s4 1934713408
          %v798 = vunpack.c.0.s8 %v797
          %v799 = vlaneseq
          %v800 = vshrl.u32 %v799, 7
          %v801 = vsub.s32 %v798, %v800
          %v802 = vrot.slane %v788, %v801
          %v803 = vcombine.high %v779, 0.0
          %v804 = vcombine.high %v786, 0.0
          %v805 = vcombine.high %v795, 0.0
          %v806 = vcombine.high %v802, 0.0
          %807 = vrot.lane.b32.xlu0 %v728, 96
          %v808 = vpop.permute.xlu0 %807
          %809 = vrot.lane.b32.xlu0 %v731, 96
          %v810 = vpop.permute.xlu0 %809
          %811 = vrot.lane.b32.xlu0 %v734, 96
          %v812 = vpop.permute.xlu0 %811
          %813 = vrot.lane.b32.xlu0 %v737, 96
          %v814 = vpop.permute.xlu0 %813
          %v819 = vcombine.low %v808, %v812
          %v820 = vcombine.high %v808, %v812
          %v822 = vunpack.c.l.s4 1983009808
          %v823 = vunpack.c.0.s8 %v822
          %v824 = vlaneseq
          %v825 = vshrl.u32 %v824, 7
          %v826 = vsub.s32 %v823, %v825
          %v827 = vrot.slane %v819, %v826
          %v829 = vunpack.c.l.s4 1983009808
          %v830 = vunpack.c.0.s8 %v829
          %v831 = vlaneseq
          %v832 = vshrl.u32 %v831, 7
          %v833 = vsub.s32 %v830, %v832
          %v834 = vrot.slane %v820, %v833
          %v835 = vcombine.low %v810, %v814
          %v836 = vcombine.high %v810, %v814
          %v838 = vunpack.c.l.s4 1983009808
          %v839 = vunpack.c.0.s8 %v838
          %v840 = vlaneseq
          %v841 = vshrl.u32 %v840, 7
          %v842 = vsub.s32 %v839, %v841
          %v843 = vrot.slane %v835, %v842
          %v845 = vunpack.c.l.s4 1983009808
          %v846 = vunpack.c.0.s8 %v845
          %v847 = vlaneseq
          %v848 = vshrl.u32 %v847, 7
          %v849 = vsub.s32 %v846, %v848
          %v850 = vrot.slane %v836, %v849
          %v851 = vcombine.low %v827, %v843
          %v852 = vcombine.high %v827, %v843
          %v854 = vunpack.c.l.s4 1934713408
          %v855 = vunpack.c.0.s8 %v854
          %v856 = vlaneseq
          %v857 = vshrl.u32 %v856, 7
          %v858 = vsub.s32 %v855, %v857
          %v859 = vrot.slane %v851, %v858
          %v861 = vunpack.c.l.s4 1934713408
          %v862 = vunpack.c.0.s8 %v861
          %v863 = vlaneseq
          %v864 = vshrl.u32 %v863, 7
          %v865 = vsub.s32 %v862, %v864
          %v866 = vrot.slane %v852, %v865
          %v867 = vcombine.low %v834, %v850
          %v868 = vcombine.high %v834, %v850
          %v870 = vunpack.c.l.s4 1934713408
          %v871 = vunpack.c.0.s8 %v870
          %v872 = vlaneseq
          %v873 = vshrl.u32 %v872, 7
          %v874 = vsub.s32 %v871, %v873
          %v875 = vrot.slane %v867, %v874
          %v877 = vunpack.c.l.s4 1934713408
          %v878 = vunpack.c.0.s8 %v877
          %v879 = vlaneseq
          %v880 = vshrl.u32 %v879, 7
          %v881 = vsub.s32 %v878, %v880
          %v882 = vrot.slane %v868, %v881
          %v883 = vcombine.high %v859, 0.0
          %v884 = vcombine.high %v866, 0.0
          %v885 = vcombine.high %v875, 0.0
          %v886 = vcombine.high %v882, 0.0
          %v887 = vcombine.low %v779, %v786
          %v889 = vunpack.c.l.s4 1983009808
          %v890 = vunpack.c.0.s8 %v889
          %v891 = vlaneseq
          %v892 = vshrl.u32 %v891, 7
          %v893 = vsub.s32 %v890, %v892
          %v894 = vrot.slane %v887, %v893
          %v895 = vcombine.low %v803, %v804
          %v897 = vunpack.c.l.s4 1983009808
          %v898 = vunpack.c.0.s8 %v897
          %v899 = vlaneseq
          %v900 = vshrl.u32 %v899, 7
          %v901 = vsub.s32 %v898, %v900
          %v902 = vrot.slane %v895, %v901
          %v903 = vcombine.low %v795, %v802
          %v905 = vunpack.c.l.s4 1983009808
          %v906 = vunpack.c.0.s8 %v905
          %v907 = vlaneseq
          %v908 = vshrl.u32 %v907, 7
          %v909 = vsub.s32 %v906, %v908
          %v910 = vrot.slane %v903, %v909
          %v911 = vcombine.low %v805, %v806
          %v913 = vunpack.c.l.s4 1983009808
          %v914 = vunpack.c.0.s8 %v913
          %v915 = vlaneseq
          %v916 = vshrl.u32 %v915, 7
          %v917 = vsub.s32 %v914, %v916
          %v918 = vrot.slane %v911, %v917
          %v919 = vcombine.low %v894, %v902
          %v920 = vcombine.high %v894, %v902
          %v922 = vunpack.c.l.s4 1934713408
          %v923 = vunpack.c.0.s8 %v922
          %v924 = vlaneseq
          %v925 = vshrl.u32 %v924, 7
          %v926 = vsub.s32 %v923, %v925
          %v927 = vrot.slane %v919, %v926
          %v929 = vunpack.c.l.s4 1934713408
          %v930 = vunpack.c.0.s8 %v929
          %v931 = vlaneseq
          %v932 = vshrl.u32 %v931, 7
          %v933 = vsub.s32 %v930, %v932
          %v934 = vrot.slane %v920, %v933
          %v935 = vcombine.low %v910, %v918
          %v936 = vcombine.high %v910, %v918
          %v938 = vunpack.c.l.s4 1934713408
          %v939 = vunpack.c.0.s8 %v938
          %v940 = vlaneseq
          %v941 = vshrl.u32 %v940, 7
          %v942 = vsub.s32 %v939, %v941
          %v943 = vrot.slane %v935, %v942
          %v945 = vunpack.c.l.s4 1934713408
          %v946 = vunpack.c.0.s8 %v945
          %v947 = vlaneseq
          %v948 = vshrl.u32 %v947, 7
          %v949 = vsub.s32 %v946, %v948
          %v950 = vrot.slane %v936, %v949
          %v951 = vcombine.low %v927, %v943
          %v952 = vcombine.high %v927, %v943
          %v953 = vcombine.low %v934, %v950
          %v954 = vcombine.high %v934, %v950
          %v955 = vpack.c.bf16 %v951, %v951
          %v956 = vpack.c.bf16 %v952, %v952
          %v957 = vpack.c.bf16 %v953, %v953
          %v958 = vpack.c.bf16 %v954, %v954
          %vm959 = vcmask 60416
          %960 = vst.msk [vmem:[#allocation2] sm:$0xf] %vm959, %v955
          %961 = vst.msk [vmem:[#allocation2 + $0x4] sm:$0xf] %vm959, %v956
          %962 = vst.msk [vmem:[#allocation2 + $0x8] sm:$0xf] %vm959, %v957
          %963 = vst.msk [vmem:[#allocation2 + $0xc] sm:$0xf] %vm959, %v958
          %v964 = vcombine.low %v859, %v866
          %v966 = vunpack.c.l.s4 1983009808
          %v967 = vunpack.c.0.s8 %v966
          %v968 = vlaneseq
          %v969 = vshrl.u32 %v968, 7
          %v970 = vsub.s32 %v967, %v969
          %v971 = vrot.slane %v964, %v970
          %v972 = vcombine.low %v883, %v884
          %v974 = vunpack.c.l.s4 1983009808
          %v975 = vunpack.c.0.s8 %v974
          %v976 = vlaneseq
          %v977 = vshrl.u32 %v976, 7
          %v978 = vsub.s32 %v975, %v977
          %v979 = vrot.slane %v972, %v978
          %v980 = vcombine.low %v875, %v882
          %v982 = vunpack.c.l.s4 1983009808
          %v983 = vunpack.c.0.s8 %v982
          %v984 = vlaneseq
          %v985 = vshrl.u32 %v984, 7
          %v986 = vsub.s32 %v983, %v985
          %v987 = vrot.slane %v980, %v986
          %v988 = vcombine.low %v885, %v886
          %v990 = vunpack.c.l.s4 1983009808
          %v991 = vunpack.c.0.s8 %v990
          %v992 = vlaneseq
          %v993 = vshrl.u32 %v992, 7
          %v994 = vsub.s32 %v991, %v993
          %v995 = vrot.slane %v988, %v994
          %v996 = vcombine.low %v971, %v979
          %v997 = vcombine.high %v971, %v979
          %v999 = vunpack.c.l.s4 1934713408
          %v1000 = vunpack.c.0.s8 %v999
          %v1001 = vlaneseq
          %v1002 = vshrl.u32 %v1001, 7
          %v1003 = vsub.s32 %v1000, %v1002
          %v1004 = vrot.slane %v996, %v1003
          %v1006 = vunpack.c.l.s4 1934713408
          %v1007 = vunpack.c.0.s8 %v1006
          %v1008 = vlaneseq
          %v1009 = vshrl.u32 %v1008, 7
          %v1010 = vsub.s32 %v1007, %v1009
          %v1011 = vrot.slane %v997, %v1010
          %v1012 = vcombine.low %v987, %v995
          %v1013 = vcombine.high %v987, %v995
          %v1015 = vunpack.c.l.s4 1934713408
          %v1016 = vunpack.c.0.s8 %v1015
          %v1017 = vlaneseq
          %v1018 = vshrl.u32 %v1017, 7
          %v1019 = vsub.s32 %v1016, %v1018
          %v1020 = vrot.slane %v1012, %v1019
          %v1022 = vunpack.c.l.s4 1934713408
          %v1023 = vunpack.c.0.s8 %v1022
          %v1024 = vlaneseq
          %v1025 = vshrl.u32 %v1024, 7
          %v1026 = vsub.s32 %v1023, %v1025
          %v1027 = vrot.slane %v1013, %v1026
          %v1028 = vcombine.low %v1004, %v1020
          %v1029 = vcombine.high %v1004, %v1020
          %v1030 = vcombine.low %v1011, %v1027
          %v1031 = vcombine.high %v1011, %v1027
          %v1032 = vpack.c.bf16 %v1028, %v1028
          %v1033 = vpack.c.bf16 %v1029, %v1029
          %v1034 = vpack.c.bf16 %v1030, %v1030
          %v1035 = vpack.c.bf16 %v1031, %v1031
          %1036 = vst.msk [vmem:[#allocation3] sm:$0xf] %vm959, %v1032
          %1037 = vst.msk [vmem:[#allocation3 + $0x4] sm:$0xf] %vm959, %v1033
          %1038 = vst.msk [vmem:[#allocation3 + $0x8] sm:$0xf] %vm959, %v1034
          %1039 = vst.msk [vmem:[#allocation3 + $0xc] sm:$0xf] %vm959, %v1035
        $region104: #{tpu_custom_call.1} parent=71 // pred_fallthru
          _
        %s1040 = smul.u32 %s40, 8
        %s1041 = sshra.s32 %s1040, 3
        %s1042 = sand.u32 %s1040, 7
        %s1043 = smul.addr %s1041, 4
        %s1044 = scalar_lea.vmem %s504, %s1043 [#allocation4]
        %v1045 = vld [vmem:[%s1044] sm:$0xf]
        %v1046 = vld [vmem:[#allocation9] sm:$0xf]
        %v1047 = vld [vmem:[#allocation9 + $0x4] sm:$0xf]
        %v1048 = vld [vmem:[#allocation9 + $0x8] sm:$0xf]
        %v1049 = vld [vmem:[#allocation9 + $0xc] sm:$0xf]
        %v1050 = vld [vmem:[#allocation10] sm:$0x1]
        %v1052 = vlaneseq
        %v1053 = vshrl.u32 %v1052, 7
        %v1054 = vsub.s32 0, %v1053
        %v1055 = vrot.slane %v1050, %v1054
        %v1061 = vunpack.c.l.b16 %v1046
        %v1062 = vunpack.c.l.b16 %v1047
        %v1063 = vunpack.c.l.b16 %v1048
        %v1064 = vunpack.c.l.b16 %v1049
        %v1065 = vpack.c.b16 %v1062, %v1061
        %v1066 = vpack.c.b16 %v1064, %v1063
        %vm1069 = vcmask 261120
        %v1071 = vsel %vm1069, %v1045, 0
        %1073 = vmatprep.subr.bf16.mxu0 0
        %1074 = vmatpush1.bf16.msra.mxu0 %v1065
        %1075 = vmatprep.subr.bf16.mxu0 0
        %1076 = vmatpush1.bf16.msra.mxu0 %v1066
        %1077 = vmatprep.subr.bf16.mxu0 0
        %1078 = vmatpush1.bf16.msra.mxu0 0
        %1079 = vmatprep.subr.bf16.mxu0 0
        %1080 = vmatpush1.bf16.msra.mxu0 0
        %1081 = vmatprep.subr.bf16.mxu0 0
        %1082 = vmatpush1.bf16.msra.mxu0 0
        %1083 = vmatprep.subr.bf16.mxu0 0
        %1084 = vmatpush1.bf16.msra.mxu0 0
        %1085 = vmatprep.subr.bf16.mxu0 0
        %1086 = vmatpush1.bf16.msra.mxu0 0
        %1087 = vmatprep.subr.bf16.mxu0 0
        %1088 = vmatpush1.bf16.msra.mxu0 0
        %1089 = vmatprep.subr.bf16.mxu0 0
        %1090 = vmatpush1.bf16.msra.mxu0 0
        %1091 = vmatprep.subr.bf16.mxu0 0
        %1092 = vmatpush1.bf16.msra.mxu0 0
        %1093 = vmatprep.subr.bf16.mxu0 0
        %1094 = vmatpush1.bf16.msra.mxu0 0
        %1095 = vmatprep.subr.bf16.mxu0 0
        %1096 = vmatpush1.bf16.msra.mxu0 0
        %1097 = vmatprep.subr.bf16.mxu0 0
        %1098 = vmatpush1.bf16.msra.mxu0 0
        %1099 = vmatprep.subr.bf16.mxu0 0
        %1100 = vmatpush1.bf16.msra.mxu0 0
        %1101 = vmatprep.subr.bf16.mxu0 0
        %1102 = vmatpush1.bf16.msra.mxu0 0
        %1103 = vmatprep.subr.bf16.mxu0 0
        %1104 = vmatpush1.bf16.msra.mxu0 0
        %1105 = vmatprep.mubr.bf16.mxu0 0
        %1106 = vmatmul.mubr.bf16.gmra.mrb[0].mxu0 %v1071
        %v1107 = vpop.f32.mrb[0].mxu0
        %v1108 = vadd.f32 %v1055, %v1107
        %v1109 = vpop.f32.mrb[0].mxu0
        %v1110 = vpop.f32.mrb[0].mxu0
        %v1111 = vpop.f32.mrb[0].mxu0
        %1112 = vdwg.mxu0
        %1114 = vrot.lane.b32.xlu0 %v1108, 120
        %v1115 = vpop.permute.xlu0 %1114
        %1117 = vrot.lane.b32.xlu0 %v1108, 112
        %v1118 = vpop.permute.xlu0 %1117
        %1120 = vrot.lane.b32.xlu0 %v1108, 104
        %v1121 = vpop.permute.xlu0 %1120
        %v1123 = vcombine.low %v1108, %v1118
        %v1124 = vcombine.high %v1108, %v1118
        %v1126 = vunpack.c.l.s4 1983009808
        %v1127 = vunpack.c.0.s8 %v1126
        %v1128 = vlaneseq
        %v1129 = vshrl.u32 %v1128, 7
        %v1130 = vsub.s32 %v1127, %v1129
        %v1131 = vrot.slane %v1123, %v1130
        %v1133 = vunpack.c.l.s4 1983009808
        %v1134 = vunpack.c.0.s8 %v1133
        %v1135 = vlaneseq
        %v1136 = vshrl.u32 %v1135, 7
        %v1137 = vsub.s32 %v1134, %v1136
        %v1138 = vrot.slane %v1124, %v1137
        %v1139 = vcombine.low %v1115, %v1121
        %v1140 = vcombine.high %v1115, %v1121
        %v1142 = vunpack.c.l.s4 1983009808
        %v1143 = vunpack.c.0.s8 %v1142
        %v1144 = vlaneseq
        %v1145 = vshrl.u32 %v1144, 7
        %v1146 = vsub.s32 %v1143, %v1145
        %v1147 = vrot.slane %v1139, %v1146
        %v1149 = vunpack.c.l.s4 1983009808
        %v1150 = vunpack.c.0.s8 %v1149
        %v1151 = vlaneseq
        %v1152 = vshrl.u32 %v1151, 7
        %v1153 = vsub.s32 %v1150, %v1152
        %v1154 = vrot.slane %v1140, %v1153
        %v1155 = vcombine.low %v1131, %v1147
        %v1156 = vcombine.high %v1131, %v1147
        %v1158 = vunpack.c.l.s4 1934713408
        %v1159 = vunpack.c.0.s8 %v1158
        %v1160 = vlaneseq
        %v1161 = vshrl.u32 %v1160, 7
        %v1162 = vsub.s32 %v1159, %v1161
        %v1163 = vrot.slane %v1155, %v1162
        %v1165 = vunpack.c.l.s4 1934713408
        %v1166 = vunpack.c.0.s8 %v1165
        %v1167 = vlaneseq
        %v1168 = vshrl.u32 %v1167, 7
        %v1169 = vsub.s32 %v1166, %v1168
        %v1170 = vrot.slane %v1156, %v1169
        %v1171 = vcombine.low %v1138, %v1154
        %v1172 = vcombine.high %v1138, %v1154
        %v1174 = vunpack.c.l.s4 1934713408
        %v1175 = vunpack.c.0.s8 %v1174
        %v1176 = vlaneseq
        %v1177 = vshrl.u32 %v1176, 7
        %v1178 = vsub.s32 %v1175, %v1177
        %v1179 = vrot.slane %v1171, %v1178
        %v1181 = vunpack.c.l.s4 1934713408
        %v1182 = vunpack.c.0.s8 %v1181
        %v1183 = vlaneseq
        %v1184 = vshrl.u32 %v1183, 7
        %v1185 = vsub.s32 %v1182, %v1184
        %v1186 = vrot.slane %v1172, %v1185
        %v1187 = vcombine.high %v1163, 0.0
        %v1188 = vcombine.high %v1170, 0.0
        %v1189 = vcombine.high %v1179, 0.0
        %v1190 = vcombine.high %v1186, 0.0
        %v1191 = vcombine.low %v1163, %v1170
        %v1193 = vunpack.c.l.s4 1983009808
        %v1194 = vunpack.c.0.s8 %v1193
        %v1195 = vlaneseq
        %v1196 = vshrl.u32 %v1195, 7
        %v1197 = vsub.s32 %v1194, %v1196
        %v1198 = vrot.slane %v1191, %v1197
        %v1199 = vcombine.low %v1187, %v1188
        %v1201 = vunpack.c.l.s4 1983009808
        %v1202 = vunpack.c.0.s8 %v1201
        %v1203 = vlaneseq
        %v1204 = vshrl.u32 %v1203, 7
        %v1205 = vsub.s32 %v1202, %v1204
        %v1206 = vrot.slane %v1199, %v1205
        %v1207 = vcombine.low %v1179, %v1186
        %v1209 = vunpack.c.l.s4 1983009808
        %v1210 = vunpack.c.0.s8 %v1209
        %v1211 = vlaneseq
        %v1212 = vshrl.u32 %v1211, 7
        %v1213 = vsub.s32 %v1210, %v1212
        %v1214 = vrot.slane %v1207, %v1213
        %v1215 = vcombine.low %v1189, %v1190
        %v1217 = vunpack.c.l.s4 1983009808
        %v1218 = vunpack.c.0.s8 %v1217
        %v1219 = vlaneseq
        %v1220 = vshrl.u32 %v1219, 7
        %v1221 = vsub.s32 %v1218, %v1220
        %v1222 = vrot.slane %v1215, %v1221
        %v1223 = vcombine.low %v1198, %v1206
        %v1224 = vcombine.high %v1198, %v1206
        %v1226 = vunpack.c.l.s4 1934713408
        %v1227 = vunpack.c.0.s8 %v1226
        %v1228 = vlaneseq
        %v1229 = vshrl.u32 %v1228, 7
        %v1230 = vsub.s32 %v1227, %v1229
        %v1231 = vrot.slane %v1223, %v1230
        %v1233 = vunpack.c.l.s4 1934713408
        %v1234 = vunpack.c.0.s8 %v1233
        %v1235 = vlaneseq
        %v1236 = vshrl.u32 %v1235, 7
        %v1237 = vsub.s32 %v1234, %v1236
        %v1238 = vrot.slane %v1224, %v1237
        %v1239 = vcombine.low %v1214, %v1222
        %v1240 = vcombine.high %v1214, %v1222
        %v1242 = vunpack.c.l.s4 1934713408
        %v1243 = vunpack.c.0.s8 %v1242
        %v1244 = vlaneseq
        %v1245 = vshrl.u32 %v1244, 7
        %v1246 = vsub.s32 %v1243, %v1245
        %v1247 = vrot.slane %v1239, %v1246
        %v1249 = vunpack.c.l.s4 1934713408
        %v1250 = vunpack.c.0.s8 %v1249
        %v1251 = vlaneseq
        %v1252 = vshrl.u32 %v1251, 7
        %v1253 = vsub.s32 %v1250, %v1252
        %v1254 = vrot.slane %v1240, %v1253
        %v1255 = vcombine.low %v1231, %v1247
        %v1256 = vcombine.high %v1231, %v1247
        %v1257 = vcombine.low %v1238, %v1254
        %v1258 = vcombine.high %v1238, %v1254
        %v1259 = vpack.c.bf16 %v1255, %v1255
        %v1260 = vpack.c.bf16 %v1256, %v1256
        %v1261 = vpack.c.bf16 %v1257, %v1257
        %v1262 = vpack.c.bf16 %v1258, %v1258
        %v1263 = vld [vmem:[%s586] sm:$0x1]
        %v1264 = vld [vmem:[#allocation2] sm:$0xf]
        %v1265 = vld [vmem:[#allocation2 + $0x4] sm:$0xf]
        %v1266 = vld [vmem:[#allocation2 + $0x8] sm:$0xf]
        %v1267 = vld [vmem:[#allocation2 + $0xc] sm:$0xf]
        %v1269 = vlaneseq
        %v1270 = vshrl.u32 %v1269, 7
        %v1271 = vsub.s32 0, %v1270
        %v1272 = vrot.slane %v1263, %v1271
        %vm1274 = vcmask 64512
        %v1276 = vsel %vm1274, %v1259, 0
        %v1279 = vsel %vm1274, %v1264, 0
        %1281 = vmatprep.subr.bf16.mxu0 0
        %1282 = vmatpush1.bf16.xpose.msra.mxu0 %v1279
        %1283 = vmatprep.subr.bf16.mxu0 0
        %1284 = vmatpush1.bf16.xpose.msra.mxu0 0
        %1285 = vmatprep.subr.bf16.mxu0 0
        %1286 = vmatpush1.bf16.xpose.msra.mxu0 0
        %1287 = vmatprep.subr.bf16.mxu0 0
        %1288 = vmatpush1.bf16.xpose.msra.mxu0 0
        %1289 = vmatprep.subr.bf16.mxu0 0
        %1290 = vmatpush1.bf16.xpose.msra.mxu0 0
        %1291 = vmatprep.subr.bf16.mxu0 0
        %1292 = vmatpush1.bf16.xpose.msra.mxu0 0
        %1293 = vmatprep.subr.bf16.mxu0 0
        %1294 = vmatpush1.bf16.xpose.msra.mxu0 0
        %1295 = vmatprep.subr.bf16.mxu0 0
        %1296 = vmatpush1.bf16.xpose.msra.mxu0 0
        %1297 = vmatprep.subr.bf16.mxu0 0
        %1298 = vmatpush1.bf16.xpose.msra.mxu0 0
        %1299 = vmatprep.subr.bf16.mxu0 0
        %1300 = vmatpush1.bf16.xpose.msra.mxu0 0
        %1301 = vmatprep.subr.bf16.mxu0 0
        %1302 = vmatpush1.bf16.xpose.msra.mxu0 0
        %1303 = vmatprep.subr.bf16.mxu0 0
        %1304 = vmatpush1.bf16.xpose.msra.mxu0 0
        %1305 = vmatprep.subr.bf16.mxu0 0
        %1306 = vmatpush1.bf16.xpose.msra.mxu0 0
        %1307 = vmatprep.subr.bf16.mxu0 0
        %1308 = vmatpush1.bf16.xpose.msra.mxu0 0
        %1309 = vmatprep.subr.bf16.mxu0 0
        %1310 = vmatpush1.bf16.xpose.msra.mxu0 0
        %1311 = vmatprep.subr.bf16.mxu0 0
        %1312 = vmatpush1.bf16.xpose.msra.mxu0 0
        %1313 = vmatprep.mubr.bf16.mxu0 0
        %1314 = vmatmul.mubr.bf16.gmra.mrb[0].mxu0 %v1276
        %v1315 = vpop.f32.mrb[0].mxu0
        %v1316 = vadd.f32 %v1272, %v1315
        %v1317 = vpop.f32.mrb[0].mxu0
        %v1318 = vpop.f32.mrb[0].mxu0
        %v1319 = vpop.f32.mrb[0].mxu0
        %1320 = vdwg.mxu0
        %v1322 = vsel %vm1274, %v1260, 0
        %v1325 = vsel %vm1274, %v1265, 0
        %1327 = vmatprep.subr.bf16.mxu0 0
        %1328 = vmatpush1.bf16.xpose.msra.mxu0 %v1325
        %1329 = vmatprep.subr.bf16.mxu0 0
        %1330 = vmatpush1.bf16.xpose.msra.mxu0 0
        %1331 = vmatprep.subr.bf16.mxu0 0
        %1332 = vmatpush1.bf16.xpose.msra.mxu0 0
        %1333 = vmatprep.subr.bf16.mxu0 0
        %1334 = vmatpush1.bf16.xpose.msra.mxu0 0
        %1335 = vmatprep.subr.bf16.mxu0 0
        %1336 = vmatpush1.bf16.xpose.msra.mxu0 0
        %1337 = vmatprep.subr.bf16.mxu0 0
        %1338 = vmatpush1.bf16.xpose.msra.mxu0 0
        %1339 = vmatprep.subr.bf16.mxu0 0
        %1340 = vmatpush1.bf16.xpose.msra.mxu0 0
        %1341 = vmatprep.subr.bf16.mxu0 0
        %1342 = vmatpush1.bf16.xpose.msra.mxu0 0
        %1343 = vmatprep.subr.bf16.mxu0 0
        %1344 = vmatpush1.bf16.xpose.msra.mxu0 0
        %1345 = vmatprep.subr.bf16.mxu0 0
        %1346 = vmatpush1.bf16.xpose.msra.mxu0 0
        %1347 = vmatprep.subr.bf16.mxu0 0
        %1348 = vmatpush1.bf16.xpose.msra.mxu0 0
        %1349 = vmatprep.subr.bf16.mxu0 0
        %1350 = vmatpush1.bf16.xpose.msra.mxu0 0
        %1351 = vmatprep.subr.bf16.mxu0 0
        %1352 = vmatpush1.bf16.xpose.msra.mxu0 0
        %1353 = vmatprep.subr.bf16.mxu0 0
        %1354 = vmatpush1.bf16.xpose.msra.mxu0 0
        %1355 = vmatprep.subr.bf16.mxu0 0
        %1356 = vmatpush1.bf16.xpose.msra.mxu0 0
        %1357 = vmatprep.subr.bf16.mxu0 0
        %1358 = vmatpush1.bf16.xpose.msra.mxu0 0
        %1359 = vmatprep.mubr.bf16.mxu0 0
        %1360 = vmatmul.mubr.bf16.gmra.mrb[0].mxu0 %v1322
        %v1361 = vpop.f32.mrb[0].mxu0
        %v1362 = vadd.f32 %v1272, %v1361
        %v1363 = vpop.f32.mrb[0].mxu0
        %v1364 = vpop.f32.mrb[0].mxu0
        %v1365 = vpop.f32.mrb[0].mxu0
        %1366 = vdwg.mxu0
        %v1368 = vsel %vm1274, %v1261, 0
        %v1371 = vsel %vm1274, %v1266, 0
        %1373 = vmatprep.subr.bf16.mxu0 0
        %1374 = vmatpush1.bf16.xpose.msra.mxu0 %v1371
        %1375 = vmatprep.subr.bf16.mxu0 0
        %1376 = vmatpush1.bf16.xpose.msra.mxu0 0
        %1377 = vmatprep.subr.bf16.mxu0 0
        %1378 = vmatpush1.bf16.xpose.msra.mxu0 0
        %1379 = vmatprep.subr.bf16.mxu0 0
        %1380 = vmatpush1.bf16.xpose.msra.mxu0 0
        %1381 = vmatprep.subr.bf16.mxu0 0
        %1382 = vmatpush1.bf16.xpose.msra.mxu0 0
        %1383 = vmatprep.subr.bf16.mxu0 0
        %1384 = vmatpush1.bf16.xpose.msra.mxu0 0
        %1385 = vmatprep.subr.bf16.mxu0 0
        %1386 = vmatpush1.bf16.xpose.msra.mxu0 0
        %1387 = vmatprep.subr.bf16.mxu0 0
        %1388 = vmatpush1.bf16.xpose.msra.mxu0 0
        %1389 = vmatprep.subr.bf16.mxu0 0
        %1390 = vmatpush1.bf16.xpose.msra.mxu0 0
        %1391 = vmatprep.subr.bf16.mxu0 0
        %1392 = vmatpush1.bf16.xpose.msra.mxu0 0
        %1393 = vmatprep.subr.bf16.mxu0 0
        %1394 = vmatpush1.bf16.xpose.msra.mxu0 0
        %1395 = vmatprep.subr.bf16.mxu0 0
        %1396 = vmatpush1.bf16.xpose.msra.mxu0 0
        %1397 = vmatprep.subr.bf16.mxu0 0
        %1398 = vmatpush1.bf16.xpose.msra.mxu0 0
        %1399 = vmatprep.subr.bf16.mxu0 0
        %1400 = vmatpush1.bf16.xpose.msra.mxu0 0
        %1401 = vmatprep.subr.bf16.mxu0 0
        %1402 = vmatpush1.bf16.xpose.msra.mxu0 0
        %1403 = vmatprep.subr.bf16.mxu0 0
        %1404 = vmatpush1.bf16.xpose.msra.mxu0 0
        %1405 = vmatprep.mubr.bf16.mxu0 0
        %1406 = vmatmul.mubr.bf16.gmra.mrb[0].mxu0 %v1368
        %v1407 = vpop.f32.mrb[0].mxu0
        %v1408 = vadd.f32 %v1272, %v1407
        %v1409 = vpop.f32.mrb[0].mxu0
        %v1410 = vpop.f32.mrb[0].mxu0
        %v1411 = vpop.f32.mrb[0].mxu0
        %1412 = vdwg.mxu0
        %v1414 = vsel %vm1274, %v1262, 0
        %v1417 = vsel %vm1274, %v1267, 0
        %1419 = vmatprep.subr.bf16.mxu0 0
        %1420 = vmatpush1.bf16.xpose.msra.mxu0 %v1417
        %1421 = vmatprep.subr.bf16.mxu0 0
        %1422 = vmatpush1.bf16.xpose.msra.mxu0 0
        %1423 = vmatprep.subr.bf16.mxu0 0
        %1424 = vmatpush1.bf16.xpose.msra.mxu0 0
        %1425 = vmatprep.subr.bf16.mxu0 0
        %1426 = vmatpush1.bf16.xpose.msra.mxu0 0
        %1427 = vmatprep.subr.bf16.mxu0 0
        %1428 = vmatpush1.bf16.xpose.msra.mxu0 0
        %1429 = vmatprep.subr.bf16.mxu0 0
        %1430 = vmatpush1.bf16.xpose.msra.mxu0 0
        %1431 = vmatprep.subr.bf16.mxu0 0
        %1432 = vmatpush1.bf16.xpose.msra.mxu0 0
        %1433 = vmatprep.subr.bf16.mxu0 0
        %1434 = vmatpush1.bf16.xpose.msra.mxu0 0
        %1435 = vmatprep.subr.bf16.mxu0 0
        %1436 = vmatpush1.bf16.xpose.msra.mxu0 0
        %1437 = vmatprep.subr.bf16.mxu0 0
        %1438 = vmatpush1.bf16.xpose.msra.mxu0 0
        %1439 = vmatprep.subr.bf16.mxu0 0
        %1440 = vmatpush1.bf16.xpose.msra.mxu0 0
        %1441 = vmatprep.subr.bf16.mxu0 0
        %1442 = vmatpush1.bf16.xpose.msra.mxu0 0
        %1443 = vmatprep.subr.bf16.mxu0 0
        %1444 = vmatpush1.bf16.xpose.msra.mxu0 0
        %1445 = vmatprep.subr.bf16.mxu0 0
        %1446 = vmatpush1.bf16.xpose.msra.mxu0 0
        %1447 = vmatprep.subr.bf16.mxu0 0
        %1448 = vmatpush1.bf16.xpose.msra.mxu0 0
        %1449 = vmatprep.subr.bf16.mxu0 0
        %1450 = vmatpush1.bf16.xpose.msra.mxu0 0
        %1451 = vmatprep.mubr.bf16.mxu0 0
        %1452 = vmatmul.mubr.bf16.gmra.mrb[0].mxu0 %v1414
        %v1453 = vpop.f32.mrb[0].mxu0
        %v1454 = vadd.f32 %v1272, %v1453
        %v1455 = vpop.f32.mrb[0].mxu0
        %v1456 = vpop.f32.mrb[0].mxu0
        %v1457 = vpop.f32.mrb[0].mxu0
        %1458 = vdwg.mxu0
        %v1459 = vsel %vm1274, %v1316, -inf
        %1460 = vmax.xlane.f32.xlu0 %v1459
        %v1461 = vpop.xlane.xlu0 %1460
        %v1462 = vsel %vm1274, %v1362, -inf
        %1463 = vmax.xlane.f32.xlu0 %v1462
        %v1464 = vpop.xlane.xlu0 %1463
        %v1465 = vsel %vm1274, %v1408, -inf
        %1466 = vmax.xlane.f32.xlu0 %v1465
        %v1467 = vpop.xlane.xlu0 %1466
        %v1468 = vsel %vm1274, %v1454, -inf
        %1469 = vmax.xlane.f32.xlu0 %v1468
        %v1470 = vpop.xlane.xlu0 %1469
        %v1471 = vsub.f32 %v1316, %v1461
        %v1472 = vsub.f32 %v1362, %v1464
        %v1473 = vsub.f32 %v1408, %v1467
        %v1474 = vsub.f32 %v1454, %v1470
        %v1475 = vmul.f32 %v1471, 1.442695
        %v1476 = vpow.pop %v1475
        %v1477 = vmul.f32 %v1472, 1.442695
        %v1478 = vpow.pop %v1477
        %v1479 = vmul.f32 %v1473, 1.442695
        %v1480 = vpow.pop %v1479
        %v1481 = vmul.f32 %v1474, 1.442695
        %v1482 = vpow.pop %v1481
        %v1483 = vsel %vm1274, %v1476, 0.0
        %1484 = vadd.xlane.f32.xlu0 %v1483
        %v1485 = vpop.xlane.xlu0 %1484
        %v1486 = vsel %vm1274, %v1478, 0.0
        %1487 = vadd.xlane.f32.xlu0 %v1486
        %v1488 = vpop.xlane.xlu0 %1487
        %v1489 = vsel %vm1274, %v1480, 0.0
        %1490 = vadd.xlane.f32.xlu0 %v1489
        %v1491 = vpop.xlane.xlu0 %1490
        %v1492 = vsel %vm1274, %v1482, 0.0
        %1493 = vadd.xlane.f32.xlu0 %v1492
        %v1494 = vpop.xlane.xlu0 %1493
        %v1495 = vrcp.pop %v1485
        %v1496 = vrcp.pop %v1488
        %v1497 = vrcp.pop %v1491
        %v1498 = vrcp.pop %v1494
        %v1499 = vmul.f32 %v1476, %v1495
        %v1500 = vmul.f32 %v1478, %v1496
        %v1501 = vmul.f32 %v1480, %v1497
        %v1502 = vmul.f32 %v1482, %v1498
        %v1503 = vpack.c.bf16 %v1499, %v1499
        %v1504 = vpack.c.bf16 %v1500, %v1500
        %v1505 = vpack.c.bf16 %v1501, %v1501
        %v1506 = vpack.c.bf16 %v1502, %v1502
        %v1507 = vld [vmem:[#allocation3] sm:$0xf]
        %v1508 = vld [vmem:[#allocation3 + $0x4] sm:$0xf]
        %v1509 = vld [vmem:[#allocation3 + $0x8] sm:$0xf]
        %v1510 = vld [vmem:[#allocation3 + $0xc] sm:$0xf]
        %v1512 = vsel %vm1274, %v1503, 0
        %vm1514 = vcmask 1043456
        %v1516 = vsel %vm1514, %v1507, 0
        %1518 = vmatprep.subr.bf16.mxu0 0
        %1519 = vmatpush1.bf16.msra.mxu0 %v1516
        %1520 = vmatprep.subr.bf16.mxu0 0
        %1521 = vmatpush1.bf16.msra.mxu0 0
        %1522 = vmatprep.subr.bf16.mxu0 0
        %1523 = vmatpush1.bf16.msra.mxu0 0
        %1524 = vmatprep.subr.bf16.mxu0 0
        %1525 = vmatpush1.bf16.msra.mxu0 0
        %1526 = vmatprep.subr.bf16.mxu0 0
        %1527 = vmatpush1.bf16.msra.mxu0 0
        %1528 = vmatprep.subr.bf16.mxu0 0
        %1529 = vmatpush1.bf16.msra.mxu0 0
        %1530 = vmatprep.subr.bf16.mxu0 0
        %1531 = vmatpush1.bf16.msra.mxu0 0
        %1532 = vmatprep.subr.bf16.mxu0 0
        %1533 = vmatpush1.bf16.msra.mxu0 0
        %1534 = vmatprep.subr.bf16.mxu0 0
        %1535 = vmatpush1.bf16.msra.mxu0 0
        %1536 = vmatprep.subr.bf16.mxu0 0
        %1537 = vmatpush1.bf16.msra.mxu0 0
        %1538 = vmatprep.subr.bf16.mxu0 0
        %1539 = vmatpush1.bf16.msra.mxu0 0
        %1540 = vmatprep.subr.bf16.mxu0 0
        %1541 = vmatpush1.bf16.msra.mxu0 0
        %1542 = vmatprep.subr.bf16.mxu0 0
        %1543 = vmatpush1.bf16.msra.mxu0 0
        %1544 = vmatprep.subr.bf16.mxu0 0
        %1545 = vmatpush1.bf16.msra.mxu0 0
        %1546 = vmatprep.subr.bf16.mxu0 0
        %1547 = vmatpush1.bf16.msra.mxu0 0
        %1548 = vmatprep.subr.bf16.mxu0 0
        %1549 = vmatpush1.bf16.msra.mxu0 0
        %1550 = vmatprep.mubr.bf16.mxu0 0
        %1551 = vmatmul.mubr.bf16.gmra.mrb[0].mxu0 %v1512
        %v1552 = vpop.f32.mrb[0].mxu0
        %v1553 = vadd.f32 0.0, %v1552
        %v1554 = vpop.f32.mrb[0].mxu0
        %v1555 = vpop.f32.mrb[0].mxu0
        %v1556 = vpop.f32.mrb[0].mxu0
        %1557 = vdwg.mxu0
        %v1559 = vsel %vm1274, %v1504, 0
        %v1562 = vsel %vm1514, %v1508, 0
        %1564 = vmatprep.subr.bf16.mxu0 0
        %1565 = vmatpush1.bf16.msra.mxu0 %v1562
        %1566 = vmatprep.subr.bf16.mxu0 0
        %1567 = vmatpush1.bf16.msra.mxu0 0
        %1568 = vmatprep.subr.bf16.mxu0 0
        %1569 = vmatpush1.bf16.msra.mxu0 0
        %1570 = vmatprep.subr.bf16.mxu0 0
        %1571 = vmatpush1.bf16.msra.mxu0 0
        %1572 = vmatprep.subr.bf16.mxu0 0
        %1573 = vmatpush1.bf16.msra.mxu0 0
        %1574 = vmatprep.subr.bf16.mxu0 0
        %1575 = vmatpush1.bf16.msra.mxu0 0
        %1576 = vmatprep.subr.bf16.mxu0 0
        %1577 = vmatpush1.bf16.msra.mxu0 0
        %1578 = vmatprep.subr.bf16.mxu0 0
        %1579 = vmatpush1.bf16.msra.mxu0 0
        %1580 = vmatprep.subr.bf16.mxu0 0
        %1581 = vmatpush1.bf16.msra.mxu0 0
        %1582 = vmatprep.subr.bf16.mxu0 0
        %1583 = vmatpush1.bf16.msra.mxu0 0
        %1584 = vmatprep.subr.bf16.mxu0 0
        %1585 = vmatpush1.bf16.msra.mxu0 0
        %1586 = vmatprep.subr.bf16.mxu0 0
        %1587 = vmatpush1.bf16.msra.mxu0 0
        %1588 = vmatprep.subr.bf16.mxu0 0
        %1589 = vmatpush1.bf16.msra.mxu0 0
        %1590 = vmatprep.subr.bf16.mxu0 0
        %1591 = vmatpush1.bf16.msra.mxu0 0
        %1592 = vmatprep.subr.bf16.mxu0 0
        %1593 = vmatpush1.bf16.msra.mxu0 0
        %1594 = vmatprep.subr.bf16.mxu0 0
        %1595 = vmatpush1.bf16.msra.mxu0 0
        %1596 = vmatprep.mubr.bf16.mxu0 0
        %1597 = vmatmul.mubr.bf16.gmra.mrb[0].mxu0 %v1559
        %v1598 = vpop.f32.mrb[0].mxu0
        %v1599 = vadd.f32 0.0, %v1598
        %v1600 = vpop.f32.mrb[0].mxu0
        %v1601 = vpop.f32.mrb[0].mxu0
        %v1602 = vpop.f32.mrb[0].mxu0
        %1603 = vdwg.mxu0
        %v1605 = vsel %vm1274, %v1505, 0
        %v1608 = vsel %vm1514, %v1509, 0
        %1610 = vmatprep.subr.bf16.mxu0 0
        %1611 = vmatpush1.bf16.msra.mxu0 %v1608
        %1612 = vmatprep.subr.bf16.mxu0 0
        %1613 = vmatpush1.bf16.msra.mxu0 0
        %1614 = vmatprep.subr.bf16.mxu0 0
        %1615 = vmatpush1.bf16.msra.mxu0 0
        %1616 = vmatprep.subr.bf16.mxu0 0
        %1617 = vmatpush1.bf16.msra.mxu0 0
        %1618 = vmatprep.subr.bf16.mxu0 0
        %1619 = vmatpush1.bf16.msra.mxu0 0
        %1620 = vmatprep.subr.bf16.mxu0 0
        %1621 = vmatpush1.bf16.msra.mxu0 0
        %1622 = vmatprep.subr.bf16.mxu0 0
        %1623 = vmatpush1.bf16.msra.mxu0 0
        %1624 = vmatprep.subr.bf16.mxu0 0
        %1625 = vmatpush1.bf16.msra.mxu0 0
        %1626 = vmatprep.subr.bf16.mxu0 0
        %1627 = vmatpush1.bf16.msra.mxu0 0
        %1628 = vmatprep.subr.bf16.mxu0 0
        %1629 = vmatpush1.bf16.msra.mxu0 0
        %1630 = vmatprep.subr.bf16.mxu0 0
        %1631 = vmatpush1.bf16.msra.mxu0 0
        %1632 = vmatprep.subr.bf16.mxu0 0
        %1633 = vmatpush1.bf16.msra.mxu0 0
        %1634 = vmatprep.subr.bf16.mxu0 0
        %1635 = vmatpush1.bf16.msra.mxu0 0
        %1636 = vmatprep.subr.bf16.mxu0 0
        %1637 = vmatpush1.bf16.msra.mxu0 0
        %1638 = vmatprep.subr.bf16.mxu0 0
        %1639 = vmatpush1.bf16.msra.mxu0 0
        %1640 = vmatprep.subr.bf16.mxu0 0
        %1641 = vmatpush1.bf16.msra.mxu0 0
        %1642 = vmatprep.mubr.bf16.mxu0 0
        %1643 = vmatmul.mubr.bf16.gmra.mrb[0].mxu0 %v1605
        %v1644 = vpop.f32.mrb[0].mxu0
        %v1645 = vadd.f32 0.0, %v1644
        %v1646 = vpop.f32.mrb[0].mxu0
        %v1647 = vpop.f32.mrb[0].mxu0
        %v1648 = vpop.f32.mrb[0].mxu0
        %1649 = vdwg.mxu0
        %v1651 = vsel %vm1274, %v1506, 0
        %v1654 = vsel %vm1514, %v1510, 0
        %1656 = vmatprep.subr.bf16.mxu0 0
        %1657 = vmatpush1.bf16.msra.mxu0 %v1654
        %1658 = vmatprep.subr.bf16.mxu0 0
        %1659 = vmatpush1.bf16.msra.mxu0 0
        %1660 = vmatprep.subr.bf16.mxu0 0
        %1661 = vmatpush1.bf16.msra.mxu0 0
        %1662 = vmatprep.subr.bf16.mxu0 0
        %1663 = vmatpush1.bf16.msra.mxu0 0
        %1664 = vmatprep.subr.bf16.mxu0 0
        %1665 = vmatpush1.bf16.msra.mxu0 0
        %1666 = vmatprep.subr.bf16.mxu0 0
        %1667 = vmatpush1.bf16.msra.mxu0 0
        %1668 = vmatprep.subr.bf16.mxu0 0
        %1669 = vmatpush1.bf16.msra.mxu0 0
        %1670 = vmatprep.subr.bf16.mxu0 0
        %1671 = vmatpush1.bf16.msra.mxu0 0
        %1672 = vmatprep.subr.bf16.mxu0 0
        %1673 = vmatpush1.bf16.msra.mxu0 0
        %1674 = vmatprep.subr.bf16.mxu0 0
        %1675 = vmatpush1.bf16.msra.mxu0 0
        %1676 = vmatprep.subr.bf16.mxu0 0
        %1677 = vmatpush1.bf16.msra.mxu0 0
        %1678 = vmatprep.subr.bf16.mxu0 0
        %1679 = vmatpush1.bf16.msra.mxu0 0
        %1680 = vmatprep.subr.bf16.mxu0 0
        %1681 = vmatpush1.bf16.msra.mxu0 0
        %1682 = vmatprep.subr.bf16.mxu0 0
        %1683 = vmatpush1.bf16.msra.mxu0 0
        %1684 = vmatprep.subr.bf16.mxu0 0
        %1685 = vmatpush1.bf16.msra.mxu0 0
        %1686 = vmatprep.subr.bf16.mxu0 0
        %1687 = vmatpush1.bf16.msra.mxu0 0
        %1688 = vmatprep.mubr.bf16.mxu0 0
        %1689 = vmatmul.mubr.bf16.gmra.mrb[0].mxu0 %v1651
        %v1690 = vpop.f32.mrb[0].mxu0
        %v1691 = vadd.f32 0.0, %v1690
        %v1692 = vpop.f32.mrb[0].mxu0
        %v1693 = vpop.f32.mrb[0].mxu0
        %v1694 = vpop.f32.mrb[0].mxu0
        %1695 = vdwg.mxu0
        %v1696 = vcombine.low %v1553, %v1645
        %v1697 = vcombine.high %v1553, %v1645
        %v1699 = vunpack.c.l.s4 1983009808
        %v1700 = vunpack.c.0.s8 %v1699
        %v1701 = vlaneseq
        %v1702 = vshrl.u32 %v1701, 7
        %v1703 = vsub.s32 %v1700, %v1702
        %v1704 = vrot.slane %v1696, %v1703
        %v1706 = vunpack.c.l.s4 1983009808
        %v1707 = vunpack.c.0.s8 %v1706
        %v1708 = vlaneseq
        %v1709 = vshrl.u32 %v1708, 7
        %v1710 = vsub.s32 %v1707, %v1709
        %v1711 = vrot.slane %v1697, %v1710
        %v1712 = vcombine.low %v1599, %v1691
        %v1713 = vcombine.high %v1599, %v1691
        %v1715 = vunpack.c.l.s4 1983009808
        %v1716 = vunpack.c.0.s8 %v1715
        %v1717 = vlaneseq
        %v1718 = vshrl.u32 %v1717, 7
        %v1719 = vsub.s32 %v1716, %v1718
        %v1720 = vrot.slane %v1712, %v1719
        %v1722 = vunpack.c.l.s4 1983009808
        %v1723 = vunpack.c.0.s8 %v1722
        %v1724 = vlaneseq
        %v1725 = vshrl.u32 %v1724, 7
        %v1726 = vsub.s32 %v1723, %v1725
        %v1727 = vrot.slane %v1713, %v1726
        %v1728 = vcombine.low %v1704, %v1720
        %v1729 = vcombine.high %v1704, %v1720
        %v1731 = vunpack.c.l.s4 1934713408
        %v1732 = vunpack.c.0.s8 %v1731
        %v1733 = vlaneseq
        %v1734 = vshrl.u32 %v1733, 7
        %v1735 = vsub.s32 %v1732, %v1734
        %v1736 = vrot.slane %v1728, %v1735
        %v1738 = vunpack.c.l.s4 1934713408
        %v1739 = vunpack.c.0.s8 %v1738
        %v1740 = vlaneseq
        %v1741 = vshrl.u32 %v1740, 7
        %v1742 = vsub.s32 %v1739, %v1741
        %v1743 = vrot.slane %v1729, %v1742
        %v1744 = vcombine.low %v1711, %v1727
        %v1745 = vcombine.high %v1711, %v1727
        %v1747 = vunpack.c.l.s4 1934713408
        %v1748 = vunpack.c.0.s8 %v1747
        %v1749 = vlaneseq
        %v1750 = vshrl.u32 %v1749, 7
        %v1751 = vsub.s32 %v1748, %v1750
        %v1752 = vrot.slane %v1744, %v1751
        %v1754 = vunpack.c.l.s4 1934713408
        %v1755 = vunpack.c.0.s8 %v1754
        %v1756 = vlaneseq
        %v1757 = vshrl.u32 %v1756, 7
        %v1758 = vsub.s32 %v1755, %v1757
        %v1759 = vrot.slane %v1745, %v1758
        %v1760 = vcombine.high %v1736, 0.0
        %v1761 = vcombine.high %v1743, 0.0
        %v1762 = vcombine.high %v1752, 0.0
        %v1763 = vcombine.high %v1759, 0.0
        %v1764 = vcombine.low %v1736, %v1743
        %v1766 = vunpack.c.l.s4 1983009808
        %v1767 = vunpack.c.0.s8 %v1766
        %v1768 = vlaneseq
        %v1769 = vshrl.u32 %v1768, 7
        %v1770 = vsub.s32 %v1767, %v1769
        %v1771 = vrot.slane %v1764, %v1770
        %v1772 = vcombine.low %v1760, %v1761
        %v1774 = vunpack.c.l.s4 1983009808
        %v1775 = vunpack.c.0.s8 %v1774
        %v1776 = vlaneseq
        %v1777 = vshrl.u32 %v1776, 7
        %v1778 = vsub.s32 %v1775, %v1777
        %v1779 = vrot.slane %v1772, %v1778
        %v1780 = vcombine.low %v1752, %v1759
        %v1782 = vunpack.c.l.s4 1983009808
        %v1783 = vunpack.c.0.s8 %v1782
        %v1784 = vlaneseq
        %v1785 = vshrl.u32 %v1784, 7
        %v1786 = vsub.s32 %v1783, %v1785
        %v1787 = vrot.slane %v1780, %v1786
        %v1788 = vcombine.low %v1762, %v1763
        %v1790 = vunpack.c.l.s4 1983009808
        %v1791 = vunpack.c.0.s8 %v1790
        %v1792 = vlaneseq
        %v1793 = vshrl.u32 %v1792, 7
        %v1794 = vsub.s32 %v1791, %v1793
        %v1795 = vrot.slane %v1788, %v1794
        %v1796 = vcombine.low %v1771, %v1779
        %v1797 = vcombine.high %v1771, %v1779
        %v1799 = vunpack.c.l.s4 1934713408
        %v1800 = vunpack.c.0.s8 %v1799
        %v1801 = vlaneseq
        %v1802 = vshrl.u32 %v1801, 7
        %v1803 = vsub.s32 %v1800, %v1802
        %v1804 = vrot.slane %v1796, %v1803
        %v1806 = vunpack.c.l.s4 1934713408
        %v1807 = vunpack.c.0.s8 %v1806
        %v1808 = vlaneseq
        %v1809 = vshrl.u32 %v1808, 7
        %v1810 = vsub.s32 %v1807, %v1809
        %v1811 = vrot.slane %v1797, %v1810
        %v1812 = vcombine.low %v1787, %v1795
        %v1813 = vcombine.high %v1787, %v1795
        %v1815 = vunpack.c.l.s4 1934713408
        %v1816 = vunpack.c.0.s8 %v1815
        %v1817 = vlaneseq
        %v1818 = vshrl.u32 %v1817, 7
        %v1819 = vsub.s32 %v1816, %v1818
        %v1820 = vrot.slane %v1812, %v1819
        %v1822 = vunpack.c.l.s4 1934713408
        %v1823 = vunpack.c.0.s8 %v1822
        %v1824 = vlaneseq
        %v1825 = vshrl.u32 %v1824, 7
        %v1826 = vsub.s32 %v1823, %v1825
        %v1827 = vrot.slane %v1813, %v1826
        %v1828 = vcombine.low %v1804, %v1820
        %v1829 = vcombine.high %v1804, %v1820
        %v1830 = vcombine.low %v1811, %v1827
        %v1831 = vcombine.high %v1811, %v1827
        %1833 = vrot.lane.b32.xlu0 %v1829, 8
        %v1834 = vpop.permute.xlu0 %1833
        %1837 = vrot.lane.b32.xlu0 %v1830, 16
        %v1838 = vpop.permute.xlu0 %1837
        %1841 = vrot.lane.b32.xlu0 %v1831, 24
        %v1842 = vpop.permute.xlu0 %1841
        %v1844 = vsel %vm1274, %v1828, %v1834
        %vm1845 = vcmask 130048
        %v1846 = vsel %vm1845, %v1844, %v1838
        %vm1847 = vcmask 195584
        %v1848 = vsel %vm1847, %v1846, %v1842
        %v1849 = vpack.c.bf16 %v1848, %v1848
        %v1850 = vld [vmem:[%s9] sm:$0xf]
        %v1851 = vld [vmem:[%s9 + $0x4] sm:$0xf]
        %v1852 = vld [vmem:[%s9 + $0x8] sm:$0xf]
        %v1853 = vld [vmem:[%s9 + $0xc] sm:$0xf]
        %v1854 = vld [vmem:[%s10] sm:$0x1]
        %v1856 = vlaneseq
        %v1857 = vshrl.u32 %v1856, 7
        %v1858 = vsub.s32 0, %v1857
        %v1859 = vrot.slane %v1854, %v1858
        %v1865 = vunpack.c.l.b16 %v1850
        %v1866 = vunpack.c.l.b16 %v1851
        %v1867 = vunpack.c.l.b16 %v1852
        %v1868 = vunpack.c.l.b16 %v1853
        %v1869 = vpack.c.b16 %v1866, %v1865
        %v1870 = vpack.c.b16 %v1868, %v1867
        %v1874 = vsel %vm1069, %v1849, 0
        %1876 = vmatprep.subr.bf16.mxu0 0
        %1877 = vmatpush1.bf16.msra.mxu0 %v1869
        %1878 = vmatprep.subr.bf16.mxu0 0
        %1879 = vmatpush1.bf16.msra.mxu0 %v1870
        %1880 = vmatprep.subr.bf16.mxu0 0
        %1881 = vmatpush1.bf16.msra.mxu0 0
        %1882 = vmatprep.subr.bf16.mxu0 0
        %1883 = vmatpush1.bf16.msra.mxu0 0
        %1884 = vmatprep.subr.bf16.mxu0 0
        %1885 = vmatpush1.bf16.msra.mxu0 0
        %1886 = vmatprep.subr.bf16.mxu0 0
        %1887 = vmatpush1.bf16.msra.mxu0 0
        %1888 = vmatprep.subr.bf16.mxu0 0
        %1889 = vmatpush1.bf16.msra.mxu0 0
        %1890 = vmatprep.subr.bf16.mxu0 0
        %1891 = vmatpush1.bf16.msra.mxu0 0
        %1892 = vmatprep.subr.bf16.mxu0 0
        %1893 = vmatpush1.bf16.msra.mxu0 0
        %1894 = vmatprep.subr.bf16.mxu0 0
        %1895 = vmatpush1.bf16.msra.mxu0 0
        %1896 = vmatprep.subr.bf16.mxu0 0
        %1897 = vmatpush1.bf16.msra.mxu0 0
        %1898 = vmatprep.subr.bf16.mxu0 0
        %1899 = vmatpush1.bf16.msra.mxu0 0
        %1900 = vmatprep.subr.bf16.mxu0 0
        %1901 = vmatpush1.bf16.msra.mxu0 0
        %1902 = vmatprep.subr.bf16.mxu0 0
        %1903 = vmatpush1.bf16.msra.mxu0 0
        %1904 = vmatprep.subr.bf16.mxu0 0
        %1905 = vmatpush1.bf16.msra.mxu0 0
        %1906 = vmatprep.subr.bf16.mxu0 0
        %1907 = vmatpush1.bf16.msra.mxu0 0
        %1908 = vmatprep.mubr.bf16.mxu0 0
        %1909 = vmatmul.mubr.bf16.gmra.mrb[0].mxu0 %v1874
        %v1910 = vpop.f32.mrb[0].mxu0
        %v1911 = vadd.f32 %v1859, %v1910
        %v1912 = vpop.f32.mrb[0].mxu0
        %v1913 = vpop.f32.mrb[0].mxu0
        %v1914 = vpop.f32.mrb[0].mxu0
        %1915 = vdwg.mxu0
        %v1916 = vunpack.c.l.bf16 %v1045
        %v1917 = vadd.f32 %v1911, %v1916
        %v1918 = vsel %vm1069, %v1917, 0.0
        %1919 = vadd.xlane.f32.xlu0 %v1918
        %v1920 = vpop.xlane.xlu0 %1919
        %v1921 = vrcp.pop 32.0
        %v1922 = vmul.f32 %v1920, %v1921
        %v1923 = vsub.f32 %v1917, %v1922
        %v1924 = vmul.f32 %v1923, %v1923
        %v1925 = vsel %vm1069, %v1924, 0.0
        %1926 = vadd.xlane.f32.xlu0 %v1925
        %v1927 = vpop.xlane.xlu0 %1926
        %v1928 = vmul.f32 %v1927, %v1921
        %v1929 = vadd.f32 %v1928, 1e-12
        %v1930 = vrsqrt.pop %v1929
        %v1931 = vmul.f32 %v1923, %v1930
        %v1932 = vld [vmem:[%s11] sm:$0x1]
        %v1934 = vlaneseq
        %v1935 = vshrl.u32 %v1934, 7
        %v1936 = vsub.s32 0, %v1935
        %v1937 = vrot.slane %v1932, %v1936
        %v1939 = vmul.f32 %v1931, %v1937
        %v1940 = vld [vmem:[%s12] sm:$0x1]
        %v1942 = vlaneseq
        %v1943 = vshrl.u32 %v1942, 7
        %v1944 = vsub.s32 0, %v1943
        %v1945 = vrot.slane %v1940, %v1944
        %v1947 = vadd.f32 %v1939, %v1945
        %1948 = vst.msk [vmem:[%s583] sm:$0xff] %vm1069, %v1947
        %s1949 = sand.u32 %s345, 1
        %s1950 = scalar_lea.sflag [#allocation6], %s1949
        %s1951 = sand.u32 %s345, 1
        %s1952 = smul.addr %s1951, 8
        %s1953 = scalar_lea.vmem [#allocation16], %s1952
        // Predicated region
        $region105: #{tpu_custom_call.1} parent=71 // pred_check
          %p1954 = pneg %p355
        $region106: #{tpu_custom_call.1} parent=71 // pred_check_branch
          %1956 = sbr.rel (%p1954) target = $region108
        $region107: #{tpu_custom_call.1} parent=71 // pred_region
          %s1958 = ssub.s32 128, 128
          %1959 = vsyncadd %s1950, %s1958
          %s1960 = sadd.s32 %s40, %s39
          %s1961 = smul.addr %s1960, 128
          %s1962 = scalar_lea.hbm %s13, %s1961
          %s1964 = sshll.u32 %s1953, 4
          %s1965 = int_to_ptr.vmem [resolvable:$true] %s1964
          %1967 = dma.vmem_to_hbm [thread:$0]  %s1965, 128, %s1962, %s1950
        $region108: #{tpu_custom_call.1} parent=71 // pred_fallthru
          _
      $region72: #{tpu_custom_call.1} parent=5 // pred_fallthru
        _
      %p1968 = scmp.le.s32.totalorder 2, %s30
      // Predicated region
      $region109: #{tpu_custom_call.1} parent=5 // pred_check
        %p1969 = pneg %p1968
      $region110: #{tpu_custom_call.1} parent=5 // pred_check_branch
        %1971 = sbr.rel (%p1969) target = $region112
      $region111: #{tpu_custom_call.1} parent=5 // pred_region
        %s1972 = ssub.s32 %s30, 2
        // Predicated region
        $region113: #{tpu_custom_call.1} parent=111 // pred_check
          %p1973 = pneg %p361
        $region114: #{tpu_custom_call.1} parent=111 // pred_check_branch
          %1975 = sbr.rel (%p1973) target = $region116
        $region115: #{tpu_custom_call.1} parent=111 // pred_region
          %s1976 = sand.u32 %s346, 1
          %s1977 = scalar_lea.sflag [#allocation6], %s1976
          %s1978 = sand.u32 %s346, 1
          %s1979 = smul.addr %s1978, 8
          %s1980 = scalar_lea.vmem [#allocation16], %s1979
          %1981 = dma.done %s1977, 128
        $region116: #{tpu_custom_call.1} parent=111 // pred_fallthru
          _
      $region112: #{tpu_custom_call.1} parent=5 // pred_fallthru
        _
    $region6: #{tpu_custom_call.1} parent=1 // loop_footer
      %s34 = sadd.s32 1, %s30
    $region7: #{tpu_custom_call.1} parent=1 // loop_footer_branch
      %29 = sbr.rel target = $region3
    $region8: #{tpu_custom_call.1} parent=1 // loop_exit
      _
    %1982 = vsyncpa [#allocation5], 1
    %s1983 = scalar_lea.sflag [#allocation5], 1
    %1984 = vsyncpa %s1983, 1
    %1985 = vsyncpa [#allocation8], 1
    %s1986 = scalar_lea.sflag [#allocation8], 1
    %1987 = vsyncpa %s1986, 1
    %1988 = vsyncpa [#allocation11], 1
    %1989 = vsyncpa [#allocation14], 1
    %1990 = vsyncpa [#allocation6], 1
    %s1991 = scalar_lea.sflag [#allocation6], 1
    %1992 = vsyncpa %s1991, 1

</llo_original>
